<compile_context>
chip_gen: v7x
topology: tpu7x:2x2x1
jax: 0.10.0
libtpu: 0.0.40
codegen_flags: <defaults>
</compile_context>

<pallas_src>
from functools import partial

import numpy as np
import jax
import jax.numpy as jnp
from jax import lax
from jax.experimental import pallas as pl
from jax.experimental.pallas import tpu as pltpu


def _round_up(a, b):
    return (a + b - 1) // b * b


def _vmem_capacity_bytes():
    """Physical VMEM per core; conservative fallback if the query is unavailable."""
    try:
        return int(pltpu.get_tpu_info().vmem_capacity_bytes)
    except Exception:
        return 64 * 1024 * 1024        # v7x-sized fallback (smallest of v5e/v6e/v7x)


def _auto_strip_rows(H, Wp2, Cp, vmem_bytes):
    """Largest strip height (multiple of 4) whose working set fits ~45% of VMEM."""
    budget = int(vmem_bytes * 0.45)            # ~28 MiB on 64 MiB parts, ~57 MiB on 128 MiB
    fixed = 4 * 9 * Cp * Cp * 2 + 8 * Cp * 4   # double-buffered weights + biases
    budget = max(budget - fixed, 4 * Wp2 * Cp * 48)
    # rough live bytes per strip row: double-buffered f32 in/out blocks (16) +
    # bf16 operand slabs x3/h3 (12) + f32 accumulators (8) + shift temps (~12).
    per_row = Wp2 * Cp * 48
    th = (budget // max(per_row, 1)) // 4 * 4
    return int(max(4, min(th, _round_up(H, 4))))


def _res_module_kernel(xm_ref, xh_ref, w0_ref, b0_ref, w1_ref, b1_ref,
                       out_ref, *, H, W, TH, Wp2, mxu_dtype):
    """One (batch, H-strip) step.

    xm_ref : (1, TH*Wp2, Cp)  f32   strip rows of the padded input (flattened H,W)
    xh_ref : (1, 4*Wp2,  Cp)  f32   4-row bottom halo of the same array
    w0/w1  : (3, 3*Cp, Cp)    bf16  per-dy [dx=-1; dx=0; dx=+1] taps, (Cin, Cout),
                                    BN scale folded in
    b0/b1  : (1, Cp)          f32   folded BN bias
    out_ref: (1, TH*Wp2, Cp)  f32
    """
    Cp = out_ref.shape[-1]
    M0 = (TH + 2) * Wp2          # rows of the intermediate (1-row halo each side)
    M1 = TH * Wp2                # rows of the output strip
    s = pl.program_id(1)

    def shifted3(xb):
        # Lane-concatenate the three +-1 column (== +-1 flat-row) shifts of the
        # already bf16-cast operand: (M, Cp) -> (M, 3*Cp) = [x[m-1], x[m], x[m+1]].
        zrow = jnp.zeros((1, Cp), mxu_dtype)
        return jnp.concatenate(
            [jnp.concatenate([zrow, xb[:-1]], axis=0),      # dx = -1
             xb,                                             # dx =  0
             jnp.concatenate([xb[1:], zrow], axis=0)],       # dx = +1
            axis=1)

    def conv3(x3, w_ref, m):
        # Three K=3*Cp matmuls (one per dy); the dy offsets are sublane-aligned
        # row slices (multiples of Wp2 >= 16).  Accumulator starts from the
        # first matmul (no zero-fill pass).
        acc = jnp.dot(x3[0:m], w_ref[0], preferred_element_type=jnp.float32)
        acc += jnp.dot(x3[Wp2:Wp2 + m], w_ref[1], preferred_element_type=jnp.float32)
        acc += jnp.dot(x3[2 * Wp2:2 * Wp2 + m], w_ref[2],
                       preferred_element_type=jnp.float32)
        return acc

    # ---- conv0 (+ folded BN scale) -----------------------------------------
    xb = jnp.concatenate([xm_ref[0].astype(mxu_dtype),
                          xh_ref[0].astype(mxu_dtype)], axis=0)   # ((TH+4)*Wp2, Cp)
    acc0 = conv3(shifted3(xb), w0_ref, M0)

    # BN bias + ReLU, then zero everything conv1 must see as padding: rows
    # outside the image (scalar thresholds on the flat row index) and the
    # width-padding columns.  The column index is recovered from the flat iota
    # with an f32 floor (avoids vector integer div/mod); the f32 error is far
    # below the 0.5 guard band for any realistic M0.
    m_idx = lax.broadcasted_iota(jnp.int32, (M0, 1), 0)
    row_ok = (m_idx >= (1 - s * TH) * Wp2) & (m_idx < (H + 1 - s * TH) * Wp2)
    m_f = m_idx.astype(jnp.float32)
    col = m_f - Wp2 * jnp.floor((m_f + 0.5) * (1.0 / Wp2))
    ok = row_ok & (col > 0.5) & (col < W + 0.5)
    hb = jnp.where(ok, jnp.maximum(acc0 + b0_ref[...], 0.0), 0.0).astype(mxu_dtype)

    # ---- conv1 (+ folded BN scale) -----------------------------------------
    acc1 = conv3(shifted3(hb), w1_ref, M1)
    y = acc1 + b1_ref[...]

    # ---- residual (exact f32, straight from the refs) + ReLU ----------------
    # identity = padded-input rows [2*Wp2, 2*Wp2 + M1); it straddles xm/xh, so
    # add it in two sublane-aligned slices.
    split = (TH - 2) * Wp2
    out_ref[0, 0:split, :] = jnp.maximum(
        xm_ref[0, 2 * Wp2:2 * Wp2 + split, :] + y[0:split], 0.0)
    out_ref[0, split:M1, :] = jnp.maximum(
        xh_ref[0, 0:2 * Wp2, :] + y[split:M1], 0.0)


def res_module_2d(x_nchw, w0, bn0, w1, bn1, *, strip_rows=None,
                  mxu_dtype=jnp.bfloat16):
    """x_nchw: (N, C, H, W) f32.  w*: (Cout, Cin, 3, 3).
    bn*: dict(gamma, beta, mean, var) each (C,).  Returns (N, C, H, W) f32."""
    N, C, H, W = x_nchw.shape
    eps = 1e-5

    Cp = _round_up(C, 128)                 # lane-dense channels
    Wp2 = _round_up(W + 2, 16)             # width + conv padding, 16-aligned
    vmem_cap = _vmem_capacity_bytes()
    if strip_rows is None:
        strip_rows = _auto_strip_rows(H, Wp2, Cp, vmem_cap)
    TH = min(_round_up(max(int(strip_rows), 4), 4), _round_up(H, 4))
    Hp = _round_up(H, TH)
    S = Hp // TH

    def fold(bn):
        scale = bn["gamma"] / jnp.sqrt(bn["var"] + eps)
        bias = bn["beta"] - bn["mean"] * scale
        return scale.astype(jnp.float32), bias.astype(jnp.float32)

    s0, b0 = fold(bn0)
    s1, b1 = fold(bn1)

    def repack(w, scale):
        # (Cout, Cin, 3, 3) -> (3, 3*Cp, Cp): per dy, the dx = -1/0/+1 taps are
        # stacked along K (rows) to match the lane-concatenated operand; BN
        # scale folded into the output channels, zero-padded to Cp, MXU dtype.
        wk = jnp.transpose(w, (2, 3, 1, 0)).reshape(9, C, C) * scale.reshape(1, 1, C)
        wk = jnp.pad(wk, ((0, 0), (0, Cp - C), (0, Cp - C)))
        return wk.reshape(3, 3 * Cp, Cp).astype(mxu_dtype)

    w0k, w1k = repack(w0, s0), repack(w1, s1)
    b0p = jnp.pad(b0, (0, Cp - C)).reshape(1, Cp)
    b1p = jnp.pad(b1, (0, Cp - C)).reshape(1, Cp)

    # Single fused layout pass: NCHW -> NHWC, zero-pad rows (2 halo rows on top,
    # Hp-H+2 at the bottom), columns (1 + alignment) and channels (-> Cp), then
    # flatten (H, W) into one tile-aligned sublane axis.
    # TODO(synk): keep activations NHWC(+Cp) across the whole neck so this
    # transpose/pad and the final crop/transpose are not paid per module.
    x_nhwc = jnp.transpose(x_nchw, (0, 2, 3, 1)).astype(jnp.float32)
    x_prep = jnp.pad(x_nhwc, ((0, 0), (2, Hp - H + 2),
                              (1, Wp2 - (W + 1)), (0, Cp - C)))
    x_prep = x_prep.reshape(N, (Hp + 4) * Wp2, Cp)

    kernel = partial(_res_module_kernel, H=H, W=W, TH=TH, Wp2=Wp2,
                     mxu_dtype=mxu_dtype)

    out = pl.pallas_call(
        kernel,
        out_shape=jax.ShapeDtypeStruct((N, Hp * Wp2, Cp), jnp.float32),
        grid_spec=pltpu.PrefetchScalarGridSpec(
            num_scalar_prefetch=0,
            grid=(N, S),
            in_specs=[
                # strip rows [s*TH, (s+1)*TH) of the padded input
                pl.BlockSpec((1, TH * Wp2, Cp), lambda n, s: (n, s, 0)),
                # 4-row bottom halo [(s+1)*TH, (s+1)*TH+4)
                pl.BlockSpec((1, 4 * Wp2, Cp),
                             lambda n, s: (n, (s + 1) * (TH // 4), 0)),
                pl.BlockSpec((3, 3 * Cp, Cp), lambda n, s: (0, 0, 0)),   # w0
                pl.BlockSpec((1, Cp), lambda n, s: (0, 0)),              # b0
                pl.BlockSpec((3, 3 * Cp, Cp), lambda n, s: (0, 0, 0)),   # w1
                pl.BlockSpec((1, Cp), lambda n, s: (0, 0)),              # b1
            ],
            out_specs=pl.BlockSpec((1, TH * Wp2, Cp), lambda n, s: (n, s, 0)),
        ),
        compiler_params=pltpu.CompilerParams(
            dimension_semantics=("parallel", "parallel"),
            vmem_limit_bytes=(vmem_cap * 3) // 4,     # 96 MiB on 128 MiB parts, 48 MiB on v7x
        ),
    )(x_prep, x_prep, w0k, b0p, w1k, b1p)

    out = out.reshape(N, Hp, Wp2, Cp)[:, :H, 1:W + 1, :C]
    return jnp.transpose(out, (0, 3, 1, 2))


def _reference(x_nchw, w0, bn0, w1, bn1, matmul_dtype=jnp.float32):
    """Pure-JAX reference (PyTorch semantics).  With matmul_dtype=bf16 it mirrors
    the kernel's operand rounding (BN scale folded into weights before the cast,
    intermediate cast to bf16 for the second conv, f32 accumulation)."""
    eps = 1e-5

    def fold(bn):
        scale = bn["gamma"] / jnp.sqrt(bn["var"] + eps)
        bias = bn["beta"] - bn["mean"] * scale
        return scale, bias

    s0, b0 = fold(bn0)
    s1, b1 = fold(bn1)
    w0e = (w0 * s0.reshape(-1, 1, 1, 1)).astype(matmul_dtype)
    w1e = (w1 * s1.reshape(-1, 1, 1, 1)).astype(matmul_dtype)

    def conv(x, w):
        return lax.conv_general_dilated(
            x.astype(matmul_dtype), w, window_strides=(1, 1),
            padding=((1, 1), (1, 1)),
            dimension_numbers=("NCHW", "OIHW", "NCHW"),
            preferred_element_type=jnp.float32)

    h = jnp.maximum(conv(x_nchw, w0e) + b0.reshape(1, -1, 1, 1), 0.0)
    y = conv(h, w1e) + b1.reshape(1, -1, 1, 1)
    return jnp.maximum(x_nchw + y, 0.0)


if __name__ == "__main__":
    # Small shapes consistent with the module's forward (Conv2d -> 4D NCHW).
    N, C, H, W = 2, 4, 16, 16

    key = jax.random.PRNGKey(0)
    ks = jax.random.split(key, 9)
    x = jax.random.normal(ks[0], (N, C, H, W), jnp.float32)

    w0 = 0.1 * jax.random.normal(ks[1], (C, C, 3, 3), jnp.float32)
    w1 = 0.1 * jax.random.normal(ks[2], (C, C, 3, 3), jnp.float32)
    bn0 = dict(
        gamma=1.0 + 0.1 * jax.random.normal(ks[3], (C,), jnp.float32),
        beta=0.1 * jax.random.normal(ks[4], (C,), jnp.float32),
        mean=0.1 * jax.random.normal(ks[5], (C,), jnp.float32),
        var=jnp.abs(jax.random.normal(ks[6], (C,), jnp.float32)) + 0.5,
    )
    bn1 = dict(
        gamma=1.0 + 0.1 * jax.random.normal(ks[7], (C,), jnp.float32),
        beta=0.1 * jax.random.normal(ks[8], (C,), jnp.float32),
        mean=jnp.zeros((C,), jnp.float32),
        var=jnp.ones((C,), jnp.float32),
    )

    # strip_rows=8 -> 2 H-strips per batch element, exercising the halo path.
    out = jax.block_until_ready(res_module_2d(x, w0, bn0, w1, bn1, strip_rows=8))
    assert out.shape == (N, C, H, W)

    # Implementation check: reference with matching bf16 operand rounding.
    ref_bf16 = jax.block_until_ready(
        _reference(x, w0, bn0, w1, bn1, matmul_dtype=jnp.bfloat16))
    np.testing.assert_allclose(np.asarray(out), np.asarray(ref_bf16),
                               rtol=5e-3, atol=5e-3)

    # Semantic check: pure f32 PyTorch-equivalent reference (bf16 MXU tolerance).
    ref_f32 = jax.block_until_ready(
        _reference(x, w0, bn0, w1, bn1, matmul_dtype=jnp.float32))
    np.testing.assert_allclose(np.asarray(out), np.asarray(ref_f32),
                               rtol=5e-2, atol=5e-2)

    print("KERNEL_OK")
</pallas_src>

<mosaic_0001>
module attributes {stable_mosaic.version = 11 : i64} {
  func.func @_res_module_kernel(%arg0: i32, %arg1: i32, %arg2: memref<1x256x128xf32, #tpu.memory_space<vmem>>, %arg3: memref<1x128x128xf32, #tpu.memory_space<vmem>>, %arg4: memref<3x384x128xbf16, #tpu.memory_space<vmem>>, %arg5: memref<1x128xf32, #tpu.memory_space<vmem>>, %arg6: memref<3x384x128xbf16, #tpu.memory_space<vmem>>, %arg7: memref<1x128xf32, #tpu.memory_space<vmem>>, %arg8: memref<1x256x128xf32, #tpu.memory_space<vmem>>) attributes {dimension_semantics = [#tpu.dimension_semantics<parallel>, #tpu.dimension_semantics<parallel>], iteration_bounds = array<i64: 2, 2>, scalar_prefetch = 0 : i64, scratch_operands = 0 : i64, tpu.core_type = #tpu.core_type<tc>, window_params = [{transform_indices = @transform_0, window_bounds = array<i64: 1, 256, 128>}, {transform_indices = @transform_1, window_bounds = array<i64: 1, 128, 128>}, {pipeline_mode = #tpu.pipeline_mode<synchronous>, transform_indices = @transform_2, window_bounds = array<i64: 3, 384, 128>}, {pipeline_mode = #tpu.pipeline_mode<synchronous>, transform_indices = @transform_3, window_bounds = array<i64: 1, 128>}, {pipeline_mode = #tpu.pipeline_mode<synchronous>, transform_indices = @transform_4, window_bounds = array<i64: 3, 384, 128>}, {pipeline_mode = #tpu.pipeline_mode<synchronous>, transform_indices = @transform_5, window_bounds = array<i64: 1, 128>}, {transform_indices = @transform_6, window_bounds = array<i64: 1, 256, 128>}]} {
    %c0 = arith.constant 0 : index
    %c0_0 = arith.constant 0 : index
    %c0_1 = arith.constant 0 : index
    %0 = vector.load %arg2[%c0, %c0_0, %c0_1] : memref<1x256x128xf32, #tpu.memory_space<vmem>>, vector<1x256x128xf32>
    %1 = vector.shape_cast %0 : vector<1x256x128xf32> to vector<256x128xf32>
    %2 = arith.truncf %1 : vector<256x128xf32> to vector<256x128xbf16>
    %c0_2 = arith.constant 0 : index
    %c0_3 = arith.constant 0 : index
    %c0_4 = arith.constant 0 : index
    %3 = vector.load %arg3[%c0_2, %c0_3, %c0_4] : memref<1x128x128xf32, #tpu.memory_space<vmem>>, vector<1x128x128xf32>
    %4 = vector.shape_cast %3 : vector<1x128x128xf32> to vector<128x128xf32>
    %5 = arith.truncf %4 : vector<128x128xf32> to vector<128x128xbf16>
    %6 = tpu.concatenate %2, %5 in 0 : vector<256x128xbf16>, vector<128x128xbf16> -> vector<384x128xbf16>
    %cst = arith.constant 0.000000e+00 : bf16
    %7 = vector.broadcast %cst : bf16 to vector<1x128xbf16>
    %8 = vector.extract_strided_slice %6 {offsets = [0, 0], sizes = [383, 128], strides = [1, 1]} : vector<384x128xbf16> to vector<383x128xbf16>
    %9 = tpu.concatenate %7, %8 in 0 : vector<1x128xbf16>, vector<383x128xbf16> -> vector<384x128xbf16>
    %10 = vector.extract_strided_slice %6 {offsets = [1, 0], sizes = [383, 128], strides = [1, 1]} : vector<384x128xbf16> to vector<383x128xbf16>
    %11 = tpu.concatenate %10, %7 in 0 : vector<383x128xbf16>, vector<1x128xbf16> -> vector<384x128xbf16>
    %12 = tpu.concatenate %9, %6, %11 in 1 : vector<384x128xbf16>, vector<384x128xbf16>, vector<384x128xbf16> -> vector<384x384xbf16>
    %13 = vector.extract_strided_slice %12 {offsets = [0, 0], sizes = [320, 384], strides = [1, 1]} : vector<384x384xbf16> to vector<320x384xbf16>
    %c0_5 = arith.constant 0 : index
    %c0_6 = arith.constant 0 : index
    %c0_7 = arith.constant 0 : index
    %14 = vector.load %arg4[%c0_5, %c0_6, %c0_7] : memref<3x384x128xbf16, #tpu.memory_space<vmem>>, vector<1x384x128xbf16>
    %15 = vector.shape_cast %14 : vector<1x384x128xbf16> to vector<384x128xbf16>
    %cst_8 = arith.constant dense<0.000000e+00> : vector<320x128xf32>
    %16 = tpu.matmul %13, %15, %cst_8 {dimension_numbers = #tpu.dot_dimension_numbers<[1], [0], [0], [1], [0, 0, 1, 1], [], []>} : vector<320x384xbf16>, vector<384x128xbf16>, vector<320x128xf32> -> vector<320x128xf32>
    %17 = vector.extract_strided_slice %12 {offsets = [32, 0], sizes = [320, 384], strides = [1, 1]} : vector<384x384xbf16> to vector<320x384xbf16>
    %c1 = arith.constant 1 : index
    %c0_9 = arith.constant 0 : index
    %c0_10 = arith.constant 0 : index
    %18 = vector.load %arg4[%c1, %c0_9, %c0_10] : memref<3x384x128xbf16, #tpu.memory_space<vmem>>, vector<1x384x128xbf16>
    %19 = vector.shape_cast %18 : vector<1x384x128xbf16> to vector<384x128xbf16>
    %cst_11 = arith.constant dense<0.000000e+00> : vector<320x128xf32>
    %20 = tpu.matmul %17, %19, %cst_11 {dimension_numbers = #tpu.dot_dimension_numbers<[1], [0], [0], [1], [0, 0, 1, 1], [], []>} : vector<320x384xbf16>, vector<384x128xbf16>, vector<320x128xf32> -> vector<320x128xf32>
    %21 = arith.addf %16, %20 : vector<320x128xf32>
    %22 = vector.extract_strided_slice %12 {offsets = [64, 0], sizes = [320, 384], strides = [1, 1]} : vector<384x384xbf16> to vector<320x384xbf16>
    %c2 = arith.constant 2 : index
    %c0_12 = arith.constant 0 : index
    %c0_13 = arith.constant 0 : index
    %23 = vector.load %arg4[%c2, %c0_12, %c0_13] : memref<3x384x128xbf16, #tpu.memory_space<vmem>>, vector<1x384x128xbf16>
    %24 = vector.shape_cast %23 : vector<1x384x128xbf16> to vector<384x128xbf16>
    %cst_14 = arith.constant dense<0.000000e+00> : vector<320x128xf32>
    %25 = tpu.matmul %22, %24, %cst_14 {dimension_numbers = #tpu.dot_dimension_numbers<[1], [0], [0], [1], [0, 0, 1, 1], [], []>} : vector<320x384xbf16>, vector<384x128xbf16>, vector<320x128xf32> -> vector<320x128xf32>
    %26 = arith.addf %21, %25 : vector<320x128xf32>
    %27 = tpu.iota {dimensions = array<i32: 0>} : vector<320x1xi32>
    %c8_i32 = arith.constant 8 : i32
    %28 = arith.muli %arg1, %c8_i32 : i32
    %c1_i32 = arith.constant 1 : i32
    %29 = arith.subi %c1_i32, %28 : i32
    %c32_i32 = arith.constant 32 : i32
    %30 = arith.muli %29, %c32_i32 : i32
    %31 = vector.broadcast %30 : i32 to vector<320x1xi32>
    %32 = arith.cmpi sge, %27, %31 : vector<320x1xi32>
    %c8_i32_15 = arith.constant 8 : i32
    %33 = arith.muli %arg1, %c8_i32_15 : i32
    %c17_i32 = arith.constant 17 : i32
    %34 = arith.subi %c17_i32, %33 : i32
    %c32_i32_16 = arith.constant 32 : i32
    %35 = arith.muli %34, %c32_i32_16 : i32
    %36 = vector.broadcast %35 : i32 to vector<320x1xi32>
    %37 = arith.cmpi slt, %27, %36 : vector<320x1xi32>
    %38 = arith.andi %32, %37 : vector<320x1xi1>
    %39 = arith.sitofp %27 : vector<320x1xi32> to vector<320x1xf32>
    %cst_17 = arith.constant 5.000000e-01 : f32
    %40 = vector.broadcast %cst_17 : f32 to vector<320x1xf32>
    %41 = arith.addf %39, %40 : vector<320x1xf32>
    %cst_18 = arith.constant 3.125000e-02 : f32
    %42 = vector.broadcast %cst_18 : f32 to vector<320x1xf32>
    %43 = arith.mulf %41, %42 : vector<320x1xf32>
    %44 = math.floor %43 : vector<320x1xf32>
    %cst_19 = arith.constant 3.200000e+01 : f32
    %45 = vector.broadcast %cst_19 : f32 to vector<320x1xf32>
    %46 = arith.mulf %45, %44 : vector<320x1xf32>
    %47 = arith.subf %39, %46 : vector<320x1xf32>
    %cst_20 = arith.constant 5.000000e-01 : f32
    %48 = vector.broadcast %cst_20 : f32 to vector<320x1xf32>
    %49 = arith.cmpf ogt, %47, %48 : vector<320x1xf32>
    %50 = arith.andi %38, %49 : vector<320x1xi1>
    %cst_21 = arith.constant 1.650000e+01 : f32
    %51 = vector.broadcast %cst_21 : f32 to vector<320x1xf32>
    %52 = arith.cmpf olt, %47, %51 : vector<320x1xf32>
    %53 = arith.andi %50, %52 : vector<320x1xi1>
    %c0_22 = arith.constant 0 : index
    %c0_23 = arith.constant 0 : index
    %54 = vector.load %arg5[%c0_22, %c0_23] : memref<1x128xf32, #tpu.memory_space<vmem>>, vector<1x128xf32>
    %55 = vector.broadcast %54 : vector<1x128xf32> to vector<320x128xf32>
    %56 = arith.addf %26, %55 : vector<320x128xf32>
    %cst_24 = arith.constant 0.000000e+00 : f32
    %57 = vector.broadcast %cst_24 : f32 to vector<320x128xf32>
    %58 = arith.maximumf %56, %57 : vector<320x128xf32>
    %cst_25 = arith.constant 0.000000e+00 : f32
    %59 = vector.shape_cast %53 : vector<320x1xi1> to vector<320x1xi1>
    %60 = vector.broadcast %59 : vector<320x1xi1> to vector<320x128xi1>
    %61 = vector.broadcast %cst_25 : f32 to vector<320x128xf32>
    %62 = arith.select %60, %58, %61 : vector<320x128xi1>, vector<320x128xf32>
    %63 = arith.truncf %62 : vector<320x128xf32> to vector<320x128xbf16>
    %cst_26 = arith.constant 0.000000e+00 : bf16
    %64 = vector.broadcast %cst_26 : bf16 to vector<1x128xbf16>
    %65 = vector.extract_strided_slice %63 {offsets = [0, 0], sizes = [319, 128], strides = [1, 1]} : vector<320x128xbf16> to vector<319x128xbf16>
    %66 = tpu.concatenate %64, %65 in 0 : vector<1x128xbf16>, vector<319x128xbf16> -> vector<320x128xbf16>
    %67 = vector.extract_strided_slice %63 {offsets = [1, 0], sizes = [319, 128], strides = [1, 1]} : vector<320x128xbf16> to vector<319x128xbf16>
    %68 = tpu.concatenate %67, %64 in 0 : vector<319x128xbf16>, vector<1x128xbf16> -> vector<320x128xbf16>
    %69 = tpu.concatenate %66, %63, %68 in 1 : vector<320x128xbf16>, vector<320x128xbf16>, vector<320x128xbf16> -> vector<320x384xbf16>
    %70 = vector.extract_strided_slice %69 {offsets = [0, 0], sizes = [256, 384], strides = [1, 1]} : vector<320x384xbf16> to vector<256x384xbf16>
    %c0_27 = arith.constant 0 : index
    %c0_28 = arith.constant 0 : index
    %c0_29 = arith.constant 0 : index
    %71 = vector.load %arg6[%c0_27, %c0_28, %c0_29] : memref<3x384x128xbf16, #tpu.memory_space<vmem>>, vector<1x384x128xbf16>
    %72 = vector.shape_cast %71 : vector<1x384x128xbf16> to vector<384x128xbf16>
    %cst_30 = arith.constant dense<0.000000e+00> : vector<256x128xf32>
    %73 = tpu.matmul %70, %72, %cst_30 {dimension_numbers = #tpu.dot_dimension_numbers<[1], [0], [0], [1], [0, 0, 1, 1], [], []>} : vector<256x384xbf16>, vector<384x128xbf16>, vector<256x128xf32> -> vector<256x128xf32>
    %74 = vector.extract_strided_slice %69 {offsets = [32, 0], sizes = [256, 384], strides = [1, 1]} : vector<320x384xbf16> to vector<256x384xbf16>
    %c1_31 = arith.constant 1 : index
    %c0_32 = arith.constant 0 : index
    %c0_33 = arith.constant 0 : index
    %75 = vector.load %arg6[%c1_31, %c0_32, %c0_33] : memref<3x384x128xbf16, #tpu.memory_space<vmem>>, vector<1x384x128xbf16>
    %76 = vector.shape_cast %75 : vector<1x384x128xbf16> to vector<384x128xbf16>
    %cst_34 = arith.constant dense<0.000000e+00> : vector<256x128xf32>
    %77 = tpu.matmul %74, %76, %cst_34 {dimension_numbers = #tpu.dot_dimension_numbers<[1], [0], [0], [1], [0, 0, 1, 1], [], []>} : vector<256x384xbf16>, vector<384x128xbf16>, vector<256x128xf32> -> vector<256x128xf32>
    %78 = arith.addf %73, %77 : vector<256x128xf32>
    %79 = vector.extract_strided_slice %69 {offsets = [64, 0], sizes = [256, 384], strides = [1, 1]} : vector<320x384xbf16> to vector<256x384xbf16>
    %c2_35 = arith.constant 2 : index
    %c0_36 = arith.constant 0 : index
    %c0_37 = arith.constant 0 : index
    %80 = vector.load %arg6[%c2_35, %c0_36, %c0_37] : memref<3x384x128xbf16, #tpu.memory_space<vmem>>, vector<1x384x128xbf16>
    %81 = vector.shape_cast %80 : vector<1x384x128xbf16> to vector<384x128xbf16>
    %cst_38 = arith.constant dense<0.000000e+00> : vector<256x128xf32>
    %82 = tpu.matmul %79, %81, %cst_38 {dimension_numbers = #tpu.dot_dimension_numbers<[1], [0], [0], [1], [0, 0, 1, 1], [], []>} : vector<256x384xbf16>, vector<384x128xbf16>, vector<256x128xf32> -> vector<256x128xf32>
    %83 = arith.addf %78, %82 : vector<256x128xf32>
    %c0_39 = arith.constant 0 : index
    %c0_40 = arith.constant 0 : index
    %84 = vector.load %arg7[%c0_39, %c0_40] : memref<1x128xf32, #tpu.memory_space<vmem>>, vector<1x128xf32>
    %85 = vector.broadcast %84 : vector<1x128xf32> to vector<256x128xf32>
    %86 = arith.addf %83, %85 : vector<256x128xf32>
    %c0_41 = arith.constant 0 : index
    %c64 = arith.constant 64 : index
    %c0_42 = arith.constant 0 : index
    %87 = vector.load %arg2[%c0_41, %c64, %c0_42] : memref<1x256x128xf32, #tpu.memory_space<vmem>>, vector<1x192x128xf32>
    %88 = vector.shape_cast %87 : vector<1x192x128xf32> to vector<192x128xf32>
    %89 = vector.extract_strided_slice %86 {offsets = [0, 0], sizes = [192, 128], strides = [1, 1]} : vector<256x128xf32> to vector<192x128xf32>
    %90 = arith.addf %88, %89 : vector<192x128xf32>
    %cst_43 = arith.constant 0.000000e+00 : f32
    %91 = vector.broadcast %cst_43 : f32 to vector<192x128xf32>
    %92 = arith.maximumf %90, %91 : vector<192x128xf32>
    %c0_44 = arith.constant 0 : index
    %c0_45 = arith.constant 0 : index
    %c0_46 = arith.constant 0 : index
    %93 = vector.load %arg8[%c0_44, %c0_45, %c0_46] : memref<1x256x128xf32, #tpu.memory_space<vmem>>, vector<1x192x128xf32>
    %94 = vector.shape_cast %93 : vector<1x192x128xf32> to vector<192x128xf32>
    %95 = vector.shape_cast %92 : vector<192x128xf32> to vector<1x192x128xf32>
    tpu.vector_store %arg8[%c0_44, %c0_45, %c0_46], %95 {strides = array<i32>} : memref<1x256x128xf32, #tpu.memory_space<vmem>>, vector<1x192x128xf32>,
    %c0_47 = arith.constant 0 : index
    %c0_48 = arith.constant 0 : index
    %c0_49 = arith.constant 0 : index
    %96 = vector.load %arg3[%c0_47, %c0_48, %c0_49] : memref<1x128x128xf32, #tpu.memory_space<vmem>>, vector<1x64x128xf32>
    %97 = vector.shape_cast %96 : vector<1x64x128xf32> to vector<64x128xf32>
    %98 = vector.extract_strided_slice %86 {offsets = [192, 0], sizes = [64, 128], strides = [1, 1]} : vector<256x128xf32> to vector<64x128xf32>
    %99 = arith.addf %97, %98 : vector<64x128xf32>
    %cst_50 = arith.constant 0.000000e+00 : f32
    %100 = vector.broadcast %cst_50 : f32 to vector<64x128xf32>
    %101 = arith.maximumf %99, %100 : vector<64x128xf32>
    %c0_51 = arith.constant 0 : index
    %c192 = arith.constant 192 : index
    %c0_52 = arith.constant 0 : index
    %102 = vector.load %arg8[%c0_51, %c192, %c0_52] : memref<1x256x128xf32, #tpu.memory_space<vmem>>, vector<1x64x128xf32>
    %103 = vector.shape_cast %102 : vector<1x64x128xf32> to vector<64x128xf32>
    %104 = vector.shape_cast %101 : vector<64x128xf32> to vector<1x64x128xf32>
    tpu.vector_store %arg8[%c0_51, %c192, %c0_52], %104 {strides = array<i32>} : memref<1x256x128xf32, #tpu.memory_space<vmem>>, vector<1x64x128xf32>,
    return
  }
  func.func @transform_0(%arg0: i32, %arg1: i32) -> (i32, i32, i32) {
    %c0_i32 = arith.constant 0 : i32
    %c0_i32_0 = arith.constant 0 : i32
    return %arg0, %arg1, %c0_i32 : i32, i32, i32
  }
  func.func @transform_1(%arg0: i32, %arg1: i32) -> (i32, i32, i32) {
    %c1_i32 = arith.constant 1 : i32
    %0 = arith.addi %arg1, %c1_i32 : i32
    %c2_i32 = arith.constant 2 : i32
    %1 = arith.muli %0, %c2_i32 : i32
    %c0_i32 = arith.constant 0 : i32
    %c0_i32_0 = arith.constant 0 : i32
    return %arg0, %1, %c0_i32 : i32, i32, i32
  }
  func.func @transform_2(%arg0: i32, %arg1: i32) -> (i32, i32, i32) {
    %c0_i32 = arith.constant 0 : i32
    %c0_i32_0 = arith.constant 0 : i32
    %c0_i32_1 = arith.constant 0 : i32
    %c0_i32_2 = arith.constant 0 : i32
    return %c0_i32, %c0_i32_0, %c0_i32_1 : i32, i32, i32
  }
  func.func @transform_3(%arg0: i32, %arg1: i32) -> (i32, i32) {
    %c0_i32 = arith.constant 0 : i32
    %c0_i32_0 = arith.constant 0 : i32
    %c0_i32_1 = arith.constant 0 : i32
    return %c0_i32, %c0_i32_0 : i32, i32
  }
  func.func @transform_4(%arg0: i32, %arg1: i32) -> (i32, i32, i32) {
    %c0_i32 = arith.constant 0 : i32
    %c0_i32_0 = arith.constant 0 : i32
    %c0_i32_1 = arith.constant 0 : i32
    %c0_i32_2 = arith.constant 0 : i32
    return %c0_i32, %c0_i32_0, %c0_i32_1 : i32, i32, i32
  }
  func.func @transform_5(%arg0: i32, %arg1: i32) -> (i32, i32) {
    %c0_i32 = arith.constant 0 : i32
    %c0_i32_0 = arith.constant 0 : i32
    %c0_i32_1 = arith.constant 0 : i32
    return %c0_i32, %c0_i32_0 : i32, i32
  }
  func.func @transform_6(%arg0: i32, %arg1: i32) -> (i32, i32, i32) {
    %c0_i32 = arith.constant 0 : i32
    %c0_i32_0 = arith.constant 0 : i32
    return %arg0, %arg1, %c0_i32 : i32, i32, i32
  }
}

</mosaic_0001>

<llo_original>
// kernel: tpu_custom_call.1
$region0: #{tpu_custom_call.1}
  #allocation0 [shape = 'u32[]', space=smem, size = 0x4, offset = 0x4, fixed_abs, tag = 'smem constant byte address 0x4 - core index']
  #allocation1 [shape = 'u32[144,128]{1,0:T(1,128)}', space=vmem, size = 0x12000, scoped, tag = 'internal scratch']
  %s0 = inlined_call_operand.hbm [shape: f32[2,640,128], index: 0, kind: input, shape index: {}]
  %s1 = inlined_call_operand.hbm [shape: f32[2,640,128], index: 1, kind: input, shape index: {}]
  %s2 = inlined_call_operand.hbm [shape: bf16[3,384,128], index: 2, kind: input, shape index: {}]
  %s3 = inlined_call_operand.vmem [shape: f32[1,128], index: 3, kind: input, shape index: {}]
  %s4 = inlined_call_operand.hbm [shape: bf16[3,384,128], index: 4, kind: input, shape index: {}]
  %s5 = inlined_call_operand.vmem [shape: f32[1,128], index: 5, kind: input, shape index: {}]
  %s6 = inlined_call_operand.hbm [shape: f32[2,512,128], index: 6, kind: output, shape index: {}]
  %s7 = sld [smem:[#allocation0]]
  $region73: #{tpu_custom_call.1} parent=0
    _
  %s9 = ssub.s32 1, %s7
  %s10 = scalar_select 0, %s9, %s7
  $region1: #{tpu_custom_call.1} parent=0
    #allocation2 [shape = 'u8[262144]{0}', space=vmem, size = 0x40000, scoped, tag = 'input window, operand 0']
    #allocation3 [shape = 's32[2]{0}', space=sflag, size = 0x8, scoped, tag = 'scoped memory for tpu_custom_call.1']
    #allocation4 [shape = 's32[2]{0}', space=sflag, size = 0x8, scoped, tag = 'scoped memory for tpu_custom_call.1']
    #allocation5 [shape = 'u8[131072]{0}', space=vmem, size = 0x20000, scoped, tag = 'input window, operand 1']
    #allocation6 [shape = 's32[2]{0}', space=sflag, size = 0x8, scoped, tag = 'scoped memory for tpu_custom_call.1']
    #allocation7 [shape = 'u8[294912]{0}', space=vmem, size = 0x48000, scoped, tag = 'input window, operand 2, single buffered']
    #allocation8 [shape = 'u8[294912]{0}', space=vmem, size = 0x48000, scoped, tag = 'input window, operand 4, single buffered']
    #allocation9 [shape = 's32[1]{0}', space=sflag, size = 0x4, scoped, tag = 'scoped memory for tpu_custom_call.1']
    #allocation10 [shape = 'u8[262144]{0}', space=vmem, size = 0x40000, scoped, tag = 'output window, operand 0']
    %11 = vsyncpa [#allocation3], 0
    %s12 = scalar_lea.sflag [#allocation3], 1
    %13 = vsyncpa %s12, 0
    %14 = vsyncpa [#allocation6], 0
    %s15 = scalar_lea.sflag [#allocation6], 1
    %16 = vsyncpa %s15, 0
    %17 = vsyncpa [#allocation9], 0
    %18 = vsyncpa [#allocation4], 0
    %s19 = scalar_lea.sflag [#allocation4], 1
    %20 = vsyncpa %s19, 0
    loop: start=0, step=1, limit=6
    $region2: #{tpu_custom_call.1} parent=1 // loop_pre_header
      _
    $region3: #{tpu_custom_call.1} parent=1 // loop_header
      %s22 = sphi 0, %s26
      %p23 = scmp.ge.s32.totalorder %s22, 6
      %s29 = sphi 0, %s41
      %s30 = sphi 0, %s37
      %s31 = sphi 0, %s29
      %s32 = sphi 0, %s30
      %s33 = sphi 0, %s31
      %s34 = sphi 0, %s32
      %s46 = sphi 0, %s48
      %s49 = sphi 0, %s46
      %s50 = sphi 0, %s49
      %s66 = sphi 0, %s50
      %s78 = sphi 0, %s80
      %s81 = sphi 0, %s78
      %s82 = sphi 0, %s81
      %s98 = sphi 0, %s82
      %s102 = sphi 0, %s102
      %s104 = sphi 0, %s102
      %s105 = sphi 0, %s104
      %s119 = sphi 0, %s105
      %s123 = sphi 0, %s123
      %s125 = sphi 0, %s123
      %s126 = sphi 0, %s125
      %s140 = sphi 0, %s126
      %s144 = sphi 0, %s144
      %s146 = sphi 0, %s144
      %s147 = sphi 0, %s146
      %s161 = sphi 0, %s147
      %s165 = sphi 0, %s165
      %s167 = sphi 0, %s165
      %s168 = sphi 0, %s167
      %s182 = sphi 0, %s168
      %s190 = sphi 0, %s192
      %s193 = sphi 0, %s190
      %s194 = sphi 0, %s193
      %s210 = sphi 0, %s194
    $region4: #{tpu_custom_call.1} parent=1 // loop_header_branch
      %25 = sbr.rel (%p23) target = $region8
    $region5: #{tpu_custom_call.1} parent=1 // loop_body
      %s27 = ssub.s32 %s22, 1
      %s28 = ssub.s32 %s22, 2
      %s35 = sadd.s32 1, %s30
      %p36 = scmp.ge.s32.totalorder %s35, 2
      %s37 = scalar_select %p36, 0, %s35
      %s38 = sadd.s32 1, %s29
      %s39 = scalar_select %p36, %s38, %s29
      %p40 = scmp.ge.s32.totalorder %s39, 2
      %s41 = scalar_select %p40, 0, %s39
      %s42 = ssub.s32 %s29, %s41
      %s43 = ssub.s32 %s30, %s37
      %s44 = sor.u32 %s42, %s43
      %p45 = scmp.eq.s32.totalorder %s44, 0
      %s47 = sadd.s32 %s46, 1
      %s48 = scalar_select %p45, %s46, %s47
      %p51 = pneg %p45
      %p52 = scmp.eq.s32.totalorder %s22, 3
      %p53 = por %p51, %p52
      %p54 = scmp.ne.s32.totalorder %s46, %s49
      %p55 = scmp.eq.s32.totalorder %s22, 0
      %p56 = por %p54, %p55
      %p57 = scmp.ne.s32.totalorder %s46, %s49
      %p58 = scmp.eq.s32.totalorder %s27, 3
      %p59 = por %p57, %p58
      %p60 = scmp.ne.s32.totalorder %s49, %s50
      %p61 = scmp.eq.s32.totalorder %s27, 0
      %p62 = por %p60, %p61
      %p63 = scmp.ne.s32.totalorder %s49, %s50
      %p64 = scmp.eq.s32.totalorder %s28, 3
      %p65 = por %p63, %p64
      %p67 = scmp.ne.s32.totalorder %s50, %s66
      %p68 = scmp.eq.s32.totalorder %s28, 0
      %p69 = por %p67, %p68
      %s70 = sadd.s32 %s30, 1
      %s71 = smul.u32 %s70, 2
      %s72 = sadd.s32 %s37, 1
      %s73 = smul.u32 %s72, 2
      %s74 = ssub.s32 %s29, %s41
      %s75 = ssub.s32 %s71, %s73
      %s76 = sor.u32 %s74, %s75
      %p77 = scmp.eq.s32.totalorder %s76, 0
      %s79 = sadd.s32 %s78, 1
      %s80 = scalar_select %p77, %s78, %s79
      %p83 = pneg %p77
      %p84 = scmp.eq.s32.totalorder %s22, 3
      %p85 = por %p83, %p84
      %p86 = scmp.ne.s32.totalorder %s78, %s81
      %p87 = scmp.eq.s32.totalorder %s22, 0
      %p88 = por %p86, %p87
      %p89 = scmp.ne.s32.totalorder %s78, %s81
      %p90 = scmp.eq.s32.totalorder %s27, 3
      %p91 = por %p89, %p90
      %p92 = scmp.ne.s32.totalorder %s81, %s82
      %p93 = scmp.eq.s32.totalorder %s27, 0
      %p94 = por %p92, %p93
      %p95 = scmp.ne.s32.totalorder %s81, %s82
      %p96 = scmp.eq.s32.totalorder %s28, 3
      %p97 = por %p95, %p96
      %p99 = scmp.ne.s32.totalorder %s82, %s98
      %p100 = scmp.eq.s32.totalorder %s28, 0
      %p101 = por %p99, %p100
      %s103 = sadd.s32 %s102, 1
      %p106 = scmp.eq.s32.totalorder %s22, 3
      %p107 = scmp.ne.s32.totalorder %s102, %s104
      %p108 = scmp.eq.s32.totalorder %s22, 0
      %p109 = por %p107, %p108
      %p110 = scmp.ne.s32.totalorder %s102, %s104
      %p111 = scmp.eq.s32.totalorder %s27, 3
      %p112 = por %p110, %p111
      %p113 = scmp.ne.s32.totalorder %s104, %s105
      %p114 = scmp.eq.s32.totalorder %s27, 0
      %p115 = por %p113, %p114
      %p116 = scmp.ne.s32.totalorder %s104, %s105
      %p117 = scmp.eq.s32.totalorder %s28, 3
      %p118 = por %p116, %p117
      %p120 = scmp.ne.s32.totalorder %s105, %s119
      %p121 = scmp.eq.s32.totalorder %s28, 0
      %p122 = por %p120, %p121
      %s124 = sadd.s32 %s123, 1
      %p127 = scmp.eq.s32.totalorder %s22, 3
      %p128 = scmp.ne.s32.totalorder %s123, %s125
      %p129 = scmp.eq.s32.totalorder %s22, 0
      %p130 = por %p128, %p129
      %p131 = scmp.ne.s32.totalorder %s123, %s125
      %p132 = scmp.eq.s32.totalorder %s27, 3
      %p133 = por %p131, %p132
      %p134 = scmp.ne.s32.totalorder %s125, %s126
      %p135 = scmp.eq.s32.totalorder %s27, 0
      %p136 = por %p134, %p135
      %p137 = scmp.ne.s32.totalorder %s125, %s126
      %p138 = scmp.eq.s32.totalorder %s28, 3
      %p139 = por %p137, %p138
      %p141 = scmp.ne.s32.totalorder %s126, %s140
      %p142 = scmp.eq.s32.totalorder %s28, 0
      %p143 = por %p141, %p142
      %s145 = sadd.s32 %s144, 1
      %p148 = scmp.eq.s32.totalorder %s22, 3
      %p149 = scmp.ne.s32.totalorder %s144, %s146
      %p150 = scmp.eq.s32.totalorder %s22, 0
      %p151 = por %p149, %p150
      %p152 = scmp.ne.s32.totalorder %s144, %s146
      %p153 = scmp.eq.s32.totalorder %s27, 3
      %p154 = por %p152, %p153
      %p155 = scmp.ne.s32.totalorder %s146, %s147
      %p156 = scmp.eq.s32.totalorder %s27, 0
      %p157 = por %p155, %p156
      %p158 = scmp.ne.s32.totalorder %s146, %s147
      %p159 = scmp.eq.s32.totalorder %s28, 3
      %p160 = por %p158, %p159
      %p162 = scmp.ne.s32.totalorder %s147, %s161
      %p163 = scmp.eq.s32.totalorder %s28, 0
      %p164 = por %p162, %p163
      %s166 = sadd.s32 %s165, 1
      %p169 = scmp.eq.s32.totalorder %s22, 3
      %p170 = scmp.ne.s32.totalorder %s165, %s167
      %p171 = scmp.eq.s32.totalorder %s22, 0
      %p172 = por %p170, %p171
      %p173 = scmp.ne.s32.totalorder %s165, %s167
      %p174 = scmp.eq.s32.totalorder %s27, 3
      %p175 = por %p173, %p174
      %p176 = scmp.ne.s32.totalorder %s167, %s168
      %p177 = scmp.eq.s32.totalorder %s27, 0
      %p178 = por %p176, %p177
      %p179 = scmp.ne.s32.totalorder %s167, %s168
      %p180 = scmp.eq.s32.totalorder %s28, 3
      %p181 = por %p179, %p180
      %p183 = scmp.ne.s32.totalorder %s168, %s182
      %p184 = scmp.eq.s32.totalorder %s28, 0
      %p185 = por %p183, %p184
      %s186 = ssub.s32 %s29, %s41
      %s187 = ssub.s32 %s30, %s37
      %s188 = sor.u32 %s186, %s187
      %p189 = scmp.eq.s32.totalorder %s188, 0
      %s191 = sadd.s32 %s190, 1
      %s192 = scalar_select %p189, %s190, %s191
      %p195 = pneg %p189
      %p196 = scmp.eq.s32.totalorder %s22, 3
      %p197 = por %p195, %p196
      %p198 = scmp.ne.s32.totalorder %s190, %s193
      %p199 = scmp.eq.s32.totalorder %s22, 0
      %p200 = por %p198, %p199
      %p201 = scmp.ne.s32.totalorder %s190, %s193
      %p202 = scmp.eq.s32.totalorder %s27, 3
      %p203 = por %p201, %p202
      %p204 = scmp.ne.s32.totalorder %s193, %s194
      %p205 = scmp.eq.s32.totalorder %s27, 0
      %p206 = por %p204, %p205
      %p207 = scmp.ne.s32.totalorder %s193, %s194
      %p208 = scmp.eq.s32.totalorder %s28, 3
      %p209 = por %p207, %p208
      %p211 = scmp.ne.s32.totalorder %s194, %s210
      %p212 = scmp.eq.s32.totalorder %s28, 0
      %p213 = por %p211, %p212
      %p214 = scmp.le.s32.totalorder 1, %s22
      %p215 = scmp.lt.s32.totalorder %s22, 5
      %p216 = pnand %p214, %p215
      %p217 = pneg %p216
      // Predicated region
      $region9: #{tpu_custom_call.1} parent=5 // pred_check
        _
      $region10: #{tpu_custom_call.1} parent=5 // pred_check_branch
        %219 = sbr.rel (%p216) target = $region12
      $region11: #{tpu_custom_call.1} parent=5 // pred_region
        %s220 = ssub.s32 %s22, 1
        // Predicated region
        $region13: #{tpu_custom_call.1} parent=11 // pred_check
          %p221 = pneg %p115
        $region14: #{tpu_custom_call.1} parent=11 // pred_check_branch
          %223 = sbr.rel (%p221) target = $region16
        $region15: #{tpu_custom_call.1} parent=11 // pred_region
          %s225 = ssub.s32 9216, 9216
          %226 = vsyncadd [#allocation6], %s225
          %s227 = sshll.u32 [#allocation7], 4
          %s228 = int_to_ptr.vmem [resolvable:$true] %s227
          %233 = dma.hbm_to_vmem [thread:$0]  %s2, 9216, %s228, [#allocation6], 64, 64, 4
        $region16: #{tpu_custom_call.1} parent=11 // pred_fallthru
          _
        // Predicated region
        $region17: #{tpu_custom_call.1} parent=11 // pred_check
          %p234 = pneg %p136
        $region18: #{tpu_custom_call.1} parent=11 // pred_check_branch
          %236 = sbr.rel (%p234) target = $region20
        $region19: #{tpu_custom_call.1} parent=11 // pred_region
          _
        $region20: #{tpu_custom_call.1} parent=11 // pred_fallthru
          _
        // Predicated region
        $region21: #{tpu_custom_call.1} parent=11 // pred_check
          %p237 = pneg %p157
        $region22: #{tpu_custom_call.1} parent=11 // pred_check_branch
          %239 = sbr.rel (%p237) target = $region24
        $region23: #{tpu_custom_call.1} parent=11 // pred_region
          %s241 = ssub.s32 9216, 9216
          %242 = vsyncadd [#allocation9], %s241
          %s243 = sshll.u32 [#allocation8], 4
          %s244 = int_to_ptr.vmem [resolvable:$true] %s243
          %249 = dma.hbm_to_vmem [thread:$0]  %s4, 9216, %s244, [#allocation9], 64, 64, 4
        $region24: #{tpu_custom_call.1} parent=11 // pred_fallthru
          _
        // Predicated region
        $region25: #{tpu_custom_call.1} parent=11 // pred_check
          %p250 = pneg %p178
        $region26: #{tpu_custom_call.1} parent=11 // pred_check_branch
          %252 = sbr.rel (%p250) target = $region28
        $region27: #{tpu_custom_call.1} parent=11 // pred_region
          _
        $region28: #{tpu_custom_call.1} parent=11 // pred_fallthru
          _
      $region12: #{tpu_custom_call.1} parent=5 // pred_fallthru
        _
      %p253 = scmp.lt.s32.totalorder %s22, 4
      // Predicated region
      $region29: #{tpu_custom_call.1} parent=5 // pred_check
        %p254 = pneg %p253
      $region30: #{tpu_custom_call.1} parent=5 // pred_check_branch
        %256 = sbr.rel (%p254) target = $region32
      $region31: #{tpu_custom_call.1} parent=5 // pred_region
        // Predicated region
        $region33: #{tpu_custom_call.1} parent=31 // pred_check
          %p257 = pneg %p56
        $region34: #{tpu_custom_call.1} parent=31 // pred_check_branch
          %259 = sbr.rel (%p257) target = $region36
        $region35: #{tpu_custom_call.1} parent=31 // pred_region
          %s260 = sand.u32 %s46, 1
          %s261 = scalar_lea.sflag [#allocation3], %s260
          %s262 = sand.u32 %s46, 1
          %s263 = smul.addr %s262, 256
          %s264 = scalar_lea.vmem [#allocation2], %s263
          %s265 = smul.u32 32, %s30
          %s266 = ssub.s32 80, %s265
          %p267 = scmp.lt.s32.totalorder %s266, 32
          %s268 = scalar_select %p267, %s266, 32
          %s269 = smul.u32 128, %s268
          %s271 = ssub.s32 4096, %s269
          %272 = vsyncadd %s261, %s271
          %p273 = scmp.ne.s32.totalorder 0, %s269
          %s274 = smul.addr %s29, 80
          %s275 = sadd.s32 %s265, %s274
          %s276 = smul.addr %s275, 128
          %s277 = scalar_lea.hbm %s0, %s276
          %s278 = smul.u32 8, %s268
          %s279 = sshll.u32 %s264, 4
          %s280 = int_to_ptr.vmem [resolvable:$true] %s279
          %s281 = sshll.u32 %s278, 4
          %285 = dma.hbm_to_vmem [thread:$0]  (%p273), %s277, %s281, %s280, %s261, 128, 128, 8
        $region36: #{tpu_custom_call.1} parent=31 // pred_fallthru
          _
        // Predicated region
        $region37: #{tpu_custom_call.1} parent=31 // pred_check
          %p286 = pneg %p88
        $region38: #{tpu_custom_call.1} parent=31 // pred_check_branch
          %288 = sbr.rel (%p286) target = $region40
        $region39: #{tpu_custom_call.1} parent=31 // pred_region
          %s289 = sand.u32 %s22, 1
          %s290 = scalar_lea.sflag [#allocation6], %s289
          %s291 = sand.u32 %s78, 1
          %s292 = smul.addr %s291, 128
          %s293 = scalar_lea.vmem [#allocation5], %s292
          %s294 = sadd.s32 %s30, 1
          %s295 = smul.u32 %s294, 2
          %s296 = smul.u32 16, %s295
          %s298 = ssub.s32 2048, 2048
          %299 = vsyncadd %s290, %s298
          %s300 = smul.addr %s29, 80
          %s301 = sadd.s32 %s296, %s300
          %s302 = smul.addr %s301, 128
          %s303 = scalar_lea.hbm %s1, %s302
          %s304 = sshll.u32 %s293, 4
          %s305 = int_to_ptr.vmem [resolvable:$true] %s304
          %310 = dma.hbm_to_vmem [thread:$0]  %s303, 2048, %s305, %s290, 128, 128, 8
        $region40: #{tpu_custom_call.1} parent=31 // pred_fallthru
          _
      $region32: #{tpu_custom_call.1} parent=5 // pred_fallthru
        _
      %p311 = scmp.le.s32.totalorder 1, %s22
      %p312 = scmp.lt.s32.totalorder %s22, 5
      %p313 = pnand %p311, %p312
      %p314 = pneg %p313
      // Predicated region
      $region41: #{tpu_custom_call.1} parent=5 // pred_check
        _
      $region42: #{tpu_custom_call.1} parent=5 // pred_check_branch
        %316 = sbr.rel (%p313) target = $region44
      $region43: #{tpu_custom_call.1} parent=5 // pred_region
        %s317 = ssub.s32 %s22, 1
        %s318 = sand.u32 %s49, 1
        %s319 = scalar_lea.sflag [#allocation3], %s318
        %s320 = sand.u32 %s49, 1
        %s321 = smul.addr %s320, 256
        %s322 = scalar_lea.vmem [#allocation2], %s321
        // Predicated region
        $region45: #{tpu_custom_call.1} parent=43 // pred_check
          %p323 = pneg %p62
        $region46: #{tpu_custom_call.1} parent=43 // pred_check_branch
          %325 = sbr.rel (%p323) target = $region48
        $region47: #{tpu_custom_call.1} parent=43 // pred_region
          %326 = dma.done %s319, 4096
        $region48: #{tpu_custom_call.1} parent=43 // pred_fallthru
          _
        %s327 = sand.u32 %s27, 1
        %s328 = scalar_lea.sflag [#allocation6], %s327
        %s329 = sand.u32 %s81, 1
        %s330 = smul.addr %s329, 128
        %s331 = scalar_lea.vmem [#allocation5], %s330
        // Predicated region
        $region49: #{tpu_custom_call.1} parent=43 // pred_check
          %p332 = pneg %p94
        $region50: #{tpu_custom_call.1} parent=43 // pred_check_branch
          %334 = sbr.rel (%p332) target = $region52
        $region51: #{tpu_custom_call.1} parent=43 // pred_region
          %335 = dma.done %s328, 2048
        $region52: #{tpu_custom_call.1} parent=43 // pred_fallthru
          _
        // Predicated region
        $region53: #{tpu_custom_call.1} parent=43 // pred_check
          %p336 = pneg %p115
        $region54: #{tpu_custom_call.1} parent=43 // pred_check_branch
          %338 = sbr.rel (%p336) target = $region56
        $region55: #{tpu_custom_call.1} parent=43 // pred_region
          %339 = dma.done [#allocation6], 9216
        $region56: #{tpu_custom_call.1} parent=43 // pred_fallthru
          _
        // Predicated region
        $region57: #{tpu_custom_call.1} parent=43 // pred_check
          %p340 = pneg %p157
        $region58: #{tpu_custom_call.1} parent=43 // pred_check_branch
          %342 = sbr.rel (%p340) target = $region60
        $region59: #{tpu_custom_call.1} parent=43 // pred_region
          %343 = dma.done [#allocation9], 9216
        $region60: #{tpu_custom_call.1} parent=43 // pred_fallthru
          _
        %s344 = sand.u32 %s49, 1
        %s345 = scalar_lea.sflag [#allocation3], %s344
        %s346 = sand.u32 %s49, 1
        %s347 = smul.addr %s346, 256
        %s348 = scalar_lea.vmem [#allocation2], %s347
        %p349 = pneg %p62
        %p350 = pneg %p59
        %s351 = sand.u32 %s27, 1
        %s352 = scalar_lea.sflag [#allocation6], %s351
        %s353 = sand.u32 %s81, 1
        %s354 = smul.addr %s353, 128
        %s355 = scalar_lea.vmem [#allocation5], %s354
        %p356 = pneg %p94
        %p357 = pneg %p91
        %p358 = pneg %p115
        %p359 = pneg %p112
        %p360 = pneg %p136
        %p361 = pneg %p133
        %p362 = pneg %p157
        %p363 = pneg %p154
        %p364 = pneg %p178
        %p365 = pneg %p175
        %p366 = pneg %p206
        %p367 = pneg %p203
        %s368 = sand.u32 %s193, 1
        %s369 = scalar_lea.sflag [#allocation4], %s368
        %s370 = sand.u32 %s193, 1
        %s371 = smul.addr %s370, 256
        %s372 = scalar_lea.vmem [#allocation10], %s371
        %s373 = smul.u32 32, %s32
        %s374 = ssub.s32 80, %s373
        %p375 = scmp.lt.s32.totalorder %s374, 32
        %s376 = scalar_select %p375, %s374, 32
        %s377 = smul.u32 128, %s376
        %s378 = sadd.s32 %s32, 1
        %s379 = smul.u32 %s378, 2
        %s380 = smul.u32 16, %s379
        %s381 = smul.u32 32, %s32
        %v383 = vld [vmem:[%s322] sm:$0xff]
        %v384 = vld [vmem:[%s322 + $0x8] sm:$0xff]
        %v385 = vld [vmem:[%s322 + $0x10] sm:$0xff]
        %v386 = vld [vmem:[%s322 + $0x18] sm:$0xff]
        %v387 = vld [vmem:[%s322 + $0x20] sm:$0xff]
        %v388 = vld [vmem:[%s322 + $0x28] sm:$0xff]
        %v389 = vld [vmem:[%s322 + $0x30] sm:$0xff]
        %v390 = vld [vmem:[%s322 + $0x38] sm:$0xff]
        %v391 = vld [vmem:[%s322 + $0x40] sm:$0xff]
        %v392 = vld [vmem:[%s322 + $0x48] sm:$0xff]
        %v393 = vld [vmem:[%s322 + $0x50] sm:$0xff]
        %v394 = vld [vmem:[%s322 + $0x58] sm:$0xff]
        %v395 = vld [vmem:[%s322 + $0x60] sm:$0xff]
        %v396 = vld [vmem:[%s322 + $0x68] sm:$0xff]
        %v397 = vld [vmem:[%s322 + $0x70] sm:$0xff]
        %v398 = vld [vmem:[%s322 + $0x78] sm:$0xff]
        %v399 = vld [vmem:[%s322 + $0x80] sm:$0xff]
        %v400 = vld [vmem:[%s322 + $0x88] sm:$0xff]
        %v401 = vld [vmem:[%s322 + $0x90] sm:$0xff]
        %v402 = vld [vmem:[%s322 + $0x98] sm:$0xff]
        %v403 = vld [vmem:[%s322 + $0xa0] sm:$0xff]
        %v404 = vld [vmem:[%s322 + $0xa8] sm:$0xff]
        %v405 = vld [vmem:[%s322 + $0xb0] sm:$0xff]
        %v406 = vld [vmem:[%s322 + $0xb8] sm:$0xff]
        %v407 = vld [vmem:[%s322 + $0xc0] sm:$0xff]
        %v408 = vld [vmem:[%s322 + $0xc8] sm:$0xff]
        %v409 = vld [vmem:[%s322 + $0xd0] sm:$0xff]
        %v410 = vld [vmem:[%s322 + $0xd8] sm:$0xff]
        %v411 = vld [vmem:[%s322 + $0xe0] sm:$0xff]
        %v412 = vld [vmem:[%s322 + $0xe8] sm:$0xff]
        %v413 = vld [vmem:[%s322 + $0xf0] sm:$0xff]
        %v414 = vld [vmem:[%s322 + $0xf8] sm:$0xff]
        %v415 = vpack.c.bf16 %v384, %v383
        %v416 = vpack.c.bf16 %v386, %v385
        %v417 = vpack.c.bf16 %v388, %v387
        %v418 = vpack.c.bf16 %v390, %v389
        %v419 = vpack.c.bf16 %v392, %v391
        %v420 = vpack.c.bf16 %v394, %v393
        %v421 = vpack.c.bf16 %v396, %v395
        %v422 = vpack.c.bf16 %v398, %v397
        %v423 = vpack.c.bf16 %v400, %v399
        %v424 = vpack.c.bf16 %v402, %v401
        %v425 = vpack.c.bf16 %v404, %v403
        %v426 = vpack.c.bf16 %v406, %v405
        %v427 = vpack.c.bf16 %v408, %v407
        %v428 = vpack.c.bf16 %v410, %v409
        %v429 = vpack.c.bf16 %v412, %v411
        %v430 = vpack.c.bf16 %v414, %v413
        %v431 = vld [vmem:[%s331] sm:$0xff]
        %v432 = vld [vmem:[%s331 + $0x8] sm:$0xff]
        %v433 = vld [vmem:[%s331 + $0x10] sm:$0xff]
        %v434 = vld [vmem:[%s331 + $0x18] sm:$0xff]
        %v435 = vld [vmem:[%s331 + $0x20] sm:$0xff]
        %v436 = vld [vmem:[%s331 + $0x28] sm:$0xff]
        %v437 = vld [vmem:[%s331 + $0x30] sm:$0xff]
        %v438 = vld [vmem:[%s331 + $0x38] sm:$0xff]
        %v439 = vld [vmem:[%s331 + $0x40] sm:$0xff]
        %v440 = vld [vmem:[%s331 + $0x48] sm:$0xff]
        %v441 = vld [vmem:[%s331 + $0x50] sm:$0xff]
        %v442 = vld [vmem:[%s331 + $0x58] sm:$0xff]
        %v443 = vld [vmem:[%s331 + $0x60] sm:$0xff]
        %v444 = vld [vmem:[%s331 + $0x68] sm:$0xff]
        %v445 = vld [vmem:[%s331 + $0x70] sm:$0xff]
        %v446 = vld [vmem:[%s331 + $0x78] sm:$0xff]
        %v447 = vpack.c.bf16 %v432, %v431
        %v448 = vpack.c.bf16 %v434, %v433
        %v449 = vpack.c.bf16 %v436, %v435
        %v450 = vpack.c.bf16 %v438, %v437
        %v451 = vpack.c.bf16 %v440, %v439
        %v452 = vpack.c.bf16 %v442, %v441
        %v453 = vpack.c.bf16 %v444, %v443
        %v454 = vpack.c.bf16 %v446, %v445
        %vm455 = vsmask.f32 256
        %v457 = vshrl.u32 %v415, 16
        %v459 = vrot.slane %v457, 7
        %v460 = vshll.u32 %v415, 16
        %v462 = vor.u32 %v459, %v460
        %v464 = vshrl.u32 %v416, 16
        %v466 = vrot.slane %v464, 7
        %v467 = vshll.u32 %v416, 16
        %v469 = vor.u32 %v466, %v467
        %v470 = vsel %vm455, %v459, %v469
        %v472 = vshrl.u32 %v417, 16
        %v474 = vrot.slane %v472, 7
        %v475 = vshll.u32 %v417, 16
        %v477 = vor.u32 %v474, %v475
        %v478 = vsel %vm455, %v466, %v477
        %v480 = vshrl.u32 %v418, 16
        %v482 = vrot.slane %v480, 7
        %v483 = vshll.u32 %v418, 16
        %v485 = vor.u32 %v482, %v483
        %v486 = vsel %vm455, %v474, %v485
        %v488 = vshrl.u32 %v419, 16
        %v490 = vrot.slane %v488, 7
        %v491 = vshll.u32 %v419, 16
        %v493 = vor.u32 %v490, %v491
        %v494 = vsel %vm455, %v482, %v493
        %v496 = vshrl.u32 %v420, 16
        %v498 = vrot.slane %v496, 7
        %v499 = vshll.u32 %v420, 16
        %v501 = vor.u32 %v498, %v499
        %v502 = vsel %vm455, %v490, %v501
        %v504 = vshrl.u32 %v421, 16
        %v506 = vrot.slane %v504, 7
        %v507 = vshll.u32 %v421, 16
        %v509 = vor.u32 %v506, %v507
        %v510 = vsel %vm455, %v498, %v509
        %v512 = vshrl.u32 %v422, 16
        %v514 = vrot.slane %v512, 7
        %v515 = vshll.u32 %v422, 16
        %v517 = vor.u32 %v514, %v515
        %v518 = vsel %vm455, %v506, %v517
        %v520 = vshrl.u32 %v423, 16
        %v522 = vrot.slane %v520, 7
        %v523 = vshll.u32 %v423, 16
        %v525 = vor.u32 %v522, %v523
        %v526 = vsel %vm455, %v514, %v525
        %v528 = vshrl.u32 %v424, 16
        %v530 = vrot.slane %v528, 7
        %v531 = vshll.u32 %v424, 16
        %v533 = vor.u32 %v530, %v531
        %v534 = vsel %vm455, %v522, %v533
        %v536 = vshrl.u32 %v425, 16
        %v538 = vrot.slane %v536, 7
        %v539 = vshll.u32 %v425, 16
        %v541 = vor.u32 %v538, %v539
        %v542 = vsel %vm455, %v530, %v541
        %v544 = vshrl.u32 %v426, 16
        %v546 = vrot.slane %v544, 7
        %v547 = vshll.u32 %v426, 16
        %v549 = vor.u32 %v546, %v547
        %v550 = vsel %vm455, %v538, %v549
        %v552 = vshrl.u32 %v427, 16
        %v554 = vrot.slane %v552, 7
        %v555 = vshll.u32 %v427, 16
        %v557 = vor.u32 %v554, %v555
        %v558 = vsel %vm455, %v546, %v557
        %v560 = vshrl.u32 %v428, 16
        %v562 = vrot.slane %v560, 7
        %v563 = vshll.u32 %v428, 16
        %v565 = vor.u32 %v562, %v563
        %v566 = vsel %vm455, %v554, %v565
        %v568 = vshrl.u32 %v429, 16
        %v570 = vrot.slane %v568, 7
        %v571 = vshll.u32 %v429, 16
        %v573 = vor.u32 %v570, %v571
        %v574 = vsel %vm455, %v562, %v573
        %v576 = vshrl.u32 %v430, 16
        %v578 = vrot.slane %v576, 7
        %v579 = vshll.u32 %v430, 16
        %v581 = vor.u32 %v578, %v579
        %v582 = vsel %vm455, %v570, %v581
        %v584 = vshrl.u32 %v447, 16
        %v586 = vrot.slane %v584, 7
        %v587 = vshll.u32 %v447, 16
        %v589 = vor.u32 %v586, %v587
        %v590 = vsel %vm455, %v578, %v589
        %v592 = vshrl.u32 %v448, 16
        %v594 = vrot.slane %v592, 7
        %v595 = vshll.u32 %v448, 16
        %v597 = vor.u32 %v594, %v595
        %v598 = vsel %vm455, %v586, %v597
        %v600 = vshrl.u32 %v449, 16
        %v602 = vrot.slane %v600, 7
        %v603 = vshll.u32 %v449, 16
        %v605 = vor.u32 %v602, %v603
        %v606 = vsel %vm455, %v594, %v605
        %v608 = vshrl.u32 %v450, 16
        %v610 = vrot.slane %v608, 7
        %v611 = vshll.u32 %v450, 16
        %v613 = vor.u32 %v610, %v611
        %v614 = vsel %vm455, %v602, %v613
        %v616 = vshrl.u32 %v451, 16
        %v618 = vrot.slane %v616, 7
        %v619 = vshll.u32 %v451, 16
        %v621 = vor.u32 %v618, %v619
        %v622 = vsel %vm455, %v610, %v621
        %v624 = vshrl.u32 %v452, 16
        %v626 = vrot.slane %v624, 7
        %v627 = vshll.u32 %v452, 16
        %v629 = vor.u32 %v626, %v627
        %v630 = vsel %vm455, %v618, %v629
        %v632 = vshrl.u32 %v453, 16
        %v634 = vrot.slane %v632, 7
        %v635 = vshll.u32 %v453, 16
        %v637 = vor.u32 %v634, %v635
        %v638 = vsel %vm455, %v626, %v637
        %v640 = vshrl.u32 %v454, 16
        %v642 = vrot.slane %v640, 7
        %v643 = vshll.u32 %v454, 16
        %v645 = vor.u32 %v642, %v643
        %v646 = vsel %vm455, %v634, %v645
        %vm671 = vcmask 1040384
        %vm672 = vmand %vm671, %vm455
        %v673 = vsel %vm672, 0, %v462
        %vm674 = vsmask.f32 7424
        %v675 = vrot.slane %v460, 1
        %v676 = vor.u32 %v457, %v675
        %v677 = vrot.slane %v467, 1
        %v678 = vsel %vm674, %v676, %v677
        %v679 = vor.u32 %v464, %v677
        %v680 = vrot.slane %v475, 1
        %v681 = vsel %vm674, %v679, %v680
        %v682 = vor.u32 %v472, %v680
        %v683 = vrot.slane %v483, 1
        %v684 = vsel %vm674, %v682, %v683
        %v685 = vor.u32 %v480, %v683
        %v686 = vrot.slane %v491, 1
        %v687 = vsel %vm674, %v685, %v686
        %v688 = vor.u32 %v488, %v686
        %v689 = vrot.slane %v499, 1
        %v690 = vsel %vm674, %v688, %v689
        %v691 = vor.u32 %v496, %v689
        %v692 = vrot.slane %v507, 1
        %v693 = vsel %vm674, %v691, %v692
        %v694 = vor.u32 %v504, %v692
        %v695 = vrot.slane %v515, 1
        %v696 = vsel %vm674, %v694, %v695
        %v697 = vor.u32 %v512, %v695
        %v698 = vrot.slane %v523, 1
        %v699 = vsel %vm674, %v697, %v698
        %v700 = vor.u32 %v520, %v698
        %v701 = vrot.slane %v531, 1
        %v702 = vsel %vm674, %v700, %v701
        %v703 = vor.u32 %v528, %v701
        %v704 = vrot.slane %v539, 1
        %v705 = vsel %vm674, %v703, %v704
        %v706 = vor.u32 %v536, %v704
        %v707 = vrot.slane %v547, 1
        %v708 = vsel %vm674, %v706, %v707
        %v709 = vor.u32 %v544, %v707
        %v710 = vrot.slane %v555, 1
        %v711 = vsel %vm674, %v709, %v710
        %v712 = vor.u32 %v552, %v710
        %v713 = vrot.slane %v563, 1
        %v714 = vsel %vm674, %v712, %v713
        %v715 = vor.u32 %v560, %v713
        %v716 = vrot.slane %v571, 1
        %v717 = vsel %vm674, %v715, %v716
        %v718 = vor.u32 %v568, %v716
        %v719 = vrot.slane %v579, 1
        %v720 = vsel %vm674, %v718, %v719
        %v721 = vor.u32 %v576, %v719
        %v722 = vrot.slane %v587, 1
        %v723 = vsel %vm674, %v721, %v722
        %v724 = vor.u32 %v584, %v722
        %v725 = vrot.slane %v595, 1
        %v726 = vsel %vm674, %v724, %v725
        %v727 = vor.u32 %v592, %v725
        %v728 = vrot.slane %v603, 1
        %v729 = vsel %vm674, %v727, %v728
        %v730 = vor.u32 %v600, %v728
        %v731 = vrot.slane %v611, 1
        %v732 = vsel %vm674, %v730, %v731
        %v733 = vor.u32 %v608, %v731
        %v734 = vrot.slane %v619, 1
        %v735 = vsel %vm674, %v733, %v734
        %v736 = vor.u32 %v616, %v734
        %v737 = vrot.slane %v627, 1
        %v738 = vsel %vm674, %v736, %v737
        %v739 = vor.u32 %v624, %v737
        %v740 = vrot.slane %v635, 1
        %v741 = vsel %vm674, %v739, %v740
        %v742 = vor.u32 %v632, %v740
        %v743 = vrot.slane %v643, 1
        %v744 = vsel %vm674, %v742, %v743
        %v745 = vor.u32 %v640, %v743
        %vm770 = vcmask 1047552
        %vm771 = vmand %vm770, %vm674
        %v772 = vsel %vm771, %v745, 0
        %v773 = vld [vmem:[#allocation7] sm:$0xf]
        %v774 = vld [vmem:[#allocation7 + $0x4] sm:$0xf]
        %v775 = vld [vmem:[#allocation7 + $0x8] sm:$0xf]
        %v776 = vld [vmem:[#allocation7 + $0xc] sm:$0xf]
        %v777 = vld [vmem:[#allocation7 + $0x10] sm:$0xf]
        %v778 = vld [vmem:[#allocation7 + $0x14] sm:$0xf]
        %v779 = vld [vmem:[#allocation7 + $0x18] sm:$0xf]
        %v780 = vld [vmem:[#allocation7 + $0x1c] sm:$0xf]
        %v781 = vld [vmem:[#allocation7 + $0x20] sm:$0xf]
        %v782 = vld [vmem:[#allocation7 + $0x24] sm:$0xf]
        %v783 = vld [vmem:[#allocation7 + $0x28] sm:$0xf]
        %v784 = vld [vmem:[#allocation7 + $0x2c] sm:$0xf]
        %v785 = vld [vmem:[#allocation7 + $0x30] sm:$0xf]
        %v786 = vld [vmem:[#allocation7 + $0x34] sm:$0xf]
        %v787 = vld [vmem:[#allocation7 + $0x38] sm:$0xf]
        %v788 = vld [vmem:[#allocation7 + $0x3c] sm:$0xf]
        %v789 = vld [vmem:[#allocation7 + $0x40] sm:$0xf]
        %v790 = vld [vmem:[#allocation7 + $0x44] sm:$0xf]
        %v791 = vld [vmem:[#allocation7 + $0x48] sm:$0xf]
        %v792 = vld [vmem:[#allocation7 + $0x4c] sm:$0xf]
        %v793 = vld [vmem:[#allocation7 + $0x50] sm:$0xf]
        %v794 = vld [vmem:[#allocation7 + $0x54] sm:$0xf]
        %v795 = vld [vmem:[#allocation7 + $0x58] sm:$0xf]
        %v796 = vld [vmem:[#allocation7 + $0x5c] sm:$0xf]
        %v797 = vld [vmem:[#allocation7 + $0x60] sm:$0xf]
        %v798 = vld [vmem:[#allocation7 + $0x64] sm:$0xf]
        %v799 = vld [vmem:[#allocation7 + $0x68] sm:$0xf]
        %v800 = vld [vmem:[#allocation7 + $0x6c] sm:$0xf]
        %v801 = vld [vmem:[#allocation7 + $0x70] sm:$0xf]
        %v802 = vld [vmem:[#allocation7 + $0x74] sm:$0xf]
        %v803 = vld [vmem:[#allocation7 + $0x78] sm:$0xf]
        %v804 = vld [vmem:[#allocation7 + $0x7c] sm:$0xf]
        %v805 = vld [vmem:[#allocation7 + $0x80] sm:$0xf]
        %v806 = vld [vmem:[#allocation7 + $0x84] sm:$0xf]
        %v807 = vld [vmem:[#allocation7 + $0x88] sm:$0xf]
        %v808 = vld [vmem:[#allocation7 + $0x8c] sm:$0xf]
        %v809 = vld [vmem:[#allocation7 + $0x90] sm:$0xf]
        %v810 = vld [vmem:[#allocation7 + $0x94] sm:$0xf]
        %v811 = vld [vmem:[#allocation7 + $0x98] sm:$0xf]
        %v812 = vld [vmem:[#allocation7 + $0x9c] sm:$0xf]
        %v813 = vld [vmem:[#allocation7 + $0xa0] sm:$0xf]
        %v814 = vld [vmem:[#allocation7 + $0xa4] sm:$0xf]
        %v815 = vld [vmem:[#allocation7 + $0xa8] sm:$0xf]
        %v816 = vld [vmem:[#allocation7 + $0xac] sm:$0xf]
        %v817 = vld [vmem:[#allocation7 + $0xb0] sm:$0xf]
        %v818 = vld [vmem:[#allocation7 + $0xb4] sm:$0xf]
        %v819 = vld [vmem:[#allocation7 + $0xb8] sm:$0xf]
        %v820 = vld [vmem:[#allocation7 + $0xbc] sm:$0xf]
        %s821 = scalar_lea.vmem [#allocation7], 192
        %v822 = vld [vmem:[%s821] sm:$0xf]
        %v823 = vld [vmem:[%s821 + $0x4] sm:$0xf]
        %v824 = vld [vmem:[%s821 + $0x8] sm:$0xf]
        %v825 = vld [vmem:[%s821 + $0xc] sm:$0xf]
        %v826 = vld [vmem:[%s821 + $0x10] sm:$0xf]
        %v827 = vld [vmem:[%s821 + $0x14] sm:$0xf]
        %v828 = vld [vmem:[%s821 + $0x18] sm:$0xf]
        %v829 = vld [vmem:[%s821 + $0x1c] sm:$0xf]
        %v830 = vld [vmem:[%s821 + $0x20] sm:$0xf]
        %v831 = vld [vmem:[%s821 + $0x24] sm:$0xf]
        %v832 = vld [vmem:[%s821 + $0x28] sm:$0xf]
        %v833 = vld [vmem:[%s821 + $0x2c] sm:$0xf]
        %v834 = vld [vmem:[%s821 + $0x30] sm:$0xf]
        %v835 = vld [vmem:[%s821 + $0x34] sm:$0xf]
        %v836 = vld [vmem:[%s821 + $0x38] sm:$0xf]
        %v837 = vld [vmem:[%s821 + $0x3c] sm:$0xf]
        %v838 = vld [vmem:[%s821 + $0x40] sm:$0xf]
        %v839 = vld [vmem:[%s821 + $0x44] sm:$0xf]
        %v840 = vld [vmem:[%s821 + $0x48] sm:$0xf]
        %v841 = vld [vmem:[%s821 + $0x4c] sm:$0xf]
        %v842 = vld [vmem:[%s821 + $0x50] sm:$0xf]
        %v843 = vld [vmem:[%s821 + $0x54] sm:$0xf]
        %v844 = vld [vmem:[%s821 + $0x58] sm:$0xf]
        %v845 = vld [vmem:[%s821 + $0x5c] sm:$0xf]
        %v846 = vld [vmem:[%s821 + $0x60] sm:$0xf]
        %v847 = vld [vmem:[%s821 + $0x64] sm:$0xf]
        %v848 = vld [vmem:[%s821 + $0x68] sm:$0xf]
        %v849 = vld [vmem:[%s821 + $0x6c] sm:$0xf]
        %v850 = vld [vmem:[%s821 + $0x70] sm:$0xf]
        %v851 = vld [vmem:[%s821 + $0x74] sm:$0xf]
        %v852 = vld [vmem:[%s821 + $0x78] sm:$0xf]
        %v853 = vld [vmem:[%s821 + $0x7c] sm:$0xf]
        %v854 = vld [vmem:[%s821 + $0x80] sm:$0xf]
        %v855 = vld [vmem:[%s821 + $0x84] sm:$0xf]
        %v856 = vld [vmem:[%s821 + $0x88] sm:$0xf]
        %v857 = vld [vmem:[%s821 + $0x8c] sm:$0xf]
        %v858 = vld [vmem:[%s821 + $0x90] sm:$0xf]
        %v859 = vld [vmem:[%s821 + $0x94] sm:$0xf]
        %v860 = vld [vmem:[%s821 + $0x98] sm:$0xf]
        %v861 = vld [vmem:[%s821 + $0x9c] sm:$0xf]
        %v862 = vld [vmem:[%s821 + $0xa0] sm:$0xf]
        %v863 = vld [vmem:[%s821 + $0xa4] sm:$0xf]
        %v864 = vld [vmem:[%s821 + $0xa8] sm:$0xf]
        %v865 = vld [vmem:[%s821 + $0xac] sm:$0xf]
        %v866 = vld [vmem:[%s821 + $0xb0] sm:$0xf]
        %v867 = vld [vmem:[%s821 + $0xb4] sm:$0xf]
        %v868 = vld [vmem:[%s821 + $0xb8] sm:$0xf]
        %v869 = vld [vmem:[%s821 + $0xbc] sm:$0xf]
        %v918 = vunpack.c.l.b16 %v822
        %v919 = vunpack.c.l.b16 %v823
        %v920 = vunpack.c.l.b16 %v824
        %v921 = vunpack.c.l.b16 %v825
        %v922 = vunpack.c.l.b16 %v826
        %v923 = vunpack.c.l.b16 %v827
        %v924 = vunpack.c.l.b16 %v828
        %v925 = vunpack.c.l.b16 %v829
        %v926 = vunpack.c.l.b16 %v830
        %v927 = vunpack.c.l.b16 %v831
        %v928 = vunpack.c.l.b16 %v832
        %v929 = vunpack.c.l.b16 %v833
        %v930 = vunpack.c.l.b16 %v834
        %v931 = vunpack.c.l.b16 %v835
        %v932 = vunpack.c.l.b16 %v836
        %v933 = vunpack.c.l.b16 %v837
        %v934 = vunpack.c.l.b16 %v838
        %v935 = vunpack.c.l.b16 %v839
        %v936 = vunpack.c.l.b16 %v840
        %v937 = vunpack.c.l.b16 %v841
        %v938 = vunpack.c.l.b16 %v842
        %v939 = vunpack.c.l.b16 %v843
        %v940 = vunpack.c.l.b16 %v844
        %v941 = vunpack.c.l.b16 %v845
        %v942 = vunpack.c.l.b16 %v846
        %v943 = vunpack.c.l.b16 %v847
        %v944 = vunpack.c.l.b16 %v848
        %v945 = vunpack.c.l.b16 %v849
        %v946 = vunpack.c.l.b16 %v850
        %v947 = vunpack.c.l.b16 %v851
        %v948 = vunpack.c.l.b16 %v852
        %v949 = vunpack.c.l.b16 %v853
        %v950 = vunpack.c.l.b16 %v854
        %v951 = vunpack.c.l.b16 %v855
        %v952 = vunpack.c.l.b16 %v856
        %v953 = vunpack.c.l.b16 %v857
        %v954 = vunpack.c.l.b16 %v858
        %v955 = vunpack.c.l.b16 %v859
        %v956 = vunpack.c.l.b16 %v860
        %v957 = vunpack.c.l.b16 %v861
        %v958 = vunpack.c.l.b16 %v862
        %v959 = vunpack.c.l.b16 %v863
        %v960 = vunpack.c.l.b16 %v864
        %v961 = vunpack.c.l.b16 %v865
        %v962 = vunpack.c.l.b16 %v866
        %v963 = vunpack.c.l.b16 %v867
        %v964 = vunpack.c.l.b16 %v868
        %v965 = vunpack.c.l.b16 %v869
        %v966 = vpack.c.b16 %v919, %v918
        %v967 = vpack.c.b16 %v921, %v920
        %v968 = vpack.c.b16 %v923, %v922
        %v969 = vpack.c.b16 %v925, %v924
        %v970 = vpack.c.b16 %v927, %v926
        %v971 = vpack.c.b16 %v929, %v928
        %v972 = vpack.c.b16 %v931, %v930
        %v973 = vpack.c.b16 %v933, %v932
        %v974 = vpack.c.b16 %v935, %v934
        %v975 = vpack.c.b16 %v937, %v936
        %v976 = vpack.c.b16 %v939, %v938
        %v977 = vpack.c.b16 %v941, %v940
        %v978 = vpack.c.b16 %v943, %v942
        %v979 = vpack.c.b16 %v945, %v944
        %v980 = vpack.c.b16 %v947, %v946
        %v981 = vpack.c.b16 %v949, %v948
        %v982 = vpack.c.b16 %v951, %v950
        %v983 = vpack.c.b16 %v953, %v952
        %v984 = vpack.c.b16 %v955, %v954
        %v985 = vpack.c.b16 %v957, %v956
        %v986 = vpack.c.b16 %v959, %v958
        %v987 = vpack.c.b16 %v961, %v960
        %v988 = vpack.c.b16 %v963, %v962
        %v989 = vpack.c.b16 %v965, %v964
        %1014 = vmatprep.subr.bf16.mxu0 0
        %1015 = vmatpush1.bf16.msra.mxu0 %v966
        %1016 = vmatprep.subr.bf16.mxu0 0
        %1017 = vmatpush1.bf16.msra.mxu0 %v967
        %1018 = vmatprep.subr.bf16.mxu0 0
        %1019 = vmatpush1.bf16.msra.mxu0 %v968
        %1020 = vmatprep.subr.bf16.mxu0 0
        %1021 = vmatpush1.bf16.msra.mxu0 %v969
        %1022 = vmatprep.subr.bf16.mxu0 0
        %1023 = vmatpush1.bf16.msra.mxu0 %v970
        %1024 = vmatprep.subr.bf16.mxu0 0
        %1025 = vmatpush1.bf16.msra.mxu0 %v971
        %1026 = vmatprep.subr.bf16.mxu0 0
        %1027 = vmatpush1.bf16.msra.mxu0 %v972
        %1028 = vmatprep.subr.bf16.mxu0 0
        %1029 = vmatpush1.bf16.msra.mxu0 %v973
        %1030 = vmatprep.subr.bf16.mxu0 0
        %1031 = vmatpush1.bf16.msra.mxu0 %v974
        %1032 = vmatprep.subr.bf16.mxu0 0
        %1033 = vmatpush1.bf16.msra.mxu0 %v975
        %1034 = vmatprep.subr.bf16.mxu0 0
        %1035 = vmatpush1.bf16.msra.mxu0 %v976
        %1036 = vmatprep.subr.bf16.mxu0 0
        %1037 = vmatpush1.bf16.msra.mxu0 %v977
        %1038 = vmatprep.subr.bf16.mxu0 0
        %1039 = vmatpush1.bf16.msra.mxu0 %v978
        %1040 = vmatprep.subr.bf16.mxu0 0
        %1041 = vmatpush1.bf16.msra.mxu0 %v979
        %1042 = vmatprep.subr.bf16.mxu0 0
        %1043 = vmatpush1.bf16.msra.mxu0 %v980
        %1044 = vmatprep.subr.bf16.mxu0 0
        %1045 = vmatpush1.bf16.msra.mxu0 %v981
        %1046 = vmatprep.mubr.bf16.mxu0 %v417
        %1047 = vmatmul.mubr.bf16.gmra.mrb[0].mxu0 %v478
        %v1048 = vpop.f32.mrb[0].mxu0
        %v1049 = vadd.f32 0.0, %v1048
        %v1050 = vpop.f32.mrb[0].mxu0
        %v1051 = vpop.f32.mrb[0].mxu0
        %v1052 = vadd.f32 0.0, %v1051
        %v1053 = vpop.f32.mrb[0].mxu0
        %1054 = vmatprep.mubr.bf16.mxu0 %v418
        %1055 = vmatmul.mubr.bf16.gmra.mrb[0].mxu0 %v486
        %v1056 = vpop.f32.mrb[0].mxu0
        %v1057 = vadd.f32 0.0, %v1056
        %v1058 = vpop.f32.mrb[0].mxu0
        %v1059 = vpop.f32.mrb[0].mxu0
        %v1060 = vadd.f32 0.0, %v1059
        %v1061 = vpop.f32.mrb[0].mxu0
        %1062 = vmatprep.mubr.bf16.mxu0 %v419
        %1063 = vmatmul.mubr.bf16.gmra.mrb[0].mxu0 %v494
        %v1064 = vpop.f32.mrb[0].mxu0
        %v1065 = vadd.f32 0.0, %v1064
        %v1066 = vpop.f32.mrb[0].mxu0
        %v1067 = vpop.f32.mrb[0].mxu0
        %v1068 = vadd.f32 0.0, %v1067
        %v1069 = vpop.f32.mrb[0].mxu0
        %1070 = vmatprep.mubr.bf16.mxu0 %v420
        %1071 = vmatmul.mubr.bf16.gmra.mrb[0].mxu0 %v502
        %v1072 = vpop.f32.mrb[0].mxu0
        %v1073 = vadd.f32 0.0, %v1072
        %v1074 = vpop.f32.mrb[0].mxu0
        %v1075 = vpop.f32.mrb[0].mxu0
        %v1076 = vadd.f32 0.0, %v1075
        %v1077 = vpop.f32.mrb[0].mxu0
        %1078 = vmatprep.mubr.bf16.mxu0 %v421
        %1079 = vmatmul.mubr.bf16.gmra.mrb[0].mxu0 %v510
        %v1080 = vpop.f32.mrb[0].mxu0
        %v1081 = vadd.f32 0.0, %v1080
        %v1082 = vpop.f32.mrb[0].mxu0
        %v1083 = vpop.f32.mrb[0].mxu0
        %v1084 = vadd.f32 0.0, %v1083
        %v1085 = vpop.f32.mrb[0].mxu0
        %1086 = vmatprep.mubr.bf16.mxu0 %v422
        %1087 = vmatmul.mubr.bf16.gmra.mrb[0].mxu0 %v518
        %v1088 = vpop.f32.mrb[0].mxu0
        %v1089 = vadd.f32 0.0, %v1088
        %v1090 = vpop.f32.mrb[0].mxu0
        %v1091 = vpop.f32.mrb[0].mxu0
        %v1092 = vadd.f32 0.0, %v1091
        %v1093 = vpop.f32.mrb[0].mxu0
        %1094 = vmatprep.mubr.bf16.mxu0 %v423
        %1095 = vmatmul.mubr.bf16.gmra.mrb[0].mxu0 %v526
        %v1096 = vpop.f32.mrb[0].mxu0
        %v1097 = vadd.f32 0.0, %v1096
        %v1098 = vpop.f32.mrb[0].mxu0
        %v1099 = vpop.f32.mrb[0].mxu0
        %v1100 = vadd.f32 0.0, %v1099
        %v1101 = vpop.f32.mrb[0].mxu0
        %1102 = vmatprep.mubr.bf16.mxu0 %v424
        %1103 = vmatmul.mubr.bf16.gmra.mrb[0].mxu0 %v534
        %v1104 = vpop.f32.mrb[0].mxu0
        %v1105 = vadd.f32 0.0, %v1104
        %v1106 = vpop.f32.mrb[0].mxu0
        %v1107 = vpop.f32.mrb[0].mxu0
        %v1108 = vadd.f32 0.0, %v1107
        %v1109 = vpop.f32.mrb[0].mxu0
        %1110 = vmatprep.mubr.bf16.mxu0 %v425
        %1111 = vmatmul.mubr.bf16.gmra.mrb[0].mxu0 %v542
        %v1112 = vpop.f32.mrb[0].mxu0
        %v1113 = vadd.f32 0.0, %v1112
        %v1114 = vpop.f32.mrb[0].mxu0
        %v1115 = vpop.f32.mrb[0].mxu0
        %v1116 = vadd.f32 0.0, %v1115
        %v1117 = vpop.f32.mrb[0].mxu0
        %1118 = vmatprep.mubr.bf16.mxu0 %v426
        %1119 = vmatmul.mubr.bf16.gmra.mrb[0].mxu0 %v550
        %v1120 = vpop.f32.mrb[0].mxu0
        %v1121 = vadd.f32 0.0, %v1120
        %v1122 = vpop.f32.mrb[0].mxu0
        %v1123 = vpop.f32.mrb[0].mxu0
        %v1124 = vadd.f32 0.0, %v1123
        %v1125 = vpop.f32.mrb[0].mxu0
        %1126 = vmatprep.mubr.bf16.mxu0 %v427
        %1127 = vmatmul.mubr.bf16.gmra.mrb[0].mxu0 %v558
        %v1128 = vpop.f32.mrb[0].mxu0
        %v1129 = vadd.f32 0.0, %v1128
        %v1130 = vpop.f32.mrb[0].mxu0
        %v1131 = vpop.f32.mrb[0].mxu0
        %v1132 = vadd.f32 0.0, %v1131
        %v1133 = vpop.f32.mrb[0].mxu0
        %1134 = vmatprep.mubr.bf16.mxu0 %v428
        %1135 = vmatmul.mubr.bf16.gmra.mrb[0].mxu0 %v566
        %v1136 = vpop.f32.mrb[0].mxu0
        %v1137 = vadd.f32 0.0, %v1136
        %v1138 = vpop.f32.mrb[0].mxu0
        %v1139 = vpop.f32.mrb[0].mxu0
        %v1140 = vadd.f32 0.0, %v1139
        %v1141 = vpop.f32.mrb[0].mxu0
        %1142 = vmatprep.mubr.bf16.mxu0 %v429
        %1143 = vmatmul.mubr.bf16.gmra.mrb[0].mxu0 %v574
        %v1144 = vpop.f32.mrb[0].mxu0
        %v1145 = vadd.f32 0.0, %v1144
        %v1146 = vpop.f32.mrb[0].mxu0
        %v1147 = vpop.f32.mrb[0].mxu0
        %v1148 = vadd.f32 0.0, %v1147
        %v1149 = vpop.f32.mrb[0].mxu0
        %1150 = vmatprep.mubr.bf16.mxu0 %v430
        %1151 = vmatmul.mubr.bf16.gmra.mrb[0].mxu0 %v582
        %v1152 = vpop.f32.mrb[0].mxu0
        %v1153 = vadd.f32 0.0, %v1152
        %v1154 = vpop.f32.mrb[0].mxu0
        %v1155 = vpop.f32.mrb[0].mxu0
        %v1156 = vadd.f32 0.0, %v1155
        %v1157 = vpop.f32.mrb[0].mxu0
        %1158 = vmatprep.mubr.bf16.mxu0 %v447
        %1159 = vmatmul.mubr.bf16.gmra.mrb[0].mxu0 %v590
        %v1160 = vpop.f32.mrb[0].mxu0
        %v1161 = vadd.f32 0.0, %v1160
        %v1162 = vpop.f32.mrb[0].mxu0
        %v1163 = vpop.f32.mrb[0].mxu0
        %v1164 = vadd.f32 0.0, %v1163
        %v1165 = vpop.f32.mrb[0].mxu0
        %1166 = vmatprep.mubr.bf16.mxu0 %v448
        %1167 = vmatmul.mubr.bf16.gmra.mrb[0].mxu0 %v598
        %v1168 = vpop.f32.mrb[0].mxu0
        %v1169 = vadd.f32 0.0, %v1168
        %v1170 = vpop.f32.mrb[0].mxu0
        %v1171 = vpop.f32.mrb[0].mxu0
        %v1172 = vadd.f32 0.0, %v1171
        %v1173 = vpop.f32.mrb[0].mxu0
        %1174 = vmatprep.mubr.bf16.mxu0 %v449
        %1175 = vmatmul.mubr.bf16.gmra.mrb[0].mxu0 %v606
        %v1176 = vpop.f32.mrb[0].mxu0
        %v1177 = vadd.f32 0.0, %v1176
        %v1178 = vpop.f32.mrb[0].mxu0
        %v1179 = vpop.f32.mrb[0].mxu0
        %v1180 = vadd.f32 0.0, %v1179
        %v1181 = vpop.f32.mrb[0].mxu0
        %1182 = vmatprep.mubr.bf16.mxu0 %v450
        %1183 = vmatmul.mubr.bf16.gmra.mrb[0].mxu0 %v614
        %v1184 = vpop.f32.mrb[0].mxu0
        %v1185 = vadd.f32 0.0, %v1184
        %v1186 = vpop.f32.mrb[0].mxu0
        %v1187 = vpop.f32.mrb[0].mxu0
        %v1188 = vadd.f32 0.0, %v1187
        %v1189 = vpop.f32.mrb[0].mxu0
        %1190 = vmatprep.mubr.bf16.mxu0 %v451
        %1191 = vmatmul.mubr.bf16.gmra.mrb[0].mxu0 %v622
        %v1192 = vpop.f32.mrb[0].mxu0
        %v1193 = vadd.f32 0.0, %v1192
        %v1194 = vpop.f32.mrb[0].mxu0
        %v1195 = vpop.f32.mrb[0].mxu0
        %v1196 = vadd.f32 0.0, %v1195
        %v1197 = vpop.f32.mrb[0].mxu0
        %1198 = vmatprep.mubr.bf16.mxu0 %v452
        %1199 = vmatmul.mubr.bf16.gmra.mrb[0].mxu0 %v630
        %v1200 = vpop.f32.mrb[0].mxu0
        %v1201 = vadd.f32 0.0, %v1200
        %v1202 = vpop.f32.mrb[0].mxu0
        %v1203 = vpop.f32.mrb[0].mxu0
        %v1204 = vadd.f32 0.0, %v1203
        %v1205 = vpop.f32.mrb[0].mxu0
        %1206 = vdwg.mxu0
        %1207 = vmatprep.subr.bf16.mxu0 0
        %1208 = vmatpush1.bf16.msra.mxu0 %v982
        %1209 = vmatprep.subr.bf16.mxu0 0
        %1210 = vmatpush1.bf16.msra.mxu0 %v983
        %1211 = vmatprep.subr.bf16.mxu0 0
        %1212 = vmatpush1.bf16.msra.mxu0 %v984
        %1213 = vmatprep.subr.bf16.mxu0 0
        %1214 = vmatpush1.bf16.msra.mxu0 %v985
        %1215 = vmatprep.subr.bf16.mxu0 0
        %1216 = vmatpush1.bf16.msra.mxu0 %v986
        %1217 = vmatprep.subr.bf16.mxu0 0
        %1218 = vmatpush1.bf16.msra.mxu0 %v987
        %1219 = vmatprep.subr.bf16.mxu0 0
        %1220 = vmatpush1.bf16.msra.mxu0 %v988
        %1221 = vmatprep.subr.bf16.mxu0 0
        %1222 = vmatpush1.bf16.msra.mxu0 %v989
        %1223 = vmatprep.subr.bf16.mxu0 0
        %1224 = vmatpush1.bf16.msra.mxu0 0
        %1225 = vmatprep.subr.bf16.mxu0 0
        %1226 = vmatpush1.bf16.msra.mxu0 0
        %1227 = vmatprep.subr.bf16.mxu0 0
        %1228 = vmatpush1.bf16.msra.mxu0 0
        %1229 = vmatprep.subr.bf16.mxu0 0
        %1230 = vmatpush1.bf16.msra.mxu0 0
        %1231 = vmatprep.subr.bf16.mxu0 0
        %1232 = vmatpush1.bf16.msra.mxu0 0
        %1233 = vmatprep.subr.bf16.mxu0 0
        %1234 = vmatpush1.bf16.msra.mxu0 0
        %1235 = vmatprep.subr.bf16.mxu0 0
        %1236 = vmatpush1.bf16.msra.mxu0 0
        %1237 = vmatprep.subr.bf16.mxu0 0
        %1238 = vmatpush1.bf16.msra.mxu0 0
        %1239 = vmatprep.mubr.bf16.mxu0 0
        %1240 = vmatmul.mubr.bf16.gmra.mrb[0].mxu0 %v684
        %v1241 = vpop.f32.mrb[0].mxu0
        %v1242 = vadd.f32 %v1049, %v1241
        %v1243 = vpop.f32.mrb[0].mxu0
        %v1244 = vpop.f32.mrb[0].mxu0
        %v1245 = vadd.f32 %v1052, %v1244
        %v1246 = vpop.f32.mrb[0].mxu0
        %1247 = vmatprep.mubr.bf16.mxu0 0
        %1248 = vmatmul.mubr.bf16.gmra.mrb[0].mxu0 %v687
        %v1249 = vpop.f32.mrb[0].mxu0
        %v1250 = vadd.f32 %v1057, %v1249
        %v1251 = vpop.f32.mrb[0].mxu0
        %v1252 = vpop.f32.mrb[0].mxu0
        %v1253 = vadd.f32 %v1060, %v1252
        %v1254 = vpop.f32.mrb[0].mxu0
        %1255 = vmatprep.mubr.bf16.mxu0 0
        %1256 = vmatmul.mubr.bf16.gmra.mrb[0].mxu0 %v690
        %v1257 = vpop.f32.mrb[0].mxu0
        %v1258 = vadd.f32 %v1065, %v1257
        %v1259 = vpop.f32.mrb[0].mxu0
        %v1260 = vpop.f32.mrb[0].mxu0
        %v1261 = vadd.f32 %v1068, %v1260
        %v1262 = vpop.f32.mrb[0].mxu0
        %1263 = vmatprep.mubr.bf16.mxu0 0
        %1264 = vmatmul.mubr.bf16.gmra.mrb[0].mxu0 %v693
        %v1265 = vpop.f32.mrb[0].mxu0
        %v1266 = vadd.f32 %v1073, %v1265
        %v1267 = vpop.f32.mrb[0].mxu0
        %v1268 = vpop.f32.mrb[0].mxu0
        %v1269 = vadd.f32 %v1076, %v1268
        %v1270 = vpop.f32.mrb[0].mxu0
        %1271 = vmatprep.mubr.bf16.mxu0 0
        %1272 = vmatmul.mubr.bf16.gmra.mrb[0].mxu0 %v696
        %v1273 = vpop.f32.mrb[0].mxu0
        %v1274 = vadd.f32 %v1081, %v1273
        %v1275 = vpop.f32.mrb[0].mxu0
        %v1276 = vpop.f32.mrb[0].mxu0
        %v1277 = vadd.f32 %v1084, %v1276
        %v1278 = vpop.f32.mrb[0].mxu0
        %1279 = vmatprep.mubr.bf16.mxu0 0
        %1280 = vmatmul.mubr.bf16.gmra.mrb[0].mxu0 %v699
        %v1281 = vpop.f32.mrb[0].mxu0
        %v1282 = vadd.f32 %v1089, %v1281
        %v1283 = vpop.f32.mrb[0].mxu0
        %v1284 = vpop.f32.mrb[0].mxu0
        %v1285 = vadd.f32 %v1092, %v1284
        %v1286 = vpop.f32.mrb[0].mxu0
        %1287 = vmatprep.mubr.bf16.mxu0 0
        %1288 = vmatmul.mubr.bf16.gmra.mrb[0].mxu0 %v702
        %v1289 = vpop.f32.mrb[0].mxu0
        %v1290 = vadd.f32 %v1097, %v1289
        %v1291 = vpop.f32.mrb[0].mxu0
        %v1292 = vpop.f32.mrb[0].mxu0
        %v1293 = vadd.f32 %v1100, %v1292
        %v1294 = vpop.f32.mrb[0].mxu0
        %1295 = vmatprep.mubr.bf16.mxu0 0
        %1296 = vmatmul.mubr.bf16.gmra.mrb[0].mxu0 %v705
        %v1297 = vpop.f32.mrb[0].mxu0
        %v1298 = vadd.f32 %v1105, %v1297
        %v1299 = vpop.f32.mrb[0].mxu0
        %v1300 = vpop.f32.mrb[0].mxu0
        %v1301 = vadd.f32 %v1108, %v1300
        %v1302 = vpop.f32.mrb[0].mxu0
        %1303 = vmatprep.mubr.bf16.mxu0 0
        %1304 = vmatmul.mubr.bf16.gmra.mrb[0].mxu0 %v708
        %v1305 = vpop.f32.mrb[0].mxu0
        %v1306 = vadd.f32 %v1113, %v1305
        %v1307 = vpop.f32.mrb[0].mxu0
        %v1308 = vpop.f32.mrb[0].mxu0
        %v1309 = vadd.f32 %v1116, %v1308
        %v1310 = vpop.f32.mrb[0].mxu0
        %1311 = vmatprep.mubr.bf16.mxu0 0
        %1312 = vmatmul.mubr.bf16.gmra.mrb[0].mxu0 %v711
        %v1313 = vpop.f32.mrb[0].mxu0
        %v1314 = vadd.f32 %v1121, %v1313
        %v1315 = vpop.f32.mrb[0].mxu0
        %v1316 = vpop.f32.mrb[0].mxu0
        %v1317 = vadd.f32 %v1124, %v1316
        %v1318 = vpop.f32.mrb[0].mxu0
        %1319 = vmatprep.mubr.bf16.mxu0 0
        %1320 = vmatmul.mubr.bf16.gmra.mrb[0].mxu0 %v714
        %v1321 = vpop.f32.mrb[0].mxu0
        %v1322 = vadd.f32 %v1129, %v1321
        %v1323 = vpop.f32.mrb[0].mxu0
        %v1324 = vpop.f32.mrb[0].mxu0
        %v1325 = vadd.f32 %v1132, %v1324
        %v1326 = vpop.f32.mrb[0].mxu0
        %1327 = vmatprep.mubr.bf16.mxu0 0
        %1328 = vmatmul.mubr.bf16.gmra.mrb[0].mxu0 %v717
        %v1329 = vpop.f32.mrb[0].mxu0
        %v1330 = vadd.f32 %v1137, %v1329
        %v1331 = vpop.f32.mrb[0].mxu0
        %v1332 = vpop.f32.mrb[0].mxu0
        %v1333 = vadd.f32 %v1140, %v1332
        %v1334 = vpop.f32.mrb[0].mxu0
        %1335 = vmatprep.mubr.bf16.mxu0 0
        %1336 = vmatmul.mubr.bf16.gmra.mrb[0].mxu0 %v720
        %v1337 = vpop.f32.mrb[0].mxu0
        %v1338 = vadd.f32 %v1145, %v1337
        %v1339 = vpop.f32.mrb[0].mxu0
        %v1340 = vpop.f32.mrb[0].mxu0
        %v1341 = vadd.f32 %v1148, %v1340
        %v1342 = vpop.f32.mrb[0].mxu0
        %1343 = vmatprep.mubr.bf16.mxu0 0
        %1344 = vmatmul.mubr.bf16.gmra.mrb[0].mxu0 %v723
        %v1345 = vpop.f32.mrb[0].mxu0
        %v1346 = vadd.f32 %v1153, %v1345
        %v1347 = vpop.f32.mrb[0].mxu0
        %v1348 = vpop.f32.mrb[0].mxu0
        %v1349 = vadd.f32 %v1156, %v1348
        %v1350 = vpop.f32.mrb[0].mxu0
        %1351 = vmatprep.mubr.bf16.mxu0 0
        %1352 = vmatmul.mubr.bf16.gmra.mrb[0].mxu0 %v726
        %v1353 = vpop.f32.mrb[0].mxu0
        %v1354 = vadd.f32 %v1161, %v1353
        %v1355 = vpop.f32.mrb[0].mxu0
        %v1356 = vpop.f32.mrb[0].mxu0
        %v1357 = vadd.f32 %v1164, %v1356
        %v1358 = vpop.f32.mrb[0].mxu0
        %1359 = vmatprep.mubr.bf16.mxu0 0
        %1360 = vmatmul.mubr.bf16.gmra.mrb[0].mxu0 %v729
        %v1361 = vpop.f32.mrb[0].mxu0
        %v1362 = vadd.f32 %v1169, %v1361
        %v1363 = vpop.f32.mrb[0].mxu0
        %v1364 = vpop.f32.mrb[0].mxu0
        %v1365 = vadd.f32 %v1172, %v1364
        %v1366 = vpop.f32.mrb[0].mxu0
        %1367 = vmatprep.mubr.bf16.mxu0 0
        %1368 = vmatmul.mubr.bf16.gmra.mrb[0].mxu0 %v732
        %v1369 = vpop.f32.mrb[0].mxu0
        %v1370 = vadd.f32 %v1177, %v1369
        %v1371 = vpop.f32.mrb[0].mxu0
        %v1372 = vpop.f32.mrb[0].mxu0
        %v1373 = vadd.f32 %v1180, %v1372
        %v1374 = vpop.f32.mrb[0].mxu0
        %1375 = vmatprep.mubr.bf16.mxu0 0
        %1376 = vmatmul.mubr.bf16.gmra.mrb[0].mxu0 %v735
        %v1377 = vpop.f32.mrb[0].mxu0
        %v1378 = vadd.f32 %v1185, %v1377
        %v1379 = vpop.f32.mrb[0].mxu0
        %v1380 = vpop.f32.mrb[0].mxu0
        %v1381 = vadd.f32 %v1188, %v1380
        %v1382 = vpop.f32.mrb[0].mxu0
        %1383 = vmatprep.mubr.bf16.mxu0 0
        %1384 = vmatmul.mubr.bf16.gmra.mrb[0].mxu0 %v738
        %v1385 = vpop.f32.mrb[0].mxu0
        %v1386 = vadd.f32 %v1193, %v1385
        %v1387 = vpop.f32.mrb[0].mxu0
        %v1388 = vpop.f32.mrb[0].mxu0
        %v1389 = vadd.f32 %v1196, %v1388
        %v1390 = vpop.f32.mrb[0].mxu0
        %1391 = vmatprep.mubr.bf16.mxu0 0
        %1392 = vmatmul.mubr.bf16.gmra.mrb[0].mxu0 %v741
        %v1393 = vpop.f32.mrb[0].mxu0
        %v1394 = vadd.f32 %v1201, %v1393
        %v1395 = vpop.f32.mrb[0].mxu0
        %v1396 = vpop.f32.mrb[0].mxu0
        %v1397 = vadd.f32 %v1204, %v1396
        %v1398 = vpop.f32.mrb[0].mxu0
        %1399 = vdwg.mxu0
        %v1448 = vunpack.c.l.b16 %v773
        %v1449 = vunpack.c.l.b16 %v774
        %v1450 = vunpack.c.l.b16 %v775
        %v1451 = vunpack.c.l.b16 %v776
        %v1452 = vunpack.c.l.b16 %v777
        %v1453 = vunpack.c.l.b16 %v778
        %v1454 = vunpack.c.l.b16 %v779
        %v1455 = vunpack.c.l.b16 %v780
        %v1456 = vunpack.c.l.b16 %v781
        %v1457 = vunpack.c.l.b16 %v782
        %v1458 = vunpack.c.l.b16 %v783
        %v1459 = vunpack.c.l.b16 %v784
        %v1460 = vunpack.c.l.b16 %v785
        %v1461 = vunpack.c.l.b16 %v786
        %v1462 = vunpack.c.l.b16 %v787
        %v1463 = vunpack.c.l.b16 %v788
        %v1464 = vunpack.c.l.b16 %v789
        %v1465 = vunpack.c.l.b16 %v790
        %v1466 = vunpack.c.l.b16 %v791
        %v1467 = vunpack.c.l.b16 %v792
        %v1468 = vunpack.c.l.b16 %v793
        %v1469 = vunpack.c.l.b16 %v794
        %v1470 = vunpack.c.l.b16 %v795
        %v1471 = vunpack.c.l.b16 %v796
        %v1472 = vunpack.c.l.b16 %v797
        %v1473 = vunpack.c.l.b16 %v798
        %v1474 = vunpack.c.l.b16 %v799
        %v1475 = vunpack.c.l.b16 %v800
        %v1476 = vunpack.c.l.b16 %v801
        %v1477 = vunpack.c.l.b16 %v802
        %v1478 = vunpack.c.l.b16 %v803
        %v1479 = vunpack.c.l.b16 %v804
        %v1480 = vunpack.c.l.b16 %v805
        %v1481 = vunpack.c.l.b16 %v806
        %v1482 = vunpack.c.l.b16 %v807
        %v1483 = vunpack.c.l.b16 %v808
        %v1484 = vunpack.c.l.b16 %v809
        %v1485 = vunpack.c.l.b16 %v810
        %v1486 = vunpack.c.l.b16 %v811
        %v1487 = vunpack.c.l.b16 %v812
        %v1488 = vunpack.c.l.b16 %v813
        %v1489 = vunpack.c.l.b16 %v814
        %v1490 = vunpack.c.l.b16 %v815
        %v1491 = vunpack.c.l.b16 %v816
        %v1492 = vunpack.c.l.b16 %v817
        %v1493 = vunpack.c.l.b16 %v818
        %v1494 = vunpack.c.l.b16 %v819
        %v1495 = vunpack.c.l.b16 %v820
        %v1496 = vpack.c.b16 %v1449, %v1448
        %v1497 = vpack.c.b16 %v1451, %v1450
        %v1498 = vpack.c.b16 %v1453, %v1452
        %v1499 = vpack.c.b16 %v1455, %v1454
        %v1500 = vpack.c.b16 %v1457, %v1456
        %v1501 = vpack.c.b16 %v1459, %v1458
        %v1502 = vpack.c.b16 %v1461, %v1460
        %v1503 = vpack.c.b16 %v1463, %v1462
        %v1504 = vpack.c.b16 %v1465, %v1464
        %v1505 = vpack.c.b16 %v1467, %v1466
        %v1506 = vpack.c.b16 %v1469, %v1468
        %v1507 = vpack.c.b16 %v1471, %v1470
        %v1508 = vpack.c.b16 %v1473, %v1472
        %v1509 = vpack.c.b16 %v1475, %v1474
        %v1510 = vpack.c.b16 %v1477, %v1476
        %v1511 = vpack.c.b16 %v1479, %v1478
        %v1512 = vpack.c.b16 %v1481, %v1480
        %v1513 = vpack.c.b16 %v1483, %v1482
        %v1514 = vpack.c.b16 %v1485, %v1484
        %v1515 = vpack.c.b16 %v1487, %v1486
        %v1516 = vpack.c.b16 %v1489, %v1488
        %v1517 = vpack.c.b16 %v1491, %v1490
        %v1518 = vpack.c.b16 %v1493, %v1492
        %v1519 = vpack.c.b16 %v1495, %v1494
        %1544 = vmatprep.subr.bf16.mxu0 0
        %1545 = vmatpush1.bf16.msra.mxu0 %v1496
        %1546 = vmatprep.subr.bf16.mxu0 0
        %1547 = vmatpush1.bf16.msra.mxu0 %v1497
        %1548 = vmatprep.subr.bf16.mxu0 0
        %1549 = vmatpush1.bf16.msra.mxu0 %v1498
        %1550 = vmatprep.subr.bf16.mxu0 0
        %1551 = vmatpush1.bf16.msra.mxu0 %v1499
        %1552 = vmatprep.subr.bf16.mxu0 0
        %1553 = vmatpush1.bf16.msra.mxu0 %v1500
        %1554 = vmatprep.subr.bf16.mxu0 0
        %1555 = vmatpush1.bf16.msra.mxu0 %v1501
        %1556 = vmatprep.subr.bf16.mxu0 0
        %1557 = vmatpush1.bf16.msra.mxu0 %v1502
        %1558 = vmatprep.subr.bf16.mxu0 0
        %1559 = vmatpush1.bf16.msra.mxu0 %v1503
        %1560 = vmatprep.subr.bf16.mxu0 0
        %1561 = vmatpush1.bf16.msra.mxu0 %v1504
        %1562 = vmatprep.subr.bf16.mxu0 0
        %1563 = vmatpush1.bf16.msra.mxu0 %v1505
        %1564 = vmatprep.subr.bf16.mxu0 0
        %1565 = vmatpush1.bf16.msra.mxu0 %v1506
        %1566 = vmatprep.subr.bf16.mxu0 0
        %1567 = vmatpush1.bf16.msra.mxu0 %v1507
        %1568 = vmatprep.subr.bf16.mxu0 0
        %1569 = vmatpush1.bf16.msra.mxu0 %v1508
        %1570 = vmatprep.subr.bf16.mxu0 0
        %1571 = vmatpush1.bf16.msra.mxu0 %v1509
        %1572 = vmatprep.subr.bf16.mxu0 0
        %1573 = vmatpush1.bf16.msra.mxu0 %v1510
        %1574 = vmatprep.subr.bf16.mxu0 0
        %1575 = vmatpush1.bf16.msra.mxu0 %v1511
        %1576 = vmatprep.mubr.bf16.mxu0 %v415
        %1577 = vmatmul.mubr.bf16.gmra.mrb[0].mxu0 %v673
        %v1578 = vpop.f32.mrb[0].mxu0
        %v1579 = vadd.f32 %v1242, %v1578
        %v1580 = vpop.f32.mrb[0].mxu0
        %v1581 = vpop.f32.mrb[0].mxu0
        %v1582 = vadd.f32 %v1245, %v1581
        %v1583 = vpop.f32.mrb[0].mxu0
        %1584 = vmatprep.mubr.bf16.mxu0 %v416
        %1585 = vmatmul.mubr.bf16.gmra.mrb[0].mxu0 %v470
        %v1586 = vpop.f32.mrb[0].mxu0
        %v1587 = vadd.f32 %v1250, %v1586
        %v1588 = vpop.f32.mrb[0].mxu0
        %v1589 = vpop.f32.mrb[0].mxu0
        %v1590 = vadd.f32 %v1253, %v1589
        %v1591 = vpop.f32.mrb[0].mxu0
        %1592 = vmatprep.mubr.bf16.mxu0 %v417
        %1593 = vmatmul.mubr.bf16.gmra.mrb[0].mxu0 %v478
        %v1594 = vpop.f32.mrb[0].mxu0
        %v1595 = vadd.f32 %v1258, %v1594
        %v1596 = vpop.f32.mrb[0].mxu0
        %v1597 = vpop.f32.mrb[0].mxu0
        %v1598 = vadd.f32 %v1261, %v1597
        %v1599 = vpop.f32.mrb[0].mxu0
        %1600 = vmatprep.mubr.bf16.mxu0 %v418
        %1601 = vmatmul.mubr.bf16.gmra.mrb[0].mxu0 %v486
        %v1602 = vpop.f32.mrb[0].mxu0
        %v1603 = vadd.f32 %v1266, %v1602
        %v1604 = vpop.f32.mrb[0].mxu0
        %v1605 = vpop.f32.mrb[0].mxu0
        %v1606 = vadd.f32 %v1269, %v1605
        %v1607 = vpop.f32.mrb[0].mxu0
        %1608 = vmatprep.mubr.bf16.mxu0 %v419
        %1609 = vmatmul.mubr.bf16.gmra.mrb[0].mxu0 %v494
        %v1610 = vpop.f32.mrb[0].mxu0
        %v1611 = vadd.f32 %v1274, %v1610
        %v1612 = vpop.f32.mrb[0].mxu0
        %v1613 = vpop.f32.mrb[0].mxu0
        %v1614 = vadd.f32 %v1277, %v1613
        %v1615 = vpop.f32.mrb[0].mxu0
        %1616 = vmatprep.mubr.bf16.mxu0 %v420
        %1617 = vmatmul.mubr.bf16.gmra.mrb[0].mxu0 %v502
        %v1618 = vpop.f32.mrb[0].mxu0
        %v1619 = vadd.f32 %v1282, %v1618
        %v1620 = vpop.f32.mrb[0].mxu0
        %v1621 = vpop.f32.mrb[0].mxu0
        %v1622 = vadd.f32 %v1285, %v1621
        %v1623 = vpop.f32.mrb[0].mxu0
        %1624 = vmatprep.mubr.bf16.mxu0 %v421
        %1625 = vmatmul.mubr.bf16.gmra.mrb[0].mxu0 %v510
        %v1626 = vpop.f32.mrb[0].mxu0
        %v1627 = vadd.f32 %v1290, %v1626
        %v1628 = vpop.f32.mrb[0].mxu0
        %v1629 = vpop.f32.mrb[0].mxu0
        %v1630 = vadd.f32 %v1293, %v1629
        %v1631 = vpop.f32.mrb[0].mxu0
        %1632 = vmatprep.mubr.bf16.mxu0 %v422
        %1633 = vmatmul.mubr.bf16.gmra.mrb[0].mxu0 %v518
        %v1634 = vpop.f32.mrb[0].mxu0
        %v1635 = vadd.f32 %v1298, %v1634
        %v1636 = vpop.f32.mrb[0].mxu0
        %v1637 = vpop.f32.mrb[0].mxu0
        %v1638 = vadd.f32 %v1301, %v1637
        %v1639 = vpop.f32.mrb[0].mxu0
        %1640 = vmatprep.mubr.bf16.mxu0 %v423
        %1641 = vmatmul.mubr.bf16.gmra.mrb[0].mxu0 %v526
        %v1642 = vpop.f32.mrb[0].mxu0
        %v1643 = vadd.f32 %v1306, %v1642
        %v1644 = vpop.f32.mrb[0].mxu0
        %v1645 = vpop.f32.mrb[0].mxu0
        %v1646 = vadd.f32 %v1309, %v1645
        %v1647 = vpop.f32.mrb[0].mxu0
        %1648 = vmatprep.mubr.bf16.mxu0 %v424
        %1649 = vmatmul.mubr.bf16.gmra.mrb[0].mxu0 %v534
        %v1650 = vpop.f32.mrb[0].mxu0
        %v1651 = vadd.f32 %v1314, %v1650
        %v1652 = vpop.f32.mrb[0].mxu0
        %v1653 = vpop.f32.mrb[0].mxu0
        %v1654 = vadd.f32 %v1317, %v1653
        %v1655 = vpop.f32.mrb[0].mxu0
        %1656 = vmatprep.mubr.bf16.mxu0 %v425
        %1657 = vmatmul.mubr.bf16.gmra.mrb[0].mxu0 %v542
        %v1658 = vpop.f32.mrb[0].mxu0
        %v1659 = vadd.f32 %v1322, %v1658
        %v1660 = vpop.f32.mrb[0].mxu0
        %v1661 = vpop.f32.mrb[0].mxu0
        %v1662 = vadd.f32 %v1325, %v1661
        %v1663 = vpop.f32.mrb[0].mxu0
        %1664 = vmatprep.mubr.bf16.mxu0 %v426
        %1665 = vmatmul.mubr.bf16.gmra.mrb[0].mxu0 %v550
        %v1666 = vpop.f32.mrb[0].mxu0
        %v1667 = vadd.f32 %v1330, %v1666
        %v1668 = vpop.f32.mrb[0].mxu0
        %v1669 = vpop.f32.mrb[0].mxu0
        %v1670 = vadd.f32 %v1333, %v1669
        %v1671 = vpop.f32.mrb[0].mxu0
        %1672 = vmatprep.mubr.bf16.mxu0 %v427
        %1673 = vmatmul.mubr.bf16.gmra.mrb[0].mxu0 %v558
        %v1674 = vpop.f32.mrb[0].mxu0
        %v1675 = vadd.f32 %v1338, %v1674
        %v1676 = vpop.f32.mrb[0].mxu0
        %v1677 = vpop.f32.mrb[0].mxu0
        %v1678 = vadd.f32 %v1341, %v1677
        %v1679 = vpop.f32.mrb[0].mxu0
        %1680 = vmatprep.mubr.bf16.mxu0 %v428
        %1681 = vmatmul.mubr.bf16.gmra.mrb[0].mxu0 %v566
        %v1682 = vpop.f32.mrb[0].mxu0
        %v1683 = vadd.f32 %v1346, %v1682
        %v1684 = vpop.f32.mrb[0].mxu0
        %v1685 = vpop.f32.mrb[0].mxu0
        %v1686 = vadd.f32 %v1349, %v1685
        %v1687 = vpop.f32.mrb[0].mxu0
        %1688 = vmatprep.mubr.bf16.mxu0 %v429
        %1689 = vmatmul.mubr.bf16.gmra.mrb[0].mxu0 %v574
        %v1690 = vpop.f32.mrb[0].mxu0
        %v1691 = vadd.f32 %v1354, %v1690
        %v1692 = vpop.f32.mrb[0].mxu0
        %v1693 = vpop.f32.mrb[0].mxu0
        %v1694 = vadd.f32 %v1357, %v1693
        %v1695 = vpop.f32.mrb[0].mxu0
        %1696 = vmatprep.mubr.bf16.mxu0 %v430
        %1697 = vmatmul.mubr.bf16.gmra.mrb[0].mxu0 %v582
        %v1698 = vpop.f32.mrb[0].mxu0
        %v1699 = vadd.f32 %v1362, %v1698
        %v1700 = vpop.f32.mrb[0].mxu0
        %v1701 = vpop.f32.mrb[0].mxu0
        %v1702 = vadd.f32 %v1365, %v1701
        %v1703 = vpop.f32.mrb[0].mxu0
        %1704 = vmatprep.mubr.bf16.mxu0 %v447
        %1705 = vmatmul.mubr.bf16.gmra.mrb[0].mxu0 %v590
        %v1706 = vpop.f32.mrb[0].mxu0
        %v1707 = vadd.f32 %v1370, %v1706
        %v1708 = vpop.f32.mrb[0].mxu0
        %v1709 = vpop.f32.mrb[0].mxu0
        %v1710 = vadd.f32 %v1373, %v1709
        %v1711 = vpop.f32.mrb[0].mxu0
        %1712 = vmatprep.mubr.bf16.mxu0 %v448
        %1713 = vmatmul.mubr.bf16.gmra.mrb[0].mxu0 %v598
        %v1714 = vpop.f32.mrb[0].mxu0
        %v1715 = vadd.f32 %v1378, %v1714
        %v1716 = vpop.f32.mrb[0].mxu0
        %v1717 = vpop.f32.mrb[0].mxu0
        %v1718 = vadd.f32 %v1381, %v1717
        %v1719 = vpop.f32.mrb[0].mxu0
        %1720 = vmatprep.mubr.bf16.mxu0 %v449
        %1721 = vmatmul.mubr.bf16.gmra.mrb[0].mxu0 %v606
        %v1722 = vpop.f32.mrb[0].mxu0
        %v1723 = vadd.f32 %v1386, %v1722
        %v1724 = vpop.f32.mrb[0].mxu0
        %v1725 = vpop.f32.mrb[0].mxu0
        %v1726 = vadd.f32 %v1389, %v1725
        %v1727 = vpop.f32.mrb[0].mxu0
        %1728 = vmatprep.mubr.bf16.mxu0 %v450
        %1729 = vmatmul.mubr.bf16.gmra.mrb[0].mxu0 %v614
        %v1730 = vpop.f32.mrb[0].mxu0
        %v1731 = vadd.f32 %v1394, %v1730
        %v1732 = vpop.f32.mrb[0].mxu0
        %v1733 = vpop.f32.mrb[0].mxu0
        %v1734 = vadd.f32 %v1397, %v1733
        %v1735 = vpop.f32.mrb[0].mxu0
        %1736 = vdwg.mxu0
        %1737 = vmatprep.subr.bf16.mxu0 0
        %1738 = vmatpush1.bf16.msra.mxu0 %v1512
        %1739 = vmatprep.subr.bf16.mxu0 0
        %1740 = vmatpush1.bf16.msra.mxu0 %v1513
        %1741 = vmatprep.subr.bf16.mxu0 0
        %1742 = vmatpush1.bf16.msra.mxu0 %v1514
        %1743 = vmatprep.subr.bf16.mxu0 0
        %1744 = vmatpush1.bf16.msra.mxu0 %v1515
        %1745 = vmatprep.subr.bf16.mxu0 0
        %1746 = vmatpush1.bf16.msra.mxu0 %v1516
        %1747 = vmatprep.subr.bf16.mxu0 0
        %1748 = vmatpush1.bf16.msra.mxu0 %v1517
        %1749 = vmatprep.subr.bf16.mxu0 0
        %1750 = vmatpush1.bf16.msra.mxu0 %v1518
        %1751 = vmatprep.subr.bf16.mxu0 0
        %1752 = vmatpush1.bf16.msra.mxu0 %v1519
        %1753 = vmatprep.subr.bf16.mxu0 0
        %1754 = vmatpush1.bf16.msra.mxu0 0
        %1755 = vmatprep.subr.bf16.mxu0 0
        %1756 = vmatpush1.bf16.msra.mxu0 0
        %1757 = vmatprep.subr.bf16.mxu0 0
        %1758 = vmatpush1.bf16.msra.mxu0 0
        %1759 = vmatprep.subr.bf16.mxu0 0
        %1760 = vmatpush1.bf16.msra.mxu0 0
        %1761 = vmatprep.subr.bf16.mxu0 0
        %1762 = vmatpush1.bf16.msra.mxu0 0
        %1763 = vmatprep.subr.bf16.mxu0 0
        %1764 = vmatpush1.bf16.msra.mxu0 0
        %1765 = vmatprep.subr.bf16.mxu0 0
        %1766 = vmatpush1.bf16.msra.mxu0 0
        %1767 = vmatprep.subr.bf16.mxu0 0
        %1768 = vmatpush1.bf16.msra.mxu0 0
        %1769 = vmatprep.mubr.bf16.mxu0 0
        %1770 = vmatmul.mubr.bf16.gmra.mrb[0].mxu0 %v678
        %v1771 = vpop.f32.mrb[0].mxu0
        %v1772 = vadd.f32 %v1579, %v1771
        %v1773 = vpop.f32.mrb[0].mxu0
        %v1774 = vpop.f32.mrb[0].mxu0
        %v1775 = vadd.f32 %v1582, %v1774
        %v1776 = vpop.f32.mrb[0].mxu0
        %1777 = vmatprep.mubr.bf16.mxu0 0
        %1778 = vmatmul.mubr.bf16.gmra.mrb[0].mxu0 %v681
        %v1779 = vpop.f32.mrb[0].mxu0
        %v1780 = vadd.f32 %v1587, %v1779
        %v1781 = vpop.f32.mrb[0].mxu0
        %v1782 = vpop.f32.mrb[0].mxu0
        %v1783 = vadd.f32 %v1590, %v1782
        %v1784 = vpop.f32.mrb[0].mxu0
        %1785 = vmatprep.mubr.bf16.mxu0 0
        %1786 = vmatmul.mubr.bf16.gmra.mrb[0].mxu0 %v684
        %v1787 = vpop.f32.mrb[0].mxu0
        %v1788 = vadd.f32 %v1595, %v1787
        %v1789 = vpop.f32.mrb[0].mxu0
        %v1790 = vpop.f32.mrb[0].mxu0
        %v1791 = vadd.f32 %v1598, %v1790
        %v1792 = vpop.f32.mrb[0].mxu0
        %1793 = vmatprep.mubr.bf16.mxu0 0
        %1794 = vmatmul.mubr.bf16.gmra.mrb[0].mxu0 %v687
        %v1795 = vpop.f32.mrb[0].mxu0
        %v1796 = vadd.f32 %v1603, %v1795
        %v1797 = vpop.f32.mrb[0].mxu0
        %v1798 = vpop.f32.mrb[0].mxu0
        %v1799 = vadd.f32 %v1606, %v1798
        %v1800 = vpop.f32.mrb[0].mxu0
        %1801 = vmatprep.mubr.bf16.mxu0 0
        %1802 = vmatmul.mubr.bf16.gmra.mrb[0].mxu0 %v690
        %v1803 = vpop.f32.mrb[0].mxu0
        %v1804 = vadd.f32 %v1611, %v1803
        %v1805 = vpop.f32.mrb[0].mxu0
        %v1806 = vpop.f32.mrb[0].mxu0
        %v1807 = vadd.f32 %v1614, %v1806
        %v1808 = vpop.f32.mrb[0].mxu0
        %1809 = vmatprep.mubr.bf16.mxu0 0
        %1810 = vmatmul.mubr.bf16.gmra.mrb[0].mxu0 %v693
        %v1811 = vpop.f32.mrb[0].mxu0
        %v1812 = vadd.f32 %v1619, %v1811
        %v1813 = vpop.f32.mrb[0].mxu0
        %v1814 = vpop.f32.mrb[0].mxu0
        %v1815 = vadd.f32 %v1622, %v1814
        %v1816 = vpop.f32.mrb[0].mxu0
        %1817 = vmatprep.mubr.bf16.mxu0 0
        %1818 = vmatmul.mubr.bf16.gmra.mrb[0].mxu0 %v696
        %v1819 = vpop.f32.mrb[0].mxu0
        %v1820 = vadd.f32 %v1627, %v1819
        %v1821 = vpop.f32.mrb[0].mxu0
        %v1822 = vpop.f32.mrb[0].mxu0
        %v1823 = vadd.f32 %v1630, %v1822
        %v1824 = vpop.f32.mrb[0].mxu0
        %1825 = vmatprep.mubr.bf16.mxu0 0
        %1826 = vmatmul.mubr.bf16.gmra.mrb[0].mxu0 %v699
        %v1827 = vpop.f32.mrb[0].mxu0
        %v1828 = vadd.f32 %v1635, %v1827
        %v1829 = vpop.f32.mrb[0].mxu0
        %v1830 = vpop.f32.mrb[0].mxu0
        %v1831 = vadd.f32 %v1638, %v1830
        %v1832 = vpop.f32.mrb[0].mxu0
        %1833 = vmatprep.mubr.bf16.mxu0 0
        %1834 = vmatmul.mubr.bf16.gmra.mrb[0].mxu0 %v702
        %v1835 = vpop.f32.mrb[0].mxu0
        %v1836 = vadd.f32 %v1643, %v1835
        %v1837 = vpop.f32.mrb[0].mxu0
        %v1838 = vpop.f32.mrb[0].mxu0
        %v1839 = vadd.f32 %v1646, %v1838
        %v1840 = vpop.f32.mrb[0].mxu0
        %1841 = vmatprep.mubr.bf16.mxu0 0
        %1842 = vmatmul.mubr.bf16.gmra.mrb[0].mxu0 %v705
        %v1843 = vpop.f32.mrb[0].mxu0
        %v1844 = vadd.f32 %v1651, %v1843
        %v1845 = vpop.f32.mrb[0].mxu0
        %v1846 = vpop.f32.mrb[0].mxu0
        %v1847 = vadd.f32 %v1654, %v1846
        %v1848 = vpop.f32.mrb[0].mxu0
        %1849 = vmatprep.mubr.bf16.mxu0 0
        %1850 = vmatmul.mubr.bf16.gmra.mrb[0].mxu0 %v708
        %v1851 = vpop.f32.mrb[0].mxu0
        %v1852 = vadd.f32 %v1659, %v1851
        %v1853 = vpop.f32.mrb[0].mxu0
        %v1854 = vpop.f32.mrb[0].mxu0
        %v1855 = vadd.f32 %v1662, %v1854
        %v1856 = vpop.f32.mrb[0].mxu0
        %1857 = vmatprep.mubr.bf16.mxu0 0
        %1858 = vmatmul.mubr.bf16.gmra.mrb[0].mxu0 %v711
        %v1859 = vpop.f32.mrb[0].mxu0
        %v1860 = vadd.f32 %v1667, %v1859
        %v1861 = vpop.f32.mrb[0].mxu0
        %v1862 = vpop.f32.mrb[0].mxu0
        %v1863 = vadd.f32 %v1670, %v1862
        %v1864 = vpop.f32.mrb[0].mxu0
        %1865 = vmatprep.mubr.bf16.mxu0 0
        %1866 = vmatmul.mubr.bf16.gmra.mrb[0].mxu0 %v714
        %v1867 = vpop.f32.mrb[0].mxu0
        %v1868 = vadd.f32 %v1675, %v1867
        %v1869 = vpop.f32.mrb[0].mxu0
        %v1870 = vpop.f32.mrb[0].mxu0
        %v1871 = vadd.f32 %v1678, %v1870
        %v1872 = vpop.f32.mrb[0].mxu0
        %1873 = vmatprep.mubr.bf16.mxu0 0
        %1874 = vmatmul.mubr.bf16.gmra.mrb[0].mxu0 %v717
        %v1875 = vpop.f32.mrb[0].mxu0
        %v1876 = vadd.f32 %v1683, %v1875
        %v1877 = vpop.f32.mrb[0].mxu0
        %v1878 = vpop.f32.mrb[0].mxu0
        %v1879 = vadd.f32 %v1686, %v1878
        %v1880 = vpop.f32.mrb[0].mxu0
        %1881 = vmatprep.mubr.bf16.mxu0 0
        %1882 = vmatmul.mubr.bf16.gmra.mrb[0].mxu0 %v720
        %v1883 = vpop.f32.mrb[0].mxu0
        %v1884 = vadd.f32 %v1691, %v1883
        %v1885 = vpop.f32.mrb[0].mxu0
        %v1886 = vpop.f32.mrb[0].mxu0
        %v1887 = vadd.f32 %v1694, %v1886
        %v1888 = vpop.f32.mrb[0].mxu0
        %1889 = vmatprep.mubr.bf16.mxu0 0
        %1890 = vmatmul.mubr.bf16.gmra.mrb[0].mxu0 %v723
        %v1891 = vpop.f32.mrb[0].mxu0
        %v1892 = vadd.f32 %v1699, %v1891
        %v1893 = vpop.f32.mrb[0].mxu0
        %v1894 = vpop.f32.mrb[0].mxu0
        %v1895 = vadd.f32 %v1702, %v1894
        %v1896 = vpop.f32.mrb[0].mxu0
        %1897 = vmatprep.mubr.bf16.mxu0 0
        %1898 = vmatmul.mubr.bf16.gmra.mrb[0].mxu0 %v726
        %v1899 = vpop.f32.mrb[0].mxu0
        %v1900 = vadd.f32 %v1707, %v1899
        %v1901 = vpop.f32.mrb[0].mxu0
        %v1902 = vpop.f32.mrb[0].mxu0
        %v1903 = vadd.f32 %v1710, %v1902
        %v1904 = vpop.f32.mrb[0].mxu0
        %1905 = vmatprep.mubr.bf16.mxu0 0
        %1906 = vmatmul.mubr.bf16.gmra.mrb[0].mxu0 %v729
        %v1907 = vpop.f32.mrb[0].mxu0
        %v1908 = vadd.f32 %v1715, %v1907
        %v1909 = vpop.f32.mrb[0].mxu0
        %v1910 = vpop.f32.mrb[0].mxu0
        %v1911 = vadd.f32 %v1718, %v1910
        %v1912 = vpop.f32.mrb[0].mxu0
        %1913 = vmatprep.mubr.bf16.mxu0 0
        %1914 = vmatmul.mubr.bf16.gmra.mrb[0].mxu0 %v732
        %v1915 = vpop.f32.mrb[0].mxu0
        %v1916 = vadd.f32 %v1723, %v1915
        %v1917 = vpop.f32.mrb[0].mxu0
        %v1918 = vpop.f32.mrb[0].mxu0
        %v1919 = vadd.f32 %v1726, %v1918
        %v1920 = vpop.f32.mrb[0].mxu0
        %1921 = vmatprep.mubr.bf16.mxu0 0
        %1922 = vmatmul.mubr.bf16.gmra.mrb[0].mxu0 %v735
        %v1923 = vpop.f32.mrb[0].mxu0
        %v1924 = vadd.f32 %v1731, %v1923
        %v1925 = vpop.f32.mrb[0].mxu0
        %v1926 = vpop.f32.mrb[0].mxu0
        %v1927 = vadd.f32 %v1734, %v1926
        %v1928 = vpop.f32.mrb[0].mxu0
        %1929 = vdwg.mxu0
        %s1930 = scalar_lea.vmem [#allocation7], 384
        %v1931 = vld [vmem:[%s1930] sm:$0xf]
        %v1932 = vld [vmem:[%s1930 + $0x4] sm:$0xf]
        %v1933 = vld [vmem:[%s1930 + $0x8] sm:$0xf]
        %v1934 = vld [vmem:[%s1930 + $0xc] sm:$0xf]
        %v1935 = vld [vmem:[%s1930 + $0x10] sm:$0xf]
        %v1936 = vld [vmem:[%s1930 + $0x14] sm:$0xf]
        %v1937 = vld [vmem:[%s1930 + $0x18] sm:$0xf]
        %v1938 = vld [vmem:[%s1930 + $0x1c] sm:$0xf]
        %v1939 = vld [vmem:[%s1930 + $0x20] sm:$0xf]
        %v1940 = vld [vmem:[%s1930 + $0x24] sm:$0xf]
        %v1941 = vld [vmem:[%s1930 + $0x28] sm:$0xf]
        %v1942 = vld [vmem:[%s1930 + $0x2c] sm:$0xf]
        %v1943 = vld [vmem:[%s1930 + $0x30] sm:$0xf]
        %v1944 = vld [vmem:[%s1930 + $0x34] sm:$0xf]
        %v1945 = vld [vmem:[%s1930 + $0x38] sm:$0xf]
        %v1946 = vld [vmem:[%s1930 + $0x3c] sm:$0xf]
        %v1947 = vld [vmem:[%s1930 + $0x40] sm:$0xf]
        %v1948 = vld [vmem:[%s1930 + $0x44] sm:$0xf]
        %v1949 = vld [vmem:[%s1930 + $0x48] sm:$0xf]
        %v1950 = vld [vmem:[%s1930 + $0x4c] sm:$0xf]
        %v1951 = vld [vmem:[%s1930 + $0x50] sm:$0xf]
        %v1952 = vld [vmem:[%s1930 + $0x54] sm:$0xf]
        %v1953 = vld [vmem:[%s1930 + $0x58] sm:$0xf]
        %v1954 = vld [vmem:[%s1930 + $0x5c] sm:$0xf]
        %v1955 = vld [vmem:[%s1930 + $0x60] sm:$0xf]
        %v1956 = vld [vmem:[%s1930 + $0x64] sm:$0xf]
        %v1957 = vld [vmem:[%s1930 + $0x68] sm:$0xf]
        %v1958 = vld [vmem:[%s1930 + $0x6c] sm:$0xf]
        %v1959 = vld [vmem:[%s1930 + $0x70] sm:$0xf]
        %v1960 = vld [vmem:[%s1930 + $0x74] sm:$0xf]
        %v1961 = vld [vmem:[%s1930 + $0x78] sm:$0xf]
        %v1962 = vld [vmem:[%s1930 + $0x7c] sm:$0xf]
        %v1963 = vld [vmem:[%s1930 + $0x80] sm:$0xf]
        %v1964 = vld [vmem:[%s1930 + $0x84] sm:$0xf]
        %v1965 = vld [vmem:[%s1930 + $0x88] sm:$0xf]
        %v1966 = vld [vmem:[%s1930 + $0x8c] sm:$0xf]
        %v1967 = vld [vmem:[%s1930 + $0x90] sm:$0xf]
        %v1968 = vld [vmem:[%s1930 + $0x94] sm:$0xf]
        %v1969 = vld [vmem:[%s1930 + $0x98] sm:$0xf]
        %v1970 = vld [vmem:[%s1930 + $0x9c] sm:$0xf]
        %v1971 = vld [vmem:[%s1930 + $0xa0] sm:$0xf]
        %v1972 = vld [vmem:[%s1930 + $0xa4] sm:$0xf]
        %v1973 = vld [vmem:[%s1930 + $0xa8] sm:$0xf]
        %v1974 = vld [vmem:[%s1930 + $0xac] sm:$0xf]
        %v1975 = vld [vmem:[%s1930 + $0xb0] sm:$0xf]
        %v1976 = vld [vmem:[%s1930 + $0xb4] sm:$0xf]
        %v1977 = vld [vmem:[%s1930 + $0xb8] sm:$0xf]
        %v1978 = vld [vmem:[%s1930 + $0xbc] sm:$0xf]
        %v2027 = vunpack.c.l.b16 %v1931
        %v2028 = vunpack.c.l.b16 %v1932
        %v2029 = vunpack.c.l.b16 %v1933
        %v2030 = vunpack.c.l.b16 %v1934
        %v2031 = vunpack.c.l.b16 %v1935
        %v2032 = vunpack.c.l.b16 %v1936
        %v2033 = vunpack.c.l.b16 %v1937
        %v2034 = vunpack.c.l.b16 %v1938
        %v2035 = vunpack.c.l.b16 %v1939
        %v2036 = vunpack.c.l.b16 %v1940
        %v2037 = vunpack.c.l.b16 %v1941
        %v2038 = vunpack.c.l.b16 %v1942
        %v2039 = vunpack.c.l.b16 %v1943
        %v2040 = vunpack.c.l.b16 %v1944
        %v2041 = vunpack.c.l.b16 %v1945
        %v2042 = vunpack.c.l.b16 %v1946
        %v2043 = vunpack.c.l.b16 %v1947
        %v2044 = vunpack.c.l.b16 %v1948
        %v2045 = vunpack.c.l.b16 %v1949
        %v2046 = vunpack.c.l.b16 %v1950
        %v2047 = vunpack.c.l.b16 %v1951
        %v2048 = vunpack.c.l.b16 %v1952
        %v2049 = vunpack.c.l.b16 %v1953
        %v2050 = vunpack.c.l.b16 %v1954
        %v2051 = vunpack.c.l.b16 %v1955
        %v2052 = vunpack.c.l.b16 %v1956
        %v2053 = vunpack.c.l.b16 %v1957
        %v2054 = vunpack.c.l.b16 %v1958
        %v2055 = vunpack.c.l.b16 %v1959
        %v2056 = vunpack.c.l.b16 %v1960
        %v2057 = vunpack.c.l.b16 %v1961
        %v2058 = vunpack.c.l.b16 %v1962
        %v2059 = vunpack.c.l.b16 %v1963
        %v2060 = vunpack.c.l.b16 %v1964
        %v2061 = vunpack.c.l.b16 %v1965
        %v2062 = vunpack.c.l.b16 %v1966
        %v2063 = vunpack.c.l.b16 %v1967
        %v2064 = vunpack.c.l.b16 %v1968
        %v2065 = vunpack.c.l.b16 %v1969
        %v2066 = vunpack.c.l.b16 %v1970
        %v2067 = vunpack.c.l.b16 %v1971
        %v2068 = vunpack.c.l.b16 %v1972
        %v2069 = vunpack.c.l.b16 %v1973
        %v2070 = vunpack.c.l.b16 %v1974
        %v2071 = vunpack.c.l.b16 %v1975
        %v2072 = vunpack.c.l.b16 %v1976
        %v2073 = vunpack.c.l.b16 %v1977
        %v2074 = vunpack.c.l.b16 %v1978
        %v2075 = vpack.c.b16 %v2028, %v2027
        %v2076 = vpack.c.b16 %v2030, %v2029
        %v2077 = vpack.c.b16 %v2032, %v2031
        %v2078 = vpack.c.b16 %v2034, %v2033
        %v2079 = vpack.c.b16 %v2036, %v2035
        %v2080 = vpack.c.b16 %v2038, %v2037
        %v2081 = vpack.c.b16 %v2040, %v2039
        %v2082 = vpack.c.b16 %v2042, %v2041
        %v2083 = vpack.c.b16 %v2044, %v2043
        %v2084 = vpack.c.b16 %v2046, %v2045
        %v2085 = vpack.c.b16 %v2048, %v2047
        %v2086 = vpack.c.b16 %v2050, %v2049
        %v2087 = vpack.c.b16 %v2052, %v2051
        %v2088 = vpack.c.b16 %v2054, %v2053
        %v2089 = vpack.c.b16 %v2056, %v2055
        %v2090 = vpack.c.b16 %v2058, %v2057
        %v2091 = vpack.c.b16 %v2060, %v2059
        %v2092 = vpack.c.b16 %v2062, %v2061
        %v2093 = vpack.c.b16 %v2064, %v2063
        %v2094 = vpack.c.b16 %v2066, %v2065
        %v2095 = vpack.c.b16 %v2068, %v2067
        %v2096 = vpack.c.b16 %v2070, %v2069
        %v2097 = vpack.c.b16 %v2072, %v2071
        %v2098 = vpack.c.b16 %v2074, %v2073
        %2123 = vmatprep.subr.bf16.mxu0 0
        %2124 = vmatpush1.bf16.msra.mxu0 %v2075
        %2125 = vmatprep.subr.bf16.mxu0 0
        %2126 = vmatpush1.bf16.msra.mxu0 %v2076
        %2127 = vmatprep.subr.bf16.mxu0 0
        %2128 = vmatpush1.bf16.msra.mxu0 %v2077
        %2129 = vmatprep.subr.bf16.mxu0 0
        %2130 = vmatpush1.bf16.msra.mxu0 %v2078
        %2131 = vmatprep.subr.bf16.mxu0 0
        %2132 = vmatpush1.bf16.msra.mxu0 %v2079
        %2133 = vmatprep.subr.bf16.mxu0 0
        %2134 = vmatpush1.bf16.msra.mxu0 %v2080
        %2135 = vmatprep.subr.bf16.mxu0 0
        %2136 = vmatpush1.bf16.msra.mxu0 %v2081
        %2137 = vmatprep.subr.bf16.mxu0 0
        %2138 = vmatpush1.bf16.msra.mxu0 %v2082
        %2139 = vmatprep.subr.bf16.mxu0 0
        %2140 = vmatpush1.bf16.msra.mxu0 %v2083
        %2141 = vmatprep.subr.bf16.mxu0 0
        %2142 = vmatpush1.bf16.msra.mxu0 %v2084
        %2143 = vmatprep.subr.bf16.mxu0 0
        %2144 = vmatpush1.bf16.msra.mxu0 %v2085
        %2145 = vmatprep.subr.bf16.mxu0 0
        %2146 = vmatpush1.bf16.msra.mxu0 %v2086
        %2147 = vmatprep.subr.bf16.mxu0 0
        %2148 = vmatpush1.bf16.msra.mxu0 %v2087
        %2149 = vmatprep.subr.bf16.mxu0 0
        %2150 = vmatpush1.bf16.msra.mxu0 %v2088
        %2151 = vmatprep.subr.bf16.mxu0 0
        %2152 = vmatpush1.bf16.msra.mxu0 %v2089
        %2153 = vmatprep.subr.bf16.mxu0 0
        %2154 = vmatpush1.bf16.msra.mxu0 %v2090
        %2155 = vmatprep.mubr.bf16.mxu0 %v419
        %2156 = vmatmul.mubr.bf16.gmra.mrb[0].mxu0 %v494
        %v2157 = vpop.f32.mrb[0].mxu0
        %v2158 = vadd.f32 0.0, %v2157
        %v2159 = vpop.f32.mrb[0].mxu0
        %v2160 = vpop.f32.mrb[0].mxu0
        %v2161 = vadd.f32 0.0, %v2160
        %v2162 = vpop.f32.mrb[0].mxu0
        %2163 = vmatprep.mubr.bf16.mxu0 %v420
        %2164 = vmatmul.mubr.bf16.gmra.mrb[0].mxu0 %v502
        %v2165 = vpop.f32.mrb[0].mxu0
        %v2166 = vadd.f32 0.0, %v2165
        %v2167 = vpop.f32.mrb[0].mxu0
        %v2168 = vpop.f32.mrb[0].mxu0
        %v2169 = vadd.f32 0.0, %v2168
        %v2170 = vpop.f32.mrb[0].mxu0
        %2171 = vmatprep.mubr.bf16.mxu0 %v421
        %2172 = vmatmul.mubr.bf16.gmra.mrb[0].mxu0 %v510
        %v2173 = vpop.f32.mrb[0].mxu0
        %v2174 = vadd.f32 0.0, %v2173
        %v2175 = vpop.f32.mrb[0].mxu0
        %v2176 = vpop.f32.mrb[0].mxu0
        %v2177 = vadd.f32 0.0, %v2176
        %v2178 = vpop.f32.mrb[0].mxu0
        %2179 = vmatprep.mubr.bf16.mxu0 %v422
        %2180 = vmatmul.mubr.bf16.gmra.mrb[0].mxu0 %v518
        %v2181 = vpop.f32.mrb[0].mxu0
        %v2182 = vadd.f32 0.0, %v2181
        %v2183 = vpop.f32.mrb[0].mxu0
        %v2184 = vpop.f32.mrb[0].mxu0
        %v2185 = vadd.f32 0.0, %v2184
        %v2186 = vpop.f32.mrb[0].mxu0
        %2187 = vmatprep.mubr.bf16.mxu0 %v423
        %2188 = vmatmul.mubr.bf16.gmra.mrb[0].mxu0 %v526
        %v2189 = vpop.f32.mrb[0].mxu0
        %v2190 = vadd.f32 0.0, %v2189
        %v2191 = vpop.f32.mrb[0].mxu0
        %v2192 = vpop.f32.mrb[0].mxu0
        %v2193 = vadd.f32 0.0, %v2192
        %v2194 = vpop.f32.mrb[0].mxu0
        %2195 = vmatprep.mubr.bf16.mxu0 %v424
        %2196 = vmatmul.mubr.bf16.gmra.mrb[0].mxu0 %v534
        %v2197 = vpop.f32.mrb[0].mxu0
        %v2198 = vadd.f32 0.0, %v2197
        %v2199 = vpop.f32.mrb[0].mxu0
        %v2200 = vpop.f32.mrb[0].mxu0
        %v2201 = vadd.f32 0.0, %v2200
        %v2202 = vpop.f32.mrb[0].mxu0
        %2203 = vmatprep.mubr.bf16.mxu0 %v425
        %2204 = vmatmul.mubr.bf16.gmra.mrb[0].mxu0 %v542
        %v2205 = vpop.f32.mrb[0].mxu0
        %v2206 = vadd.f32 0.0, %v2205
        %v2207 = vpop.f32.mrb[0].mxu0
        %v2208 = vpop.f32.mrb[0].mxu0
        %v2209 = vadd.f32 0.0, %v2208
        %v2210 = vpop.f32.mrb[0].mxu0
        %2211 = vmatprep.mubr.bf16.mxu0 %v426
        %2212 = vmatmul.mubr.bf16.gmra.mrb[0].mxu0 %v550
        %v2213 = vpop.f32.mrb[0].mxu0
        %v2214 = vadd.f32 0.0, %v2213
        %v2215 = vpop.f32.mrb[0].mxu0
        %v2216 = vpop.f32.mrb[0].mxu0
        %v2217 = vadd.f32 0.0, %v2216
        %v2218 = vpop.f32.mrb[0].mxu0
        %2219 = vmatprep.mubr.bf16.mxu0 %v427
        %2220 = vmatmul.mubr.bf16.gmra.mrb[0].mxu0 %v558
        %v2221 = vpop.f32.mrb[0].mxu0
        %v2222 = vadd.f32 0.0, %v2221
        %v2223 = vpop.f32.mrb[0].mxu0
        %v2224 = vpop.f32.mrb[0].mxu0
        %v2225 = vadd.f32 0.0, %v2224
        %v2226 = vpop.f32.mrb[0].mxu0
        %2227 = vmatprep.mubr.bf16.mxu0 %v428
        %2228 = vmatmul.mubr.bf16.gmra.mrb[0].mxu0 %v566
        %v2229 = vpop.f32.mrb[0].mxu0
        %v2230 = vadd.f32 0.0, %v2229
        %v2231 = vpop.f32.mrb[0].mxu0
        %v2232 = vpop.f32.mrb[0].mxu0
        %v2233 = vadd.f32 0.0, %v2232
        %v2234 = vpop.f32.mrb[0].mxu0
        %2235 = vmatprep.mubr.bf16.mxu0 %v429
        %2236 = vmatmul.mubr.bf16.gmra.mrb[0].mxu0 %v574
        %v2237 = vpop.f32.mrb[0].mxu0
        %v2238 = vadd.f32 0.0, %v2237
        %v2239 = vpop.f32.mrb[0].mxu0
        %v2240 = vpop.f32.mrb[0].mxu0
        %v2241 = vadd.f32 0.0, %v2240
        %v2242 = vpop.f32.mrb[0].mxu0
        %2243 = vmatprep.mubr.bf16.mxu0 %v430
        %2244 = vmatmul.mubr.bf16.gmra.mrb[0].mxu0 %v582
        %v2245 = vpop.f32.mrb[0].mxu0
        %v2246 = vadd.f32 0.0, %v2245
        %v2247 = vpop.f32.mrb[0].mxu0
        %v2248 = vpop.f32.mrb[0].mxu0
        %v2249 = vadd.f32 0.0, %v2248
        %v2250 = vpop.f32.mrb[0].mxu0
        %2251 = vmatprep.mubr.bf16.mxu0 %v447
        %2252 = vmatmul.mubr.bf16.gmra.mrb[0].mxu0 %v590
        %v2253 = vpop.f32.mrb[0].mxu0
        %v2254 = vadd.f32 0.0, %v2253
        %v2255 = vpop.f32.mrb[0].mxu0
        %v2256 = vpop.f32.mrb[0].mxu0
        %v2257 = vadd.f32 0.0, %v2256
        %v2258 = vpop.f32.mrb[0].mxu0
        %2259 = vmatprep.mubr.bf16.mxu0 %v448
        %2260 = vmatmul.mubr.bf16.gmra.mrb[0].mxu0 %v598
        %v2261 = vpop.f32.mrb[0].mxu0
        %v2262 = vadd.f32 0.0, %v2261
        %v2263 = vpop.f32.mrb[0].mxu0
        %v2264 = vpop.f32.mrb[0].mxu0
        %v2265 = vadd.f32 0.0, %v2264
        %v2266 = vpop.f32.mrb[0].mxu0
        %2267 = vmatprep.mubr.bf16.mxu0 %v449
        %2268 = vmatmul.mubr.bf16.gmra.mrb[0].mxu0 %v606
        %v2269 = vpop.f32.mrb[0].mxu0
        %v2270 = vadd.f32 0.0, %v2269
        %v2271 = vpop.f32.mrb[0].mxu0
        %v2272 = vpop.f32.mrb[0].mxu0
        %v2273 = vadd.f32 0.0, %v2272
        %v2274 = vpop.f32.mrb[0].mxu0
        %2275 = vmatprep.mubr.bf16.mxu0 %v450
        %2276 = vmatmul.mubr.bf16.gmra.mrb[0].mxu0 %v614
        %v2277 = vpop.f32.mrb[0].mxu0
        %v2278 = vadd.f32 0.0, %v2277
        %v2279 = vpop.f32.mrb[0].mxu0
        %v2280 = vpop.f32.mrb[0].mxu0
        %v2281 = vadd.f32 0.0, %v2280
        %v2282 = vpop.f32.mrb[0].mxu0
        %2283 = vmatprep.mubr.bf16.mxu0 %v451
        %2284 = vmatmul.mubr.bf16.gmra.mrb[0].mxu0 %v622
        %v2285 = vpop.f32.mrb[0].mxu0
        %v2286 = vadd.f32 0.0, %v2285
        %v2287 = vpop.f32.mrb[0].mxu0
        %v2288 = vpop.f32.mrb[0].mxu0
        %v2289 = vadd.f32 0.0, %v2288
        %v2290 = vpop.f32.mrb[0].mxu0
        %2291 = vmatprep.mubr.bf16.mxu0 %v452
        %2292 = vmatmul.mubr.bf16.gmra.mrb[0].mxu0 %v630
        %v2293 = vpop.f32.mrb[0].mxu0
        %v2294 = vadd.f32 0.0, %v2293
        %v2295 = vpop.f32.mrb[0].mxu0
        %v2296 = vpop.f32.mrb[0].mxu0
        %v2297 = vadd.f32 0.0, %v2296
        %v2298 = vpop.f32.mrb[0].mxu0
        %2299 = vmatprep.mubr.bf16.mxu0 %v453
        %2300 = vmatmul.mubr.bf16.gmra.mrb[0].mxu0 %v638
        %v2301 = vpop.f32.mrb[0].mxu0
        %v2302 = vadd.f32 0.0, %v2301
        %v2303 = vpop.f32.mrb[0].mxu0
        %v2304 = vpop.f32.mrb[0].mxu0
        %v2305 = vadd.f32 0.0, %v2304
        %v2306 = vpop.f32.mrb[0].mxu0
        %2307 = vmatprep.mubr.bf16.mxu0 %v454
        %2308 = vmatmul.mubr.bf16.gmra.mrb[0].mxu0 %v646
        %v2309 = vpop.f32.mrb[0].mxu0
        %v2310 = vadd.f32 0.0, %v2309
        %v2311 = vpop.f32.mrb[0].mxu0
        %v2312 = vpop.f32.mrb[0].mxu0
        %v2313 = vadd.f32 0.0, %v2312
        %v2314 = vpop.f32.mrb[0].mxu0
        %2315 = vdwg.mxu0
        %2316 = vmatprep.subr.bf16.mxu0 0
        %2317 = vmatpush1.bf16.msra.mxu0 %v2091
        %2318 = vmatprep.subr.bf16.mxu0 0
        %2319 = vmatpush1.bf16.msra.mxu0 %v2092
        %2320 = vmatprep.subr.bf16.mxu0 0
        %2321 = vmatpush1.bf16.msra.mxu0 %v2093
        %2322 = vmatprep.subr.bf16.mxu0 0
        %2323 = vmatpush1.bf16.msra.mxu0 %v2094
        %2324 = vmatprep.subr.bf16.mxu0 0
        %2325 = vmatpush1.bf16.msra.mxu0 %v2095
        %2326 = vmatprep.subr.bf16.mxu0 0
        %2327 = vmatpush1.bf16.msra.mxu0 %v2096
        %2328 = vmatprep.subr.bf16.mxu0 0
        %2329 = vmatpush1.bf16.msra.mxu0 %v2097
        %2330 = vmatprep.subr.bf16.mxu0 0
        %2331 = vmatpush1.bf16.msra.mxu0 %v2098
        %2332 = vmatprep.subr.bf16.mxu0 0
        %2333 = vmatpush1.bf16.msra.mxu0 0
        %2334 = vmatprep.subr.bf16.mxu0 0
        %2335 = vmatpush1.bf16.msra.mxu0 0
        %2336 = vmatprep.subr.bf16.mxu0 0
        %2337 = vmatpush1.bf16.msra.mxu0 0
        %2338 = vmatprep.subr.bf16.mxu0 0
        %2339 = vmatpush1.bf16.msra.mxu0 0
        %2340 = vmatprep.subr.bf16.mxu0 0
        %2341 = vmatpush1.bf16.msra.mxu0 0
        %2342 = vmatprep.subr.bf16.mxu0 0
        %2343 = vmatpush1.bf16.msra.mxu0 0
        %2344 = vmatprep.subr.bf16.mxu0 0
        %2345 = vmatpush1.bf16.msra.mxu0 0
        %2346 = vmatprep.subr.bf16.mxu0 0
        %2347 = vmatpush1.bf16.msra.mxu0 0
        %2348 = vmatprep.mubr.bf16.mxu0 0
        %2349 = vmatmul.mubr.bf16.gmra.mrb[0].mxu0 %v690
        %v2350 = vpop.f32.mrb[0].mxu0
        %v2351 = vadd.f32 %v2158, %v2350
        %v2352 = vpop.f32.mrb[0].mxu0
        %v2353 = vpop.f32.mrb[0].mxu0
        %v2354 = vadd.f32 %v2161, %v2353
        %v2355 = vpop.f32.mrb[0].mxu0
        %2356 = vmatprep.mubr.bf16.mxu0 0
        %2357 = vmatmul.mubr.bf16.gmra.mrb[0].mxu0 %v693
        %v2358 = vpop.f32.mrb[0].mxu0
        %v2359 = vadd.f32 %v2166, %v2358
        %v2360 = vpop.f32.mrb[0].mxu0
        %v2361 = vpop.f32.mrb[0].mxu0
        %v2362 = vadd.f32 %v2169, %v2361
        %v2363 = vpop.f32.mrb[0].mxu0
        %2364 = vmatprep.mubr.bf16.mxu0 0
        %2365 = vmatmul.mubr.bf16.gmra.mrb[0].mxu0 %v696
        %v2366 = vpop.f32.mrb[0].mxu0
        %v2367 = vadd.f32 %v2174, %v2366
        %v2368 = vpop.f32.mrb[0].mxu0
        %v2369 = vpop.f32.mrb[0].mxu0
        %v2370 = vadd.f32 %v2177, %v2369
        %v2371 = vpop.f32.mrb[0].mxu0
        %2372 = vmatprep.mubr.bf16.mxu0 0
        %2373 = vmatmul.mubr.bf16.gmra.mrb[0].mxu0 %v699
        %v2374 = vpop.f32.mrb[0].mxu0
        %v2375 = vadd.f32 %v2182, %v2374
        %v2376 = vpop.f32.mrb[0].mxu0
        %v2377 = vpop.f32.mrb[0].mxu0
        %v2378 = vadd.f32 %v2185, %v2377
        %v2379 = vpop.f32.mrb[0].mxu0
        %2380 = vmatprep.mubr.bf16.mxu0 0
        %2381 = vmatmul.mubr.bf16.gmra.mrb[0].mxu0 %v702
        %v2382 = vpop.f32.mrb[0].mxu0
        %v2383 = vadd.f32 %v2190, %v2382
        %v2384 = vpop.f32.mrb[0].mxu0
        %v2385 = vpop.f32.mrb[0].mxu0
        %v2386 = vadd.f32 %v2193, %v2385
        %v2387 = vpop.f32.mrb[0].mxu0
        %2388 = vmatprep.mubr.bf16.mxu0 0
        %2389 = vmatmul.mubr.bf16.gmra.mrb[0].mxu0 %v705
        %v2390 = vpop.f32.mrb[0].mxu0
        %v2391 = vadd.f32 %v2198, %v2390
        %v2392 = vpop.f32.mrb[0].mxu0
        %v2393 = vpop.f32.mrb[0].mxu0
        %v2394 = vadd.f32 %v2201, %v2393
        %v2395 = vpop.f32.mrb[0].mxu0
        %2396 = vmatprep.mubr.bf16.mxu0 0
        %2397 = vmatmul.mubr.bf16.gmra.mrb[0].mxu0 %v708
        %v2398 = vpop.f32.mrb[0].mxu0
        %v2399 = vadd.f32 %v2206, %v2398
        %v2400 = vpop.f32.mrb[0].mxu0
        %v2401 = vpop.f32.mrb[0].mxu0
        %v2402 = vadd.f32 %v2209, %v2401
        %v2403 = vpop.f32.mrb[0].mxu0
        %2404 = vmatprep.mubr.bf16.mxu0 0
        %2405 = vmatmul.mubr.bf16.gmra.mrb[0].mxu0 %v711
        %v2406 = vpop.f32.mrb[0].mxu0
        %v2407 = vadd.f32 %v2214, %v2406
        %v2408 = vpop.f32.mrb[0].mxu0
        %v2409 = vpop.f32.mrb[0].mxu0
        %v2410 = vadd.f32 %v2217, %v2409
        %v2411 = vpop.f32.mrb[0].mxu0
        %2412 = vmatprep.mubr.bf16.mxu0 0
        %2413 = vmatmul.mubr.bf16.gmra.mrb[0].mxu0 %v714
        %v2414 = vpop.f32.mrb[0].mxu0
        %v2415 = vadd.f32 %v2222, %v2414
        %v2416 = vpop.f32.mrb[0].mxu0
        %v2417 = vpop.f32.mrb[0].mxu0
        %v2418 = vadd.f32 %v2225, %v2417
        %v2419 = vpop.f32.mrb[0].mxu0
        %2420 = vmatprep.mubr.bf16.mxu0 0
        %2421 = vmatmul.mubr.bf16.gmra.mrb[0].mxu0 %v717
        %v2422 = vpop.f32.mrb[0].mxu0
        %v2423 = vadd.f32 %v2230, %v2422
        %v2424 = vpop.f32.mrb[0].mxu0
        %v2425 = vpop.f32.mrb[0].mxu0
        %v2426 = vadd.f32 %v2233, %v2425
        %v2427 = vpop.f32.mrb[0].mxu0
        %2428 = vmatprep.mubr.bf16.mxu0 0
        %2429 = vmatmul.mubr.bf16.gmra.mrb[0].mxu0 %v720
        %v2430 = vpop.f32.mrb[0].mxu0
        %v2431 = vadd.f32 %v2238, %v2430
        %v2432 = vpop.f32.mrb[0].mxu0
        %v2433 = vpop.f32.mrb[0].mxu0
        %v2434 = vadd.f32 %v2241, %v2433
        %v2435 = vpop.f32.mrb[0].mxu0
        %2436 = vmatprep.mubr.bf16.mxu0 0
        %2437 = vmatmul.mubr.bf16.gmra.mrb[0].mxu0 %v723
        %v2438 = vpop.f32.mrb[0].mxu0
        %v2439 = vadd.f32 %v2246, %v2438
        %v2440 = vpop.f32.mrb[0].mxu0
        %v2441 = vpop.f32.mrb[0].mxu0
        %v2442 = vadd.f32 %v2249, %v2441
        %v2443 = vpop.f32.mrb[0].mxu0
        %2444 = vmatprep.mubr.bf16.mxu0 0
        %2445 = vmatmul.mubr.bf16.gmra.mrb[0].mxu0 %v726
        %v2446 = vpop.f32.mrb[0].mxu0
        %v2447 = vadd.f32 %v2254, %v2446
        %v2448 = vpop.f32.mrb[0].mxu0
        %v2449 = vpop.f32.mrb[0].mxu0
        %v2450 = vadd.f32 %v2257, %v2449
        %v2451 = vpop.f32.mrb[0].mxu0
        %2452 = vmatprep.mubr.bf16.mxu0 0
        %2453 = vmatmul.mubr.bf16.gmra.mrb[0].mxu0 %v729
        %v2454 = vpop.f32.mrb[0].mxu0
        %v2455 = vadd.f32 %v2262, %v2454
        %v2456 = vpop.f32.mrb[0].mxu0
        %v2457 = vpop.f32.mrb[0].mxu0
        %v2458 = vadd.f32 %v2265, %v2457
        %v2459 = vpop.f32.mrb[0].mxu0
        %2460 = vmatprep.mubr.bf16.mxu0 0
        %2461 = vmatmul.mubr.bf16.gmra.mrb[0].mxu0 %v732
        %v2462 = vpop.f32.mrb[0].mxu0
        %v2463 = vadd.f32 %v2270, %v2462
        %v2464 = vpop.f32.mrb[0].mxu0
        %v2465 = vpop.f32.mrb[0].mxu0
        %v2466 = vadd.f32 %v2273, %v2465
        %v2467 = vpop.f32.mrb[0].mxu0
        %2468 = vmatprep.mubr.bf16.mxu0 0
        %2469 = vmatmul.mubr.bf16.gmra.mrb[0].mxu0 %v735
        %v2470 = vpop.f32.mrb[0].mxu0
        %v2471 = vadd.f32 %v2278, %v2470
        %v2472 = vpop.f32.mrb[0].mxu0
        %v2473 = vpop.f32.mrb[0].mxu0
        %v2474 = vadd.f32 %v2281, %v2473
        %v2475 = vpop.f32.mrb[0].mxu0
        %2476 = vmatprep.mubr.bf16.mxu0 0
        %2477 = vmatmul.mubr.bf16.gmra.mrb[0].mxu0 %v738
        %v2478 = vpop.f32.mrb[0].mxu0
        %v2479 = vadd.f32 %v2286, %v2478
        %v2480 = vpop.f32.mrb[0].mxu0
        %v2481 = vpop.f32.mrb[0].mxu0
        %v2482 = vadd.f32 %v2289, %v2481
        %v2483 = vpop.f32.mrb[0].mxu0
        %2484 = vmatprep.mubr.bf16.mxu0 0
        %2485 = vmatmul.mubr.bf16.gmra.mrb[0].mxu0 %v741
        %v2486 = vpop.f32.mrb[0].mxu0
        %v2487 = vadd.f32 %v2294, %v2486
        %v2488 = vpop.f32.mrb[0].mxu0
        %v2489 = vpop.f32.mrb[0].mxu0
        %v2490 = vadd.f32 %v2297, %v2489
        %v2491 = vpop.f32.mrb[0].mxu0
        %2492 = vmatprep.mubr.bf16.mxu0 0
        %2493 = vmatmul.mubr.bf16.gmra.mrb[0].mxu0 %v744
        %v2494 = vpop.f32.mrb[0].mxu0
        %v2495 = vadd.f32 %v2302, %v2494
        %v2496 = vpop.f32.mrb[0].mxu0
        %v2497 = vpop.f32.mrb[0].mxu0
        %v2498 = vadd.f32 %v2305, %v2497
        %v2499 = vpop.f32.mrb[0].mxu0
        %2500 = vmatprep.mubr.bf16.mxu0 0
        %2501 = vmatmul.mubr.bf16.gmra.mrb[0].mxu0 %v772
        %v2502 = vpop.f32.mrb[0].mxu0
        %v2503 = vadd.f32 %v2310, %v2502
        %v2504 = vpop.f32.mrb[0].mxu0
        %v2505 = vpop.f32.mrb[0].mxu0
        %v2506 = vadd.f32 %v2313, %v2505
        %v2507 = vpop.f32.mrb[0].mxu0
        %2508 = vdwg.mxu0
        %v2509 = vadd.f32 %v1772, %v2351
        %v2510 = vadd.f32 %v1775, %v2354
        %v2511 = vadd.f32 %v1780, %v2359
        %v2512 = vadd.f32 %v1783, %v2362
        %v2513 = vadd.f32 %v1788, %v2367
        %v2514 = vadd.f32 %v1791, %v2370
        %v2515 = vadd.f32 %v1796, %v2375
        %v2516 = vadd.f32 %v1799, %v2378
        %v2517 = vadd.f32 %v1804, %v2383
        %v2518 = vadd.f32 %v1807, %v2386
        %v2519 = vadd.f32 %v1812, %v2391
        %v2520 = vadd.f32 %v1815, %v2394
        %v2521 = vadd.f32 %v1820, %v2399
        %v2522 = vadd.f32 %v1823, %v2402
        %v2523 = vadd.f32 %v1828, %v2407
        %v2524 = vadd.f32 %v1831, %v2410
        %v2525 = vadd.f32 %v1836, %v2415
        %v2526 = vadd.f32 %v1839, %v2418
        %v2527 = vadd.f32 %v1844, %v2423
        %v2528 = vadd.f32 %v1847, %v2426
        %v2529 = vadd.f32 %v1852, %v2431
        %v2530 = vadd.f32 %v1855, %v2434
        %v2531 = vadd.f32 %v1860, %v2439
        %v2532 = vadd.f32 %v1863, %v2442
        %v2533 = vadd.f32 %v1868, %v2447
        %v2534 = vadd.f32 %v1871, %v2450
        %v2535 = vadd.f32 %v1876, %v2455
        %v2536 = vadd.f32 %v1879, %v2458
        %v2537 = vadd.f32 %v1884, %v2463
        %v2538 = vadd.f32 %v1887, %v2466
        %v2539 = vadd.f32 %v1892, %v2471
        %v2540 = vadd.f32 %v1895, %v2474
        %v2541 = vadd.f32 %v1900, %v2479
        %v2542 = vadd.f32 %v1903, %v2482
        %v2543 = vadd.f32 %v1908, %v2487
        %v2544 = vadd.f32 %v1911, %v2490
        %v2545 = vadd.f32 %v1916, %v2495
        %v2546 = vadd.f32 %v1919, %v2498
        %v2547 = vadd.f32 %v1924, %v2503
        %v2548 = vadd.f32 %v1927, %v2506
        %v2549 = vlaneseq
        %v2550 = vshrl.u32 %v2549, 7
        %v2551 = vadd.s32 %v2550, 8
        %v2552 = vadd.s32 %v2550, 16
        %v2553 = vadd.s32 %v2550, 24
        %v2554 = vadd.s32 %v2550, 32
        %v2555 = vadd.s32 %v2550, 40
        %v2556 = vadd.s32 %v2550, 48
        %v2557 = vadd.s32 %v2550, 56
        %v2558 = vadd.s32 %v2550, 64
        %v2559 = vadd.s32 %v2550, 72
        %v2560 = vadd.s32 %v2550, 80
        %v2561 = vadd.s32 %v2550, 88
        %v2562 = vadd.s32 %v2550, 96
        %v2563 = vadd.s32 %v2550, 104
        %v2564 = vadd.s32 %v2550, 112
        %v2565 = vadd.s32 %v2550, 120
        %v2566 = vadd.s32 %v2550, 128
        %v2567 = vadd.s32 %v2550, 136
        %v2568 = vadd.s32 %v2550, 144
        %v2569 = vadd.s32 %v2550, 152
        %v2570 = vadd.s32 %v2550, 160
        %v2571 = vadd.s32 %v2550, 168
        %v2572 = vadd.s32 %v2550, 176
        %v2573 = vadd.s32 %v2550, 184
        %v2574 = vadd.s32 %v2550, 192
        %v2575 = vadd.s32 %v2550, 200
        %v2576 = vadd.s32 %v2550, 208
        %v2577 = vadd.s32 %v2550, 216
        %v2578 = vadd.s32 %v2550, 224
        %v2579 = vadd.s32 %v2550, 232
        %v2580 = vadd.s32 %v2550, 240
        %v2581 = vadd.s32 %v2550, 248
        %v2582 = vadd.s32 %v2550, 256
        %v2583 = vadd.s32 %v2550, 264
        %v2584 = vadd.s32 %v2550, 272
        %v2585 = vadd.s32 %v2550, 280
        %v2586 = vadd.s32 %v2550, 288
        %v2587 = vadd.s32 %v2550, 296
        %v2588 = vadd.s32 %v2550, 304
        %v2589 = vadd.s32 %v2550, 312
        %s2590 = smul.u32 %s32, 8
        %s2591 = ssub.s32 1, %s2590
        %s2592 = smul.u32 %s2591, 32
        %v2593 = vstv %s2592
        %vm2594 = vcmp.ge.s32.totalorder %v2550, %v2593
        %vm2595 = vcmp.ge.s32.totalorder %v2551, %v2593
        %vm2596 = vcmp.ge.s32.totalorder %v2552, %v2593
        %vm2597 = vcmp.ge.s32.totalorder %v2553, %v2593
        %vm2598 = vcmp.ge.s32.totalorder %v2554, %v2593
        %vm2599 = vcmp.ge.s32.totalorder %v2555, %v2593
        %vm2600 = vcmp.ge.s32.totalorder %v2556, %v2593
        %vm2601 = vcmp.ge.s32.totalorder %v2557, %v2593
        %vm2602 = vcmp.ge.s32.totalorder %v2558, %v2593
        %vm2603 = vcmp.ge.s32.totalorder %v2559, %v2593
        %vm2604 = vcmp.ge.s32.totalorder %v2560, %v2593
        %vm2605 = vcmp.ge.s32.totalorder %v2561, %v2593
        %vm2606 = vcmp.ge.s32.totalorder %v2562, %v2593
        %vm2607 = vcmp.ge.s32.totalorder %v2563, %v2593
        %vm2608 = vcmp.ge.s32.totalorder %v2564, %v2593
        %vm2609 = vcmp.ge.s32.totalorder %v2565, %v2593
        %vm2610 = vcmp.ge.s32.totalorder %v2566, %v2593
        %vm2611 = vcmp.ge.s32.totalorder %v2567, %v2593
        %vm2612 = vcmp.ge.s32.totalorder %v2568, %v2593
        %vm2613 = vcmp.ge.s32.totalorder %v2569, %v2593
        %vm2614 = vcmp.ge.s32.totalorder %v2570, %v2593
        %vm2615 = vcmp.ge.s32.totalorder %v2571, %v2593
        %vm2616 = vcmp.ge.s32.totalorder %v2572, %v2593
        %vm2617 = vcmp.ge.s32.totalorder %v2573, %v2593
        %vm2618 = vcmp.ge.s32.totalorder %v2574, %v2593
        %vm2619 = vcmp.ge.s32.totalorder %v2575, %v2593
        %vm2620 = vcmp.ge.s32.totalorder %v2576, %v2593
        %vm2621 = vcmp.ge.s32.totalorder %v2577, %v2593
        %vm2622 = vcmp.ge.s32.totalorder %v2578, %v2593
        %vm2623 = vcmp.ge.s32.totalorder %v2579, %v2593
        %vm2624 = vcmp.ge.s32.totalorder %v2580, %v2593
        %vm2625 = vcmp.ge.s32.totalorder %v2581, %v2593
        %vm2626 = vcmp.ge.s32.totalorder %v2582, %v2593
        %vm2627 = vcmp.ge.s32.totalorder %v2583, %v2593
        %vm2628 = vcmp.ge.s32.totalorder %v2584, %v2593
        %vm2629 = vcmp.ge.s32.totalorder %v2585, %v2593
        %vm2630 = vcmp.ge.s32.totalorder %v2586, %v2593
        %vm2631 = vcmp.ge.s32.totalorder %v2587, %v2593
        %vm2632 = vcmp.ge.s32.totalorder %v2588, %v2593
        %vm2633 = vcmp.ge.s32.totalorder %v2589, %v2593
        %s2634 = ssub.s32 17, %s2590
        %s2635 = smul.u32 %s2634, 32
        %v2636 = vstv %s2635
        %vm2637 = vcmp.lt.s32.totalorder %v2550, %v2636
        %vm2638 = vcmp.lt.s32.totalorder %v2551, %v2636
        %vm2639 = vcmp.lt.s32.totalorder %v2552, %v2636
        %vm2640 = vcmp.lt.s32.totalorder %v2553, %v2636
        %vm2641 = vcmp.lt.s32.totalorder %v2554, %v2636
        %vm2642 = vcmp.lt.s32.totalorder %v2555, %v2636
        %vm2643 = vcmp.lt.s32.totalorder %v2556, %v2636
        %vm2644 = vcmp.lt.s32.totalorder %v2557, %v2636
        %vm2645 = vcmp.lt.s32.totalorder %v2558, %v2636
        %vm2646 = vcmp.lt.s32.totalorder %v2559, %v2636
        %vm2647 = vcmp.lt.s32.totalorder %v2560, %v2636
        %vm2648 = vcmp.lt.s32.totalorder %v2561, %v2636
        %vm2649 = vcmp.lt.s32.totalorder %v2562, %v2636
        %vm2650 = vcmp.lt.s32.totalorder %v2563, %v2636
        %vm2651 = vcmp.lt.s32.totalorder %v2564, %v2636
        %vm2652 = vcmp.lt.s32.totalorder %v2565, %v2636
        %vm2653 = vcmp.lt.s32.totalorder %v2566, %v2636
        %vm2654 = vcmp.lt.s32.totalorder %v2567, %v2636
        %vm2655 = vcmp.lt.s32.totalorder %v2568, %v2636
        %vm2656 = vcmp.lt.s32.totalorder %v2569, %v2636
        %vm2657 = vcmp.lt.s32.totalorder %v2570, %v2636
        %vm2658 = vcmp.lt.s32.totalorder %v2571, %v2636
        %vm2659 = vcmp.lt.s32.totalorder %v2572, %v2636
        %vm2660 = vcmp.lt.s32.totalorder %v2573, %v2636
        %vm2661 = vcmp.lt.s32.totalorder %v2574, %v2636
        %vm2662 = vcmp.lt.s32.totalorder %v2575, %v2636
        %vm2663 = vcmp.lt.s32.totalorder %v2576, %v2636
        %vm2664 = vcmp.lt.s32.totalorder %v2577, %v2636
        %vm2665 = vcmp.lt.s32.totalorder %v2578, %v2636
        %vm2666 = vcmp.lt.s32.totalorder %v2579, %v2636
        %vm2667 = vcmp.lt.s32.totalorder %v2580, %v2636
        %vm2668 = vcmp.lt.s32.totalorder %v2581, %v2636
        %vm2669 = vcmp.lt.s32.totalorder %v2582, %v2636
        %vm2670 = vcmp.lt.s32.totalorder %v2583, %v2636
        %vm2671 = vcmp.lt.s32.totalorder %v2584, %v2636
        %vm2672 = vcmp.lt.s32.totalorder %v2585, %v2636
        %vm2673 = vcmp.lt.s32.totalorder %v2586, %v2636
        %vm2674 = vcmp.lt.s32.totalorder %v2587, %v2636
        %vm2675 = vcmp.lt.s32.totalorder %v2588, %v2636
        %vm2676 = vcmp.lt.s32.totalorder %v2589, %v2636
        %vm2677 = vmand %vm2594, %vm2637
        %vm2678 = vmand %vm2595, %vm2638
        %vm2679 = vmand %vm2596, %vm2639
        %vm2680 = vmand %vm2597, %vm2640
        %vm2681 = vmand %vm2598, %vm2641
        %vm2682 = vmand %vm2599, %vm2642
        %vm2683 = vmand %vm2600, %vm2643
        %vm2684 = vmand %vm2601, %vm2644
        %vm2685 = vmand %vm2602, %vm2645
        %vm2686 = vmand %vm2603, %vm2646
        %vm2687 = vmand %vm2604, %vm2647
        %vm2688 = vmand %vm2605, %vm2648
        %vm2689 = vmand %vm2606, %vm2649
        %vm2690 = vmand %vm2607, %vm2650
        %vm2691 = vmand %vm2608, %vm2651
        %vm2692 = vmand %vm2609, %vm2652
        %vm2693 = vmand %vm2610, %vm2653
        %vm2694 = vmand %vm2611, %vm2654
        %vm2695 = vmand %vm2612, %vm2655
        %vm2696 = vmand %vm2613, %vm2656
        %vm2697 = vmand %vm2614, %vm2657
        %vm2698 = vmand %vm2615, %vm2658
        %vm2699 = vmand %vm2616, %vm2659
        %vm2700 = vmand %vm2617, %vm2660
        %vm2701 = vmand %vm2618, %vm2661
        %vm2702 = vmand %vm2619, %vm2662
        %vm2703 = vmand %vm2620, %vm2663
        %vm2704 = vmand %vm2621, %vm2664
        %vm2705 = vmand %vm2622, %vm2665
        %vm2706 = vmand %vm2623, %vm2666
        %vm2707 = vmand %vm2624, %vm2667
        %vm2708 = vmand %vm2625, %vm2668
        %vm2709 = vmand %vm2626, %vm2669
        %vm2710 = vmand %vm2627, %vm2670
        %vm2711 = vmand %vm2628, %vm2671
        %vm2712 = vmand %vm2629, %vm2672
        %vm2713 = vmand %vm2630, %vm2673
        %vm2714 = vmand %vm2631, %vm2674
        %vm2715 = vmand %vm2632, %vm2675
        %vm2716 = vmand %vm2633, %vm2676
        %v2717 = vcvt.s32.f32 %v2550
        %v2718 = vcvt.s32.f32 %v2551
        %v2719 = vcvt.s32.f32 %v2552
        %v2720 = vcvt.s32.f32 %v2553
        %v2721 = vcvt.s32.f32 %v2554
        %v2722 = vcvt.s32.f32 %v2555
        %v2723 = vcvt.s32.f32 %v2556
        %v2724 = vcvt.s32.f32 %v2557
        %v2725 = vcvt.s32.f32 %v2558
        %v2726 = vcvt.s32.f32 %v2559
        %v2727 = vcvt.s32.f32 %v2560
        %v2728 = vcvt.s32.f32 %v2561
        %v2729 = vcvt.s32.f32 %v2562
        %v2730 = vcvt.s32.f32 %v2563
        %v2731 = vcvt.s32.f32 %v2564
        %v2732 = vcvt.s32.f32 %v2565
        %v2733 = vcvt.s32.f32 %v2566
        %v2734 = vcvt.s32.f32 %v2567
        %v2735 = vcvt.s32.f32 %v2568
        %v2736 = vcvt.s32.f32 %v2569
        %v2737 = vcvt.s32.f32 %v2570
        %v2738 = vcvt.s32.f32 %v2571
        %v2739 = vcvt.s32.f32 %v2572
        %v2740 = vcvt.s32.f32 %v2573
        %v2741 = vcvt.s32.f32 %v2574
        %v2742 = vcvt.s32.f32 %v2575
        %v2743 = vcvt.s32.f32 %v2576
        %v2744 = vcvt.s32.f32 %v2577
        %v2745 = vcvt.s32.f32 %v2578
        %v2746 = vcvt.s32.f32 %v2579
        %v2747 = vcvt.s32.f32 %v2580
        %v2748 = vcvt.s32.f32 %v2581
        %v2749 = vcvt.s32.f32 %v2582
        %v2750 = vcvt.s32.f32 %v2583
        %v2751 = vcvt.s32.f32 %v2584
        %v2752 = vcvt.s32.f32 %v2585
        %v2753 = vcvt.s32.f32 %v2586
        %v2754 = vcvt.s32.f32 %v2587
        %v2755 = vcvt.s32.f32 %v2588
        %v2756 = vcvt.s32.f32 %v2589
        %v2757 = vadd.f32 %v2717, 0.5
        %v2758 = vadd.f32 %v2718, 0.5
        %v2759 = vadd.f32 %v2719, 0.5
        %v2760 = vadd.f32 %v2720, 0.5
        %v2761 = vadd.f32 %v2721, 0.5
        %v2762 = vadd.f32 %v2722, 0.5
        %v2763 = vadd.f32 %v2723, 0.5
        %v2764 = vadd.f32 %v2724, 0.5
        %v2765 = vadd.f32 %v2725, 0.5
        %v2766 = vadd.f32 %v2726, 0.5
        %v2767 = vadd.f32 %v2727, 0.5
        %v2768 = vadd.f32 %v2728, 0.5
        %v2769 = vadd.f32 %v2729, 0.5
        %v2770 = vadd.f32 %v2730, 0.5
        %v2771 = vadd.f32 %v2731, 0.5
        %v2772 = vadd.f32 %v2732, 0.5
        %v2773 = vadd.f32 %v2733, 0.5
        %v2774 = vadd.f32 %v2734, 0.5
        %v2775 = vadd.f32 %v2735, 0.5
        %v2776 = vadd.f32 %v2736, 0.5
        %v2777 = vadd.f32 %v2737, 0.5
        %v2778 = vadd.f32 %v2738, 0.5
        %v2779 = vadd.f32 %v2739, 0.5
        %v2780 = vadd.f32 %v2740, 0.5
        %v2781 = vadd.f32 %v2741, 0.5
        %v2782 = vadd.f32 %v2742, 0.5
        %v2783 = vadd.f32 %v2743, 0.5
        %v2784 = vadd.f32 %v2744, 0.5
        %v2785 = vadd.f32 %v2745, 0.5
        %v2786 = vadd.f32 %v2746, 0.5
        %v2787 = vadd.f32 %v2747, 0.5
        %v2788 = vadd.f32 %v2748, 0.5
        %v2789 = vadd.f32 %v2749, 0.5
        %v2790 = vadd.f32 %v2750, 0.5
        %v2791 = vadd.f32 %v2751, 0.5
        %v2792 = vadd.f32 %v2752, 0.5
        %v2793 = vadd.f32 %v2753, 0.5
        %v2794 = vadd.f32 %v2754, 0.5
        %v2795 = vadd.f32 %v2755, 0.5
        %v2796 = vadd.f32 %v2756, 0.5
        %v2797 = vmul.f32 %v2757, 0.03125
        %v2798 = vmul.f32 %v2758, 0.03125
        %v2799 = vmul.f32 %v2759, 0.03125
        %v2800 = vmul.f32 %v2760, 0.03125
        %v2801 = vmul.f32 %v2761, 0.03125
        %v2802 = vmul.f32 %v2762, 0.03125
        %v2803 = vmul.f32 %v2763, 0.03125
        %v2804 = vmul.f32 %v2764, 0.03125
        %v2805 = vmul.f32 %v2765, 0.03125
        %v2806 = vmul.f32 %v2766, 0.03125
        %v2807 = vmul.f32 %v2767, 0.03125
        %v2808 = vmul.f32 %v2768, 0.03125
        %v2809 = vmul.f32 %v2769, 0.03125
        %v2810 = vmul.f32 %v2770, 0.03125
        %v2811 = vmul.f32 %v2771, 0.03125
        %v2812 = vmul.f32 %v2772, 0.03125
        %v2813 = vmul.f32 %v2773, 0.03125
        %v2814 = vmul.f32 %v2774, 0.03125
        %v2815 = vmul.f32 %v2775, 0.03125
        %v2816 = vmul.f32 %v2776, 0.03125
        %v2817 = vmul.f32 %v2777, 0.03125
        %v2818 = vmul.f32 %v2778, 0.03125
        %v2819 = vmul.f32 %v2779, 0.03125
        %v2820 = vmul.f32 %v2780, 0.03125
        %v2821 = vmul.f32 %v2781, 0.03125
        %v2822 = vmul.f32 %v2782, 0.03125
        %v2823 = vmul.f32 %v2783, 0.03125
        %v2824 = vmul.f32 %v2784, 0.03125
        %v2825 = vmul.f32 %v2785, 0.03125
        %v2826 = vmul.f32 %v2786, 0.03125
        %v2827 = vmul.f32 %v2787, 0.03125
        %v2828 = vmul.f32 %v2788, 0.03125
        %v2829 = vmul.f32 %v2789, 0.03125
        %v2830 = vmul.f32 %v2790, 0.03125
        %v2831 = vmul.f32 %v2791, 0.03125
        %v2832 = vmul.f32 %v2792, 0.03125
        %v2833 = vmul.f32 %v2793, 0.03125
        %v2834 = vmul.f32 %v2794, 0.03125
        %v2835 = vmul.f32 %v2795, 0.03125
        %v2836 = vmul.f32 %v2796, 0.03125
        %v2837 = vfloor.f32 %v2797
        %v2838 = vfloor.f32 %v2798
        %v2839 = vfloor.f32 %v2799
        %v2840 = vfloor.f32 %v2800
        %v2841 = vfloor.f32 %v2801
        %v2842 = vfloor.f32 %v2802
        %v2843 = vfloor.f32 %v2803
        %v2844 = vfloor.f32 %v2804
        %v2845 = vfloor.f32 %v2805
        %v2846 = vfloor.f32 %v2806
        %v2847 = vfloor.f32 %v2807
        %v2848 = vfloor.f32 %v2808
        %v2849 = vfloor.f32 %v2809
        %v2850 = vfloor.f32 %v2810
        %v2851 = vfloor.f32 %v2811
        %v2852 = vfloor.f32 %v2812
        %v2853 = vfloor.f32 %v2813
        %v2854 = vfloor.f32 %v2814
        %v2855 = vfloor.f32 %v2815
        %v2856 = vfloor.f32 %v2816
        %v2857 = vfloor.f32 %v2817
        %v2858 = vfloor.f32 %v2818
        %v2859 = vfloor.f32 %v2819
        %v2860 = vfloor.f32 %v2820
        %v2861 = vfloor.f32 %v2821
        %v2862 = vfloor.f32 %v2822
        %v2863 = vfloor.f32 %v2823
        %v2864 = vfloor.f32 %v2824
        %v2865 = vfloor.f32 %v2825
        %v2866 = vfloor.f32 %v2826
        %v2867 = vfloor.f32 %v2827
        %v2868 = vfloor.f32 %v2828
        %v2869 = vfloor.f32 %v2829
        %v2870 = vfloor.f32 %v2830
        %v2871 = vfloor.f32 %v2831
        %v2872 = vfloor.f32 %v2832
        %v2873 = vfloor.f32 %v2833
        %v2874 = vfloor.f32 %v2834
        %v2875 = vfloor.f32 %v2835
        %v2876 = vfloor.f32 %v2836
        %v2877 = vmul.f32 %v2837, 32.0
        %v2878 = vmul.f32 %v2838, 32.0
        %v2879 = vmul.f32 %v2839, 32.0
        %v2880 = vmul.f32 %v2840, 32.0
        %v2881 = vmul.f32 %v2841, 32.0
        %v2882 = vmul.f32 %v2842, 32.0
        %v2883 = vmul.f32 %v2843, 32.0
        %v2884 = vmul.f32 %v2844, 32.0
        %v2885 = vmul.f32 %v2845, 32.0
        %v2886 = vmul.f32 %v2846, 32.0
        %v2887 = vmul.f32 %v2847, 32.0
        %v2888 = vmul.f32 %v2848, 32.0
        %v2889 = vmul.f32 %v2849, 32.0
        %v2890 = vmul.f32 %v2850, 32.0
        %v2891 = vmul.f32 %v2851, 32.0
        %v2892 = vmul.f32 %v2852, 32.0
        %v2893 = vmul.f32 %v2853, 32.0
        %v2894 = vmul.f32 %v2854, 32.0
        %v2895 = vmul.f32 %v2855, 32.0
        %v2896 = vmul.f32 %v2856, 32.0
        %v2897 = vmul.f32 %v2857, 32.0
        %v2898 = vmul.f32 %v2858, 32.0
        %v2899 = vmul.f32 %v2859, 32.0
        %v2900 = vmul.f32 %v2860, 32.0
        %v2901 = vmul.f32 %v2861, 32.0
        %v2902 = vmul.f32 %v2862, 32.0
        %v2903 = vmul.f32 %v2863, 32.0
        %v2904 = vmul.f32 %v2864, 32.0
        %v2905 = vmul.f32 %v2865, 32.0
        %v2906 = vmul.f32 %v2866, 32.0
        %v2907 = vmul.f32 %v2867, 32.0
        %v2908 = vmul.f32 %v2868, 32.0
        %v2909 = vmul.f32 %v2869, 32.0
        %v2910 = vmul.f32 %v2870, 32.0
        %v2911 = vmul.f32 %v2871, 32.0
        %v2912 = vmul.f32 %v2872, 32.0
        %v2913 = vmul.f32 %v2873, 32.0
        %v2914 = vmul.f32 %v2874, 32.0
        %v2915 = vmul.f32 %v2875, 32.0
        %v2916 = vmul.f32 %v2876, 32.0
        %v2917 = vsub.f32 %v2717, %v2877
        %v2918 = vsub.f32 %v2718, %v2878
        %v2919 = vsub.f32 %v2719, %v2879
        %v2920 = vsub.f32 %v2720, %v2880
        %v2921 = vsub.f32 %v2721, %v2881
        %v2922 = vsub.f32 %v2722, %v2882
        %v2923 = vsub.f32 %v2723, %v2883
        %v2924 = vsub.f32 %v2724, %v2884
        %v2925 = vsub.f32 %v2725, %v2885
        %v2926 = vsub.f32 %v2726, %v2886
        %v2927 = vsub.f32 %v2727, %v2887
        %v2928 = vsub.f32 %v2728, %v2888
        %v2929 = vsub.f32 %v2729, %v2889
        %v2930 = vsub.f32 %v2730, %v2890
        %v2931 = vsub.f32 %v2731, %v2891
        %v2932 = vsub.f32 %v2732, %v2892
        %v2933 = vsub.f32 %v2733, %v2893
        %v2934 = vsub.f32 %v2734, %v2894
        %v2935 = vsub.f32 %v2735, %v2895
        %v2936 = vsub.f32 %v2736, %v2896
        %v2937 = vsub.f32 %v2737, %v2897
        %v2938 = vsub.f32 %v2738, %v2898
        %v2939 = vsub.f32 %v2739, %v2899
        %v2940 = vsub.f32 %v2740, %v2900
        %v2941 = vsub.f32 %v2741, %v2901
        %v2942 = vsub.f32 %v2742, %v2902
        %v2943 = vsub.f32 %v2743, %v2903
        %v2944 = vsub.f32 %v2744, %v2904
        %v2945 = vsub.f32 %v2745, %v2905
        %v2946 = vsub.f32 %v2746, %v2906
        %v2947 = vsub.f32 %v2747, %v2907
        %v2948 = vsub.f32 %v2748, %v2908
        %v2949 = vsub.f32 %v2749, %v2909
        %v2950 = vsub.f32 %v2750, %v2910
        %v2951 = vsub.f32 %v2751, %v2911
        %v2952 = vsub.f32 %v2752, %v2912
        %v2953 = vsub.f32 %v2753, %v2913
        %v2954 = vsub.f32 %v2754, %v2914
        %v2955 = vsub.f32 %v2755, %v2915
        %v2956 = vsub.f32 %v2756, %v2916
        %vm2957 = vcmp.gt.f32.partialorder %v2917, 0.5
        %vm2958 = vcmp.gt.f32.partialorder %v2918, 0.5
        %vm2959 = vcmp.gt.f32.partialorder %v2919, 0.5
        %vm2960 = vcmp.gt.f32.partialorder %v2920, 0.5
        %vm2961 = vcmp.gt.f32.partialorder %v2921, 0.5
        %vm2962 = vcmp.gt.f32.partialorder %v2922, 0.5
        %vm2963 = vcmp.gt.f32.partialorder %v2923, 0.5
        %vm2964 = vcmp.gt.f32.partialorder %v2924, 0.5
        %vm2965 = vcmp.gt.f32.partialorder %v2925, 0.5
        %vm2966 = vcmp.gt.f32.partialorder %v2926, 0.5
        %vm2967 = vcmp.gt.f32.partialorder %v2927, 0.5
        %vm2968 = vcmp.gt.f32.partialorder %v2928, 0.5
        %vm2969 = vcmp.gt.f32.partialorder %v2929, 0.5
        %vm2970 = vcmp.gt.f32.partialorder %v2930, 0.5
        %vm2971 = vcmp.gt.f32.partialorder %v2931, 0.5
        %vm2972 = vcmp.gt.f32.partialorder %v2932, 0.5
        %vm2973 = vcmp.gt.f32.partialorder %v2933, 0.5
        %vm2974 = vcmp.gt.f32.partialorder %v2934, 0.5
        %vm2975 = vcmp.gt.f32.partialorder %v2935, 0.5
        %vm2976 = vcmp.gt.f32.partialorder %v2936, 0.5
        %vm2977 = vcmp.gt.f32.partialorder %v2937, 0.5
        %vm2978 = vcmp.gt.f32.partialorder %v2938, 0.5
        %vm2979 = vcmp.gt.f32.partialorder %v2939, 0.5
        %vm2980 = vcmp.gt.f32.partialorder %v2940, 0.5
        %vm2981 = vcmp.gt.f32.partialorder %v2941, 0.5
        %vm2982 = vcmp.gt.f32.partialorder %v2942, 0.5
        %vm2983 = vcmp.gt.f32.partialorder %v2943, 0.5
        %vm2984 = vcmp.gt.f32.partialorder %v2944, 0.5
        %vm2985 = vcmp.gt.f32.partialorder %v2945, 0.5
        %vm2986 = vcmp.gt.f32.partialorder %v2946, 0.5
        %vm2987 = vcmp.gt.f32.partialorder %v2947, 0.5
        %vm2988 = vcmp.gt.f32.partialorder %v2948, 0.5
        %vm2989 = vcmp.gt.f32.partialorder %v2949, 0.5
        %vm2990 = vcmp.gt.f32.partialorder %v2950, 0.5
        %vm2991 = vcmp.gt.f32.partialorder %v2951, 0.5
        %vm2992 = vcmp.gt.f32.partialorder %v2952, 0.5
        %vm2993 = vcmp.gt.f32.partialorder %v2953, 0.5
        %vm2994 = vcmp.gt.f32.partialorder %v2954, 0.5
        %vm2995 = vcmp.gt.f32.partialorder %v2955, 0.5
        %vm2996 = vcmp.gt.f32.partialorder %v2956, 0.5
        %vm2997 = vmand %vm2677, %vm2957
        %vm2998 = vmand %vm2678, %vm2958
        %vm2999 = vmand %vm2679, %vm2959
        %vm3000 = vmand %vm2680, %vm2960
        %vm3001 = vmand %vm2681, %vm2961
        %vm3002 = vmand %vm2682, %vm2962
        %vm3003 = vmand %vm2683, %vm2963
        %vm3004 = vmand %vm2684, %vm2964
        %vm3005 = vmand %vm2685, %vm2965
        %vm3006 = vmand %vm2686, %vm2966
        %vm3007 = vmand %vm2687, %vm2967
        %vm3008 = vmand %vm2688, %vm2968
        %vm3009 = vmand %vm2689, %vm2969
        %vm3010 = vmand %vm2690, %vm2970
        %vm3011 = vmand %vm2691, %vm2971
        %vm3012 = vmand %vm2692, %vm2972
        %vm3013 = vmand %vm2693, %vm2973
        %vm3014 = vmand %vm2694, %vm2974
        %vm3015 = vmand %vm2695, %vm2975
        %vm3016 = vmand %vm2696, %vm2976
        %vm3017 = vmand %vm2697, %vm2977
        %vm3018 = vmand %vm2698, %vm2978
        %vm3019 = vmand %vm2699, %vm2979
        %vm3020 = vmand %vm2700, %vm2980
        %vm3021 = vmand %vm2701, %vm2981
        %vm3022 = vmand %vm2702, %vm2982
        %vm3023 = vmand %vm2703, %vm2983
        %vm3024 = vmand %vm2704, %vm2984
        %vm3025 = vmand %vm2705, %vm2985
        %vm3026 = vmand %vm2706, %vm2986
        %vm3027 = vmand %vm2707, %vm2987
        %vm3028 = vmand %vm2708, %vm2988
        %vm3029 = vmand %vm2709, %vm2989
        %vm3030 = vmand %vm2710, %vm2990
        %vm3031 = vmand %vm2711, %vm2991
        %vm3032 = vmand %vm2712, %vm2992
        %vm3033 = vmand %vm2713, %vm2993
        %vm3034 = vmand %vm2714, %vm2994
        %vm3035 = vmand %vm2715, %vm2995
        %vm3036 = vmand %vm2716, %vm2996
        %vm3037 = vcmp.lt.f32.partialorder %v2917, 16.5
        %vm3038 = vcmp.lt.f32.partialorder %v2918, 16.5
        %vm3039 = vcmp.lt.f32.partialorder %v2919, 16.5
        %vm3040 = vcmp.lt.f32.partialorder %v2920, 16.5
        %vm3041 = vcmp.lt.f32.partialorder %v2921, 16.5
        %vm3042 = vcmp.lt.f32.partialorder %v2922, 16.5
        %vm3043 = vcmp.lt.f32.partialorder %v2923, 16.5
        %vm3044 = vcmp.lt.f32.partialorder %v2924, 16.5
        %vm3045 = vcmp.lt.f32.partialorder %v2925, 16.5
        %vm3046 = vcmp.lt.f32.partialorder %v2926, 16.5
        %vm3047 = vcmp.lt.f32.partialorder %v2927, 16.5
        %vm3048 = vcmp.lt.f32.partialorder %v2928, 16.5
        %vm3049 = vcmp.lt.f32.partialorder %v2929, 16.5
        %vm3050 = vcmp.lt.f32.partialorder %v2930, 16.5
        %vm3051 = vcmp.lt.f32.partialorder %v2931, 16.5
        %vm3052 = vcmp.lt.f32.partialorder %v2932, 16.5
        %vm3053 = vcmp.lt.f32.partialorder %v2933, 16.5
        %vm3054 = vcmp.lt.f32.partialorder %v2934, 16.5
        %vm3055 = vcmp.lt.f32.partialorder %v2935, 16.5
        %vm3056 = vcmp.lt.f32.partialorder %v2936, 16.5
        %vm3057 = vcmp.lt.f32.partialorder %v2937, 16.5
        %vm3058 = vcmp.lt.f32.partialorder %v2938, 16.5
        %vm3059 = vcmp.lt.f32.partialorder %v2939, 16.5
        %vm3060 = vcmp.lt.f32.partialorder %v2940, 16.5
        %vm3061 = vcmp.lt.f32.partialorder %v2941, 16.5
        %vm3062 = vcmp.lt.f32.partialorder %v2942, 16.5
        %vm3063 = vcmp.lt.f32.partialorder %v2943, 16.5
        %vm3064 = vcmp.lt.f32.partialorder %v2944, 16.5
        %vm3065 = vcmp.lt.f32.partialorder %v2945, 16.5
        %vm3066 = vcmp.lt.f32.partialorder %v2946, 16.5
        %vm3067 = vcmp.lt.f32.partialorder %v2947, 16.5
        %vm3068 = vcmp.lt.f32.partialorder %v2948, 16.5
        %vm3069 = vcmp.lt.f32.partialorder %v2949, 16.5
        %vm3070 = vcmp.lt.f32.partialorder %v2950, 16.5
        %vm3071 = vcmp.lt.f32.partialorder %v2951, 16.5
        %vm3072 = vcmp.lt.f32.partialorder %v2952, 16.5
        %vm3073 = vcmp.lt.f32.partialorder %v2953, 16.5
        %vm3074 = vcmp.lt.f32.partialorder %v2954, 16.5
        %vm3075 = vcmp.lt.f32.partialorder %v2955, 16.5
        %vm3076 = vcmp.lt.f32.partialorder %v2956, 16.5
        %vm3077 = vmand %vm2997, %vm3037
        %vm3078 = vmand %vm2998, %vm3038
        %vm3079 = vmand %vm2999, %vm3039
        %vm3080 = vmand %vm3000, %vm3040
        %vm3081 = vmand %vm3001, %vm3041
        %vm3082 = vmand %vm3002, %vm3042
        %vm3083 = vmand %vm3003, %vm3043
        %vm3084 = vmand %vm3004, %vm3044
        %vm3085 = vmand %vm3005, %vm3045
        %vm3086 = vmand %vm3006, %vm3046
        %vm3087 = vmand %vm3007, %vm3047
        %vm3088 = vmand %vm3008, %vm3048
        %vm3089 = vmand %vm3009, %vm3049
        %vm3090 = vmand %vm3010, %vm3050
        %vm3091 = vmand %vm3011, %vm3051
        %vm3092 = vmand %vm3012, %vm3052
        %vm3093 = vmand %vm3013, %vm3053
        %vm3094 = vmand %vm3014, %vm3054
        %vm3095 = vmand %vm3015, %vm3055
        %vm3096 = vmand %vm3016, %vm3056
        %vm3097 = vmand %vm3017, %vm3057
        %vm3098 = vmand %vm3018, %vm3058
        %vm3099 = vmand %vm3019, %vm3059
        %vm3100 = vmand %vm3020, %vm3060
        %vm3101 = vmand %vm3021, %vm3061
        %vm3102 = vmand %vm3022, %vm3062
        %vm3103 = vmand %vm3023, %vm3063
        %vm3104 = vmand %vm3024, %vm3064
        %vm3105 = vmand %vm3025, %vm3065
        %vm3106 = vmand %vm3026, %vm3066
        %vm3107 = vmand %vm3027, %vm3067
        %vm3108 = vmand %vm3028, %vm3068
        %vm3109 = vmand %vm3029, %vm3069
        %vm3110 = vmand %vm3030, %vm3070
        %vm3111 = vmand %vm3031, %vm3071
        %vm3112 = vmand %vm3032, %vm3072
        %vm3113 = vmand %vm3033, %vm3073
        %vm3114 = vmand %vm3034, %vm3074
        %vm3115 = vmand %vm3035, %vm3075
        %vm3116 = vmand %vm3036, %vm3076
        %v3117 = vld [vmem:[%s3] sm:$0x1]
        %v3119 = vlaneseq
        %v3120 = vshrl.u32 %v3119, 7
        %v3121 = vsub.s32 0, %v3120
        %v3122 = vrot.slane %v3117, %v3121
        %v3124 = vadd.f32 %v2509, %v3122
        %v3125 = vadd.f32 %v2510, %v3122
        %v3126 = vadd.f32 %v2511, %v3122
        %v3127 = vadd.f32 %v2512, %v3122
        %v3128 = vadd.f32 %v2513, %v3122
        %v3129 = vadd.f32 %v2514, %v3122
        %v3130 = vadd.f32 %v2515, %v3122
        %v3131 = vadd.f32 %v2516, %v3122
        %v3132 = vadd.f32 %v2517, %v3122
        %v3133 = vadd.f32 %v2518, %v3122
        %v3134 = vadd.f32 %v2519, %v3122
        %v3135 = vadd.f32 %v2520, %v3122
        %v3136 = vadd.f32 %v2521, %v3122
        %v3137 = vadd.f32 %v2522, %v3122
        %v3138 = vadd.f32 %v2523, %v3122
        %v3139 = vadd.f32 %v2524, %v3122
        %v3140 = vadd.f32 %v2525, %v3122
        %v3141 = vadd.f32 %v2526, %v3122
        %v3142 = vadd.f32 %v2527, %v3122
        %v3143 = vadd.f32 %v2528, %v3122
        %v3144 = vadd.f32 %v2529, %v3122
        %v3145 = vadd.f32 %v2530, %v3122
        %v3146 = vadd.f32 %v2531, %v3122
        %v3147 = vadd.f32 %v2532, %v3122
        %v3148 = vadd.f32 %v2533, %v3122
        %v3149 = vadd.f32 %v2534, %v3122
        %v3150 = vadd.f32 %v2535, %v3122
        %v3151 = vadd.f32 %v2536, %v3122
        %v3152 = vadd.f32 %v2537, %v3122
        %v3153 = vadd.f32 %v2538, %v3122
        %v3154 = vadd.f32 %v2539, %v3122
        %v3155 = vadd.f32 %v2540, %v3122
        %v3156 = vadd.f32 %v2541, %v3122
        %v3157 = vadd.f32 %v2542, %v3122
        %v3158 = vadd.f32 %v2543, %v3122
        %v3159 = vadd.f32 %v2544, %v3122
        %v3160 = vadd.f32 %v2545, %v3122
        %v3161 = vadd.f32 %v2546, %v3122
        %v3162 = vadd.f32 %v2547, %v3122
        %v3163 = vadd.f32 %v2548, %v3122
        %v3164 = vmax.f32 %v3124, 0.0
        %v3165 = vmax.f32 %v3125, 0.0
        %v3166 = vmax.f32 %v3126, 0.0
        %v3167 = vmax.f32 %v3127, 0.0
        %v3168 = vmax.f32 %v3128, 0.0
        %v3169 = vmax.f32 %v3129, 0.0
        %v3170 = vmax.f32 %v3130, 0.0
        %v3171 = vmax.f32 %v3131, 0.0
        %v3172 = vmax.f32 %v3132, 0.0
        %v3173 = vmax.f32 %v3133, 0.0
        %v3174 = vmax.f32 %v3134, 0.0
        %v3175 = vmax.f32 %v3135, 0.0
        %v3176 = vmax.f32 %v3136, 0.0
        %v3177 = vmax.f32 %v3137, 0.0
        %v3178 = vmax.f32 %v3138, 0.0
        %v3179 = vmax.f32 %v3139, 0.0
        %v3180 = vmax.f32 %v3140, 0.0
        %v3181 = vmax.f32 %v3141, 0.0
        %v3182 = vmax.f32 %v3142, 0.0
        %v3183 = vmax.f32 %v3143, 0.0
        %v3184 = vmax.f32 %v3144, 0.0
        %v3185 = vmax.f32 %v3145, 0.0
        %v3186 = vmax.f32 %v3146, 0.0
        %v3187 = vmax.f32 %v3147, 0.0
        %v3188 = vmax.f32 %v3148, 0.0
        %v3189 = vmax.f32 %v3149, 0.0
        %v3190 = vmax.f32 %v3150, 0.0
        %v3191 = vmax.f32 %v3151, 0.0
        %v3192 = vmax.f32 %v3152, 0.0
        %v3193 = vmax.f32 %v3153, 0.0
        %v3194 = vmax.f32 %v3154, 0.0
        %v3195 = vmax.f32 %v3155, 0.0
        %v3196 = vmax.f32 %v3156, 0.0
        %v3197 = vmax.f32 %v3157, 0.0
        %v3198 = vmax.f32 %v3158, 0.0
        %v3199 = vmax.f32 %v3159, 0.0
        %v3200 = vmax.f32 %v3160, 0.0
        %v3201 = vmax.f32 %v3161, 0.0
        %v3202 = vmax.f32 %v3162, 0.0
        %v3203 = vmax.f32 %v3163, 0.0
        %v3204 = vsel %vm3077, 1, 0
        %v3205 = vsel %vm3078, 1, 0
        %v3206 = vsel %vm3079, 1, 0
        %v3207 = vsel %vm3080, 1, 0
        %v3208 = vsel %vm3081, 1, 0
        %v3209 = vsel %vm3082, 1, 0
        %v3210 = vsel %vm3083, 1, 0
        %v3211 = vsel %vm3084, 1, 0
        %v3212 = vsel %vm3085, 1, 0
        %v3213 = vsel %vm3086, 1, 0
        %v3214 = vsel %vm3087, 1, 0
        %v3215 = vsel %vm3088, 1, 0
        %v3216 = vsel %vm3089, 1, 0
        %v3217 = vsel %vm3090, 1, 0
        %v3218 = vsel %vm3091, 1, 0
        %v3219 = vsel %vm3092, 1, 0
        %v3220 = vsel %vm3093, 1, 0
        %v3221 = vsel %vm3094, 1, 0
        %v3222 = vsel %vm3095, 1, 0
        %v3223 = vsel %vm3096, 1, 0
        %v3224 = vsel %vm3097, 1, 0
        %v3225 = vsel %vm3098, 1, 0
        %v3226 = vsel %vm3099, 1, 0
        %v3227 = vsel %vm3100, 1, 0
        %v3228 = vsel %vm3101, 1, 0
        %v3229 = vsel %vm3102, 1, 0
        %v3230 = vsel %vm3103, 1, 0
        %v3231 = vsel %vm3104, 1, 0
        %v3232 = vsel %vm3105, 1, 0
        %v3233 = vsel %vm3106, 1, 0
        %v3234 = vsel %vm3107, 1, 0
        %v3235 = vsel %vm3108, 1, 0
        %v3236 = vsel %vm3109, 1, 0
        %v3237 = vsel %vm3110, 1, 0
        %v3238 = vsel %vm3111, 1, 0
        %v3239 = vsel %vm3112, 1, 0
        %v3240 = vsel %vm3113, 1, 0
        %v3241 = vsel %vm3114, 1, 0
        %v3242 = vsel %vm3115, 1, 0
        %v3243 = vsel %vm3116, 1, 0
        %vm3244 = vcmp.eq.s32.totalorder %v3204, 1
        %vm3245 = vcmp.eq.s32.totalorder %v3205, 1
        %vm3246 = vcmp.eq.s32.totalorder %v3206, 1
        %vm3247 = vcmp.eq.s32.totalorder %v3207, 1
        %vm3248 = vcmp.eq.s32.totalorder %v3208, 1
        %vm3249 = vcmp.eq.s32.totalorder %v3209, 1
        %vm3250 = vcmp.eq.s32.totalorder %v3210, 1
        %vm3251 = vcmp.eq.s32.totalorder %v3211, 1
        %vm3252 = vcmp.eq.s32.totalorder %v3212, 1
        %vm3253 = vcmp.eq.s32.totalorder %v3213, 1
        %vm3254 = vcmp.eq.s32.totalorder %v3214, 1
        %vm3255 = vcmp.eq.s32.totalorder %v3215, 1
        %vm3256 = vcmp.eq.s32.totalorder %v3216, 1
        %vm3257 = vcmp.eq.s32.totalorder %v3217, 1
        %vm3258 = vcmp.eq.s32.totalorder %v3218, 1
        %vm3259 = vcmp.eq.s32.totalorder %v3219, 1
        %vm3260 = vcmp.eq.s32.totalorder %v3220, 1
        %vm3261 = vcmp.eq.s32.totalorder %v3221, 1
        %vm3262 = vcmp.eq.s32.totalorder %v3222, 1
        %vm3263 = vcmp.eq.s32.totalorder %v3223, 1
        %vm3264 = vcmp.eq.s32.totalorder %v3224, 1
        %vm3265 = vcmp.eq.s32.totalorder %v3225, 1
        %vm3266 = vcmp.eq.s32.totalorder %v3226, 1
        %vm3267 = vcmp.eq.s32.totalorder %v3227, 1
        %vm3268 = vcmp.eq.s32.totalorder %v3228, 1
        %vm3269 = vcmp.eq.s32.totalorder %v3229, 1
        %vm3270 = vcmp.eq.s32.totalorder %v3230, 1
        %vm3271 = vcmp.eq.s32.totalorder %v3231, 1
        %vm3272 = vcmp.eq.s32.totalorder %v3232, 1
        %vm3273 = vcmp.eq.s32.totalorder %v3233, 1
        %vm3274 = vcmp.eq.s32.totalorder %v3234, 1
        %vm3275 = vcmp.eq.s32.totalorder %v3235, 1
        %vm3276 = vcmp.eq.s32.totalorder %v3236, 1
        %vm3277 = vcmp.eq.s32.totalorder %v3237, 1
        %vm3278 = vcmp.eq.s32.totalorder %v3238, 1
        %vm3279 = vcmp.eq.s32.totalorder %v3239, 1
        %vm3280 = vcmp.eq.s32.totalorder %v3240, 1
        %vm3281 = vcmp.eq.s32.totalorder %v3241, 1
        %vm3282 = vcmp.eq.s32.totalorder %v3242, 1
        %vm3283 = vcmp.eq.s32.totalorder %v3243, 1
        %v3284 = vsel %vm3244, %v3164, 0.0
        %v3285 = vsel %vm3245, %v3165, 0.0
        %v3286 = vsel %vm3246, %v3166, 0.0
        %v3287 = vsel %vm3247, %v3167, 0.0
        %v3288 = vsel %vm3248, %v3168, 0.0
        %v3289 = vsel %vm3249, %v3169, 0.0
        %v3290 = vsel %vm3250, %v3170, 0.0
        %v3291 = vsel %vm3251, %v3171, 0.0
        %v3292 = vsel %vm3252, %v3172, 0.0
        %v3293 = vsel %vm3253, %v3173, 0.0
        %v3294 = vsel %vm3254, %v3174, 0.0
        %v3295 = vsel %vm3255, %v3175, 0.0
        %v3296 = vsel %vm3256, %v3176, 0.0
        %v3297 = vsel %vm3257, %v3177, 0.0
        %v3298 = vsel %vm3258, %v3178, 0.0
        %v3299 = vsel %vm3259, %v3179, 0.0
        %v3300 = vsel %vm3260, %v3180, 0.0
        %v3301 = vsel %vm3261, %v3181, 0.0
        %v3302 = vsel %vm3262, %v3182, 0.0
        %v3303 = vsel %vm3263, %v3183, 0.0
        %v3304 = vsel %vm3264, %v3184, 0.0
        %v3305 = vsel %vm3265, %v3185, 0.0
        %v3306 = vsel %vm3266, %v3186, 0.0
        %v3307 = vsel %vm3267, %v3187, 0.0
        %v3308 = vsel %vm3268, %v3188, 0.0
        %v3309 = vsel %vm3269, %v3189, 0.0
        %v3310 = vsel %vm3270, %v3190, 0.0
        %v3311 = vsel %vm3271, %v3191, 0.0
        %v3312 = vsel %vm3272, %v3192, 0.0
        %v3313 = vsel %vm3273, %v3193, 0.0
        %v3314 = vsel %vm3274, %v3194, 0.0
        %v3315 = vsel %vm3275, %v3195, 0.0
        %v3316 = vsel %vm3276, %v3196, 0.0
        %v3317 = vsel %vm3277, %v3197, 0.0
        %v3318 = vsel %vm3278, %v3198, 0.0
        %v3319 = vsel %vm3279, %v3199, 0.0
        %v3320 = vsel %vm3280, %v3200, 0.0
        %v3321 = vsel %vm3281, %v3201, 0.0
        %v3322 = vsel %vm3282, %v3202, 0.0
        %v3323 = vsel %vm3283, %v3203, 0.0
        %v3324 = vpack.c.bf16 %v3285, %v3284
        %v3325 = vpack.c.bf16 %v3287, %v3286
        %v3326 = vpack.c.bf16 %v3289, %v3288
        %v3327 = vpack.c.bf16 %v3291, %v3290
        %v3328 = vpack.c.bf16 %v3293, %v3292
        %v3329 = vpack.c.bf16 %v3295, %v3294
        %v3330 = vpack.c.bf16 %v3297, %v3296
        %v3331 = vpack.c.bf16 %v3299, %v3298
        %v3332 = vpack.c.bf16 %v3301, %v3300
        %v3333 = vpack.c.bf16 %v3303, %v3302
        %v3334 = vpack.c.bf16 %v3305, %v3304
        %v3335 = vpack.c.bf16 %v3307, %v3306
        %v3336 = vpack.c.bf16 %v3309, %v3308
        %v3337 = vpack.c.bf16 %v3311, %v3310
        %v3338 = vpack.c.bf16 %v3313, %v3312
        %v3339 = vpack.c.bf16 %v3315, %v3314
        %v3340 = vpack.c.bf16 %v3317, %v3316
        %v3341 = vpack.c.bf16 %v3319, %v3318
        %v3342 = vpack.c.bf16 %v3321, %v3320
        %v3343 = vpack.c.bf16 %v3323, %v3322
        %v3345 = vshrl.u32 %v3324, 16
        %v3347 = vrot.slane %v3345, 7
        %v3348 = vshll.u32 %v3324, 16
        %v3350 = vor.u32 %v3347, %v3348
        %v3352 = vshrl.u32 %v3325, 16
        %v3354 = vrot.slane %v3352, 7
        %v3355 = vshll.u32 %v3325, 16
        %v3357 = vor.u32 %v3354, %v3355
        %v3358 = vsel %vm455, %v3347, %v3357
        %v3360 = vshrl.u32 %v3326, 16
        %v3362 = vrot.slane %v3360, 7
        %v3363 = vshll.u32 %v3326, 16
        %v3365 = vor.u32 %v3362, %v3363
        %v3366 = vsel %vm455, %v3354, %v3365
        %v3368 = vshrl.u32 %v3327, 16
        %v3370 = vrot.slane %v3368, 7
        %v3371 = vshll.u32 %v3327, 16
        %v3373 = vor.u32 %v3370, %v3371
        %v3374 = vsel %vm455, %v3362, %v3373
        %v3376 = vshrl.u32 %v3328, 16
        %v3378 = vrot.slane %v3376, 7
        %v3379 = vshll.u32 %v3328, 16
        %v3381 = vor.u32 %v3378, %v3379
        %v3382 = vsel %vm455, %v3370, %v3381
        %v3384 = vshrl.u32 %v3329, 16
        %v3386 = vrot.slane %v3384, 7
        %v3387 = vshll.u32 %v3329, 16
        %v3389 = vor.u32 %v3386, %v3387
        %v3390 = vsel %vm455, %v3378, %v3389
        %v3392 = vshrl.u32 %v3330, 16
        %v3394 = vrot.slane %v3392, 7
        %v3395 = vshll.u32 %v3330, 16
        %v3397 = vor.u32 %v3394, %v3395
        %v3398 = vsel %vm455, %v3386, %v3397
        %v3400 = vshrl.u32 %v3331, 16
        %v3402 = vrot.slane %v3400, 7
        %v3403 = vshll.u32 %v3331, 16
        %v3405 = vor.u32 %v3402, %v3403
        %v3406 = vsel %vm455, %v3394, %v3405
        %v3408 = vshrl.u32 %v3332, 16
        %v3410 = vrot.slane %v3408, 7
        %v3411 = vshll.u32 %v3332, 16
        %v3413 = vor.u32 %v3410, %v3411
        %v3414 = vsel %vm455, %v3402, %v3413
        %v3416 = vshrl.u32 %v3333, 16
        %v3418 = vrot.slane %v3416, 7
        %v3419 = vshll.u32 %v3333, 16
        %v3421 = vor.u32 %v3418, %v3419
        %v3422 = vsel %vm455, %v3410, %v3421
        %v3424 = vshrl.u32 %v3334, 16
        %v3426 = vrot.slane %v3424, 7
        %v3427 = vshll.u32 %v3334, 16
        %v3429 = vor.u32 %v3426, %v3427
        %v3430 = vsel %vm455, %v3418, %v3429
        %v3432 = vshrl.u32 %v3335, 16
        %v3434 = vrot.slane %v3432, 7
        %v3435 = vshll.u32 %v3335, 16
        %v3437 = vor.u32 %v3434, %v3435
        %v3438 = vsel %vm455, %v3426, %v3437
        %v3440 = vshrl.u32 %v3336, 16
        %v3442 = vrot.slane %v3440, 7
        %v3443 = vshll.u32 %v3336, 16
        %v3445 = vor.u32 %v3442, %v3443
        %v3446 = vsel %vm455, %v3434, %v3445
        %v3448 = vshrl.u32 %v3337, 16
        %v3450 = vrot.slane %v3448, 7
        %v3451 = vshll.u32 %v3337, 16
        %v3453 = vor.u32 %v3450, %v3451
        %v3454 = vsel %vm455, %v3442, %v3453
        %v3456 = vshrl.u32 %v3338, 16
        %v3458 = vrot.slane %v3456, 7
        %v3459 = vshll.u32 %v3338, 16
        %v3461 = vor.u32 %v3458, %v3459
        %v3462 = vsel %vm455, %v3450, %v3461
        %v3464 = vshrl.u32 %v3339, 16
        %v3466 = vrot.slane %v3464, 7
        %v3467 = vshll.u32 %v3339, 16
        %v3469 = vor.u32 %v3466, %v3467
        %v3470 = vsel %vm455, %v3458, %v3469
        %v3472 = vshrl.u32 %v3340, 16
        %v3474 = vrot.slane %v3472, 7
        %v3475 = vshll.u32 %v3340, 16
        %v3477 = vor.u32 %v3474, %v3475
        %v3478 = vsel %vm455, %v3466, %v3477
        %v3480 = vshrl.u32 %v3341, 16
        %v3482 = vrot.slane %v3480, 7
        %v3483 = vshll.u32 %v3341, 16
        %v3485 = vor.u32 %v3482, %v3483
        %v3486 = vsel %vm455, %v3474, %v3485
        %v3488 = vshrl.u32 %v3342, 16
        %v3490 = vrot.slane %v3488, 7
        %v3491 = vshll.u32 %v3342, 16
        %v3493 = vor.u32 %v3490, %v3491
        %v3494 = vsel %vm455, %v3482, %v3493
        %v3496 = vshrl.u32 %v3343, 16
        %v3498 = vrot.slane %v3496, 7
        %v3499 = vshll.u32 %v3343, 16
        %v3501 = vor.u32 %v3498, %v3499
        %v3502 = vsel %vm455, %v3490, %v3501
        %v3523 = vsel %vm672, 0, %v3350
        %v3524 = vrot.slane %v3348, 1
        %v3525 = vor.u32 %v3345, %v3524
        %v3526 = vrot.slane %v3355, 1
        %v3527 = vsel %vm674, %v3525, %v3526
        %v3528 = vor.u32 %v3352, %v3526
        %v3529 = vrot.slane %v3363, 1
        %v3530 = vsel %vm674, %v3528, %v3529
        %v3531 = vor.u32 %v3360, %v3529
        %v3532 = vrot.slane %v3371, 1
        %v3533 = vsel %vm674, %v3531, %v3532
        %v3534 = vor.u32 %v3368, %v3532
        %v3535 = vrot.slane %v3379, 1
        %v3536 = vsel %vm674, %v3534, %v3535
        %v3537 = vor.u32 %v3376, %v3535
        %v3538 = vrot.slane %v3387, 1
        %v3539 = vsel %vm674, %v3537, %v3538
        %v3540 = vor.u32 %v3384, %v3538
        %v3541 = vrot.slane %v3395, 1
        %v3542 = vsel %vm674, %v3540, %v3541
        %v3543 = vor.u32 %v3392, %v3541
        %v3544 = vrot.slane %v3403, 1
        %v3545 = vsel %vm674, %v3543, %v3544
        %v3546 = vor.u32 %v3400, %v3544
        %v3547 = vrot.slane %v3411, 1
        %v3548 = vsel %vm674, %v3546, %v3547
        %v3549 = vor.u32 %v3408, %v3547
        %v3550 = vrot.slane %v3419, 1
        %v3551 = vsel %vm674, %v3549, %v3550
        %v3552 = vor.u32 %v3416, %v3550
        %v3553 = vrot.slane %v3427, 1
        %v3554 = vsel %vm674, %v3552, %v3553
        %v3555 = vor.u32 %v3424, %v3553
        %v3556 = vrot.slane %v3435, 1
        %v3557 = vsel %vm674, %v3555, %v3556
        %v3558 = vor.u32 %v3432, %v3556
        %v3559 = vrot.slane %v3443, 1
        %v3560 = vsel %vm674, %v3558, %v3559
        %v3561 = vor.u32 %v3440, %v3559
        %v3562 = vrot.slane %v3451, 1
        %v3563 = vsel %vm674, %v3561, %v3562
        %v3564 = vor.u32 %v3448, %v3562
        %v3565 = vrot.slane %v3459, 1
        %v3566 = vsel %vm674, %v3564, %v3565
        %v3567 = vor.u32 %v3456, %v3565
        %v3568 = vrot.slane %v3467, 1
        %v3569 = vsel %vm674, %v3567, %v3568
        %v3570 = vor.u32 %v3464, %v3568
        %v3571 = vrot.slane %v3475, 1
        %v3572 = vsel %vm674, %v3570, %v3571
        %v3573 = vor.u32 %v3472, %v3571
        %v3574 = vrot.slane %v3483, 1
        %v3575 = vsel %vm674, %v3573, %v3574
        %v3576 = vor.u32 %v3480, %v3574
        %v3577 = vrot.slane %v3491, 1
        %v3578 = vsel %vm674, %v3576, %v3577
        %v3579 = vor.u32 %v3488, %v3577
        %v3580 = vrot.slane %v3499, 1
        %v3581 = vsel %vm674, %v3579, %v3580
        %v3582 = vor.u32 %v3496, %v3580
        %v3603 = vsel %vm771, %v3582, 0
        %v3604 = vld [vmem:[#allocation8] sm:$0xf]
        %v3605 = vld [vmem:[#allocation8 + $0x4] sm:$0xf]
        %v3606 = vld [vmem:[#allocation8 + $0x8] sm:$0xf]
        %v3607 = vld [vmem:[#allocation8 + $0xc] sm:$0xf]
        %v3608 = vld [vmem:[#allocation8 + $0x10] sm:$0xf]
        %v3609 = vld [vmem:[#allocation8 + $0x14] sm:$0xf]
        %v3610 = vld [vmem:[#allocation8 + $0x18] sm:$0xf]
        %v3611 = vld [vmem:[#allocation8 + $0x1c] sm:$0xf]
        %v3612 = vld [vmem:[#allocation8 + $0x20] sm:$0xf]
        %v3613 = vld [vmem:[#allocation8 + $0x24] sm:$0xf]
        %v3614 = vld [vmem:[#allocation8 + $0x28] sm:$0xf]
        %v3615 = vld [vmem:[#allocation8 + $0x2c] sm:$0xf]
        %v3616 = vld [vmem:[#allocation8 + $0x30] sm:$0xf]
        %v3617 = vld [vmem:[#allocation8 + $0x34] sm:$0xf]
        %v3618 = vld [vmem:[#allocation8 + $0x38] sm:$0xf]
        %v3619 = vld [vmem:[#allocation8 + $0x3c] sm:$0xf]
        %v3620 = vld [vmem:[#allocation8 + $0x40] sm:$0xf]
        %v3621 = vld [vmem:[#allocation8 + $0x44] sm:$0xf]
        %v3622 = vld [vmem:[#allocation8 + $0x48] sm:$0xf]
        %v3623 = vld [vmem:[#allocation8 + $0x4c] sm:$0xf]
        %v3624 = vld [vmem:[#allocation8 + $0x50] sm:$0xf]
        %v3625 = vld [vmem:[#allocation8 + $0x54] sm:$0xf]
        %v3626 = vld [vmem:[#allocation8 + $0x58] sm:$0xf]
        %v3627 = vld [vmem:[#allocation8 + $0x5c] sm:$0xf]
        %v3628 = vld [vmem:[#allocation8 + $0x60] sm:$0xf]
        %v3629 = vld [vmem:[#allocation8 + $0x64] sm:$0xf]
        %v3630 = vld [vmem:[#allocation8 + $0x68] sm:$0xf]
        %v3631 = vld [vmem:[#allocation8 + $0x6c] sm:$0xf]
        %v3632 = vld [vmem:[#allocation8 + $0x70] sm:$0xf]
        %v3633 = vld [vmem:[#allocation8 + $0x74] sm:$0xf]
        %v3634 = vld [vmem:[#allocation8 + $0x78] sm:$0xf]
        %v3635 = vld [vmem:[#allocation8 + $0x7c] sm:$0xf]
        %v3636 = vld [vmem:[#allocation8 + $0x80] sm:$0xf]
        %v3637 = vld [vmem:[#allocation8 + $0x84] sm:$0xf]
        %v3638 = vld [vmem:[#allocation8 + $0x88] sm:$0xf]
        %v3639 = vld [vmem:[#allocation8 + $0x8c] sm:$0xf]
        %v3640 = vld [vmem:[#allocation8 + $0x90] sm:$0xf]
        %v3641 = vld [vmem:[#allocation8 + $0x94] sm:$0xf]
        %v3642 = vld [vmem:[#allocation8 + $0x98] sm:$0xf]
        %v3643 = vld [vmem:[#allocation8 + $0x9c] sm:$0xf]
        %v3644 = vld [vmem:[#allocation8 + $0xa0] sm:$0xf]
        %v3645 = vld [vmem:[#allocation8 + $0xa4] sm:$0xf]
        %v3646 = vld [vmem:[#allocation8 + $0xa8] sm:$0xf]
        %v3647 = vld [vmem:[#allocation8 + $0xac] sm:$0xf]
        %v3648 = vld [vmem:[#allocation8 + $0xb0] sm:$0xf]
        %v3649 = vld [vmem:[#allocation8 + $0xb4] sm:$0xf]
        %v3650 = vld [vmem:[#allocation8 + $0xb8] sm:$0xf]
        %v3651 = vld [vmem:[#allocation8 + $0xbc] sm:$0xf]
        %s3652 = scalar_lea.vmem [#allocation8], 192
        %v3653 = vld [vmem:[%s3652] sm:$0xf]
        %v3654 = vld [vmem:[%s3652 + $0x4] sm:$0xf]
        %v3655 = vld [vmem:[%s3652 + $0x8] sm:$0xf]
        %v3656 = vld [vmem:[%s3652 + $0xc] sm:$0xf]
        %v3657 = vld [vmem:[%s3652 + $0x10] sm:$0xf]
        %v3658 = vld [vmem:[%s3652 + $0x14] sm:$0xf]
        %v3659 = vld [vmem:[%s3652 + $0x18] sm:$0xf]
        %v3660 = vld [vmem:[%s3652 + $0x1c] sm:$0xf]
        %v3661 = vld [vmem:[%s3652 + $0x20] sm:$0xf]
        %v3662 = vld [vmem:[%s3652 + $0x24] sm:$0xf]
        %v3663 = vld [vmem:[%s3652 + $0x28] sm:$0xf]
        %v3664 = vld [vmem:[%s3652 + $0x2c] sm:$0xf]
        %v3665 = vld [vmem:[%s3652 + $0x30] sm:$0xf]
        %v3666 = vld [vmem:[%s3652 + $0x34] sm:$0xf]
        %v3667 = vld [vmem:[%s3652 + $0x38] sm:$0xf]
        %v3668 = vld [vmem:[%s3652 + $0x3c] sm:$0xf]
        %v3669 = vld [vmem:[%s3652 + $0x40] sm:$0xf]
        %v3670 = vld [vmem:[%s3652 + $0x44] sm:$0xf]
        %v3671 = vld [vmem:[%s3652 + $0x48] sm:$0xf]
        %v3672 = vld [vmem:[%s3652 + $0x4c] sm:$0xf]
        %v3673 = vld [vmem:[%s3652 + $0x50] sm:$0xf]
        %v3674 = vld [vmem:[%s3652 + $0x54] sm:$0xf]
        %v3675 = vld [vmem:[%s3652 + $0x58] sm:$0xf]
        %v3676 = vld [vmem:[%s3652 + $0x5c] sm:$0xf]
        %v3677 = vld [vmem:[%s3652 + $0x60] sm:$0xf]
        %v3678 = vld [vmem:[%s3652 + $0x64] sm:$0xf]
        %v3679 = vld [vmem:[%s3652 + $0x68] sm:$0xf]
        %v3680 = vld [vmem:[%s3652 + $0x6c] sm:$0xf]
        %v3681 = vld [vmem:[%s3652 + $0x70] sm:$0xf]
        %v3682 = vld [vmem:[%s3652 + $0x74] sm:$0xf]
        %v3683 = vld [vmem:[%s3652 + $0x78] sm:$0xf]
        %v3684 = vld [vmem:[%s3652 + $0x7c] sm:$0xf]
        %v3685 = vld [vmem:[%s3652 + $0x80] sm:$0xf]
        %v3686 = vld [vmem:[%s3652 + $0x84] sm:$0xf]
        %v3687 = vld [vmem:[%s3652 + $0x88] sm:$0xf]
        %v3688 = vld [vmem:[%s3652 + $0x8c] sm:$0xf]
        %v3689 = vld [vmem:[%s3652 + $0x90] sm:$0xf]
        %v3690 = vld [vmem:[%s3652 + $0x94] sm:$0xf]
        %v3691 = vld [vmem:[%s3652 + $0x98] sm:$0xf]
        %v3692 = vld [vmem:[%s3652 + $0x9c] sm:$0xf]
        %v3693 = vld [vmem:[%s3652 + $0xa0] sm:$0xf]
        %v3694 = vld [vmem:[%s3652 + $0xa4] sm:$0xf]
        %v3695 = vld [vmem:[%s3652 + $0xa8] sm:$0xf]
        %v3696 = vld [vmem:[%s3652 + $0xac] sm:$0xf]
        %v3697 = vld [vmem:[%s3652 + $0xb0] sm:$0xf]
        %v3698 = vld [vmem:[%s3652 + $0xb4] sm:$0xf]
        %v3699 = vld [vmem:[%s3652 + $0xb8] sm:$0xf]
        %v3700 = vld [vmem:[%s3652 + $0xbc] sm:$0xf]
        %v3749 = vunpack.c.l.b16 %v3653
        %v3750 = vunpack.c.l.b16 %v3654
        %v3751 = vunpack.c.l.b16 %v3655
        %v3752 = vunpack.c.l.b16 %v3656
        %v3753 = vunpack.c.l.b16 %v3657
        %v3754 = vunpack.c.l.b16 %v3658
        %v3755 = vunpack.c.l.b16 %v3659
        %v3756 = vunpack.c.l.b16 %v3660
        %v3757 = vunpack.c.l.b16 %v3661
        %v3758 = vunpack.c.l.b16 %v3662
        %v3759 = vunpack.c.l.b16 %v3663
        %v3760 = vunpack.c.l.b16 %v3664
        %v3761 = vunpack.c.l.b16 %v3665
        %v3762 = vunpack.c.l.b16 %v3666
        %v3763 = vunpack.c.l.b16 %v3667
        %v3764 = vunpack.c.l.b16 %v3668
        %v3765 = vunpack.c.l.b16 %v3669
        %v3766 = vunpack.c.l.b16 %v3670
        %v3767 = vunpack.c.l.b16 %v3671
        %v3768 = vunpack.c.l.b16 %v3672
        %v3769 = vunpack.c.l.b16 %v3673
        %v3770 = vunpack.c.l.b16 %v3674
        %v3771 = vunpack.c.l.b16 %v3675
        %v3772 = vunpack.c.l.b16 %v3676
        %v3773 = vunpack.c.l.b16 %v3677
        %v3774 = vunpack.c.l.b16 %v3678
        %v3775 = vunpack.c.l.b16 %v3679
        %v3776 = vunpack.c.l.b16 %v3680
        %v3777 = vunpack.c.l.b16 %v3681
        %v3778 = vunpack.c.l.b16 %v3682
        %v3779 = vunpack.c.l.b16 %v3683
        %v3780 = vunpack.c.l.b16 %v3684
        %v3781 = vunpack.c.l.b16 %v3685
        %v3782 = vunpack.c.l.b16 %v3686
        %v3783 = vunpack.c.l.b16 %v3687
        %v3784 = vunpack.c.l.b16 %v3688
        %v3785 = vunpack.c.l.b16 %v3689
        %v3786 = vunpack.c.l.b16 %v3690
        %v3787 = vunpack.c.l.b16 %v3691
        %v3788 = vunpack.c.l.b16 %v3692
        %v3789 = vunpack.c.l.b16 %v3693
        %v3790 = vunpack.c.l.b16 %v3694
        %v3791 = vunpack.c.l.b16 %v3695
        %v3792 = vunpack.c.l.b16 %v3696
        %v3793 = vunpack.c.l.b16 %v3697
        %v3794 = vunpack.c.l.b16 %v3698
        %v3795 = vunpack.c.l.b16 %v3699
        %v3796 = vunpack.c.l.b16 %v3700
        %v3797 = vpack.c.b16 %v3750, %v3749
        %v3798 = vpack.c.b16 %v3752, %v3751
        %v3799 = vpack.c.b16 %v3754, %v3753
        %v3800 = vpack.c.b16 %v3756, %v3755
        %v3801 = vpack.c.b16 %v3758, %v3757
        %v3802 = vpack.c.b16 %v3760, %v3759
        %v3803 = vpack.c.b16 %v3762, %v3761
        %v3804 = vpack.c.b16 %v3764, %v3763
        %v3805 = vpack.c.b16 %v3766, %v3765
        %v3806 = vpack.c.b16 %v3768, %v3767
        %v3807 = vpack.c.b16 %v3770, %v3769
        %v3808 = vpack.c.b16 %v3772, %v3771
        %v3809 = vpack.c.b16 %v3774, %v3773
        %v3810 = vpack.c.b16 %v3776, %v3775
        %v3811 = vpack.c.b16 %v3778, %v3777
        %v3812 = vpack.c.b16 %v3780, %v3779
        %v3813 = vpack.c.b16 %v3782, %v3781
        %v3814 = vpack.c.b16 %v3784, %v3783
        %v3815 = vpack.c.b16 %v3786, %v3785
        %v3816 = vpack.c.b16 %v3788, %v3787
        %v3817 = vpack.c.b16 %v3790, %v3789
        %v3818 = vpack.c.b16 %v3792, %v3791
        %v3819 = vpack.c.b16 %v3794, %v3793
        %v3820 = vpack.c.b16 %v3796, %v3795
        %3845 = vmatprep.subr.bf16.mxu0 0
        %3846 = vmatpush1.bf16.msra.mxu0 %v3797
        %3847 = vmatprep.subr.bf16.mxu0 0
        %3848 = vmatpush1.bf16.msra.mxu0 %v3798
        %3849 = vmatprep.subr.bf16.mxu0 0
        %3850 = vmatpush1.bf16.msra.mxu0 %v3799
        %3851 = vmatprep.subr.bf16.mxu0 0
        %3852 = vmatpush1.bf16.msra.mxu0 %v3800
        %3853 = vmatprep.subr.bf16.mxu0 0
        %3854 = vmatpush1.bf16.msra.mxu0 %v3801
        %3855 = vmatprep.subr.bf16.mxu0 0
        %3856 = vmatpush1.bf16.msra.mxu0 %v3802
        %3857 = vmatprep.subr.bf16.mxu0 0
        %3858 = vmatpush1.bf16.msra.mxu0 %v3803
        %3859 = vmatprep.subr.bf16.mxu0 0
        %3860 = vmatpush1.bf16.msra.mxu0 %v3804
        %3861 = vmatprep.subr.bf16.mxu0 0
        %3862 = vmatpush1.bf16.msra.mxu0 %v3805
        %3863 = vmatprep.subr.bf16.mxu0 0
        %3864 = vmatpush1.bf16.msra.mxu0 %v3806
        %3865 = vmatprep.subr.bf16.mxu0 0
        %3866 = vmatpush1.bf16.msra.mxu0 %v3807
        %3867 = vmatprep.subr.bf16.mxu0 0
        %3868 = vmatpush1.bf16.msra.mxu0 %v3808
        %3869 = vmatprep.subr.bf16.mxu0 0
        %3870 = vmatpush1.bf16.msra.mxu0 %v3809
        %3871 = vmatprep.subr.bf16.mxu0 0
        %3872 = vmatpush1.bf16.msra.mxu0 %v3810
        %3873 = vmatprep.subr.bf16.mxu0 0
        %3874 = vmatpush1.bf16.msra.mxu0 %v3811
        %3875 = vmatprep.subr.bf16.mxu0 0
        %3876 = vmatpush1.bf16.msra.mxu0 %v3812
        %3877 = vmatprep.mubr.bf16.mxu0 %v3326
        %3878 = vmatmul.mubr.bf16.gmra.mrb[0].mxu0 %v3366
        %v3879 = vpop.f32.mrb[0].mxu0
        %v3880 = vadd.f32 0.0, %v3879
        %v3881 = vpop.f32.mrb[0].mxu0
        %v3882 = vpop.f32.mrb[0].mxu0
        %v3883 = vadd.f32 0.0, %v3882
        %v3884 = vpop.f32.mrb[0].mxu0
        %3885 = vmatprep.mubr.bf16.mxu0 %v3327
        %3886 = vmatmul.mubr.bf16.gmra.mrb[0].mxu0 %v3374
        %v3887 = vpop.f32.mrb[0].mxu0
        %v3888 = vadd.f32 0.0, %v3887
        %v3889 = vpop.f32.mrb[0].mxu0
        %v3890 = vpop.f32.mrb[0].mxu0
        %v3891 = vadd.f32 0.0, %v3890
        %v3892 = vpop.f32.mrb[0].mxu0
        %3893 = vmatprep.mubr.bf16.mxu0 %v3328
        %3894 = vmatmul.mubr.bf16.gmra.mrb[0].mxu0 %v3382
        %v3895 = vpop.f32.mrb[0].mxu0
        %v3896 = vadd.f32 0.0, %v3895
        %v3897 = vpop.f32.mrb[0].mxu0
        %v3898 = vpop.f32.mrb[0].mxu0
        %v3899 = vadd.f32 0.0, %v3898
        %v3900 = vpop.f32.mrb[0].mxu0
        %3901 = vmatprep.mubr.bf16.mxu0 %v3329
        %3902 = vmatmul.mubr.bf16.gmra.mrb[0].mxu0 %v3390
        %v3903 = vpop.f32.mrb[0].mxu0
        %v3904 = vadd.f32 0.0, %v3903
        %v3905 = vpop.f32.mrb[0].mxu0
        %v3906 = vpop.f32.mrb[0].mxu0
        %v3907 = vadd.f32 0.0, %v3906
        %v3908 = vpop.f32.mrb[0].mxu0
        %3909 = vmatprep.mubr.bf16.mxu0 %v3330
        %3910 = vmatmul.mubr.bf16.gmra.mrb[0].mxu0 %v3398
        %v3911 = vpop.f32.mrb[0].mxu0
        %v3912 = vadd.f32 0.0, %v3911
        %v3913 = vpop.f32.mrb[0].mxu0
        %v3914 = vpop.f32.mrb[0].mxu0
        %v3915 = vadd.f32 0.0, %v3914
        %v3916 = vpop.f32.mrb[0].mxu0
        %3917 = vmatprep.mubr.bf16.mxu0 %v3331
        %3918 = vmatmul.mubr.bf16.gmra.mrb[0].mxu0 %v3406
        %v3919 = vpop.f32.mrb[0].mxu0
        %v3920 = vadd.f32 0.0, %v3919
        %v3921 = vpop.f32.mrb[0].mxu0
        %v3922 = vpop.f32.mrb[0].mxu0
        %v3923 = vadd.f32 0.0, %v3922
        %v3924 = vpop.f32.mrb[0].mxu0
        %3925 = vmatprep.mubr.bf16.mxu0 %v3332
        %3926 = vmatmul.mubr.bf16.gmra.mrb[0].mxu0 %v3414
        %v3927 = vpop.f32.mrb[0].mxu0
        %v3928 = vadd.f32 0.0, %v3927
        %v3929 = vpop.f32.mrb[0].mxu0
        %v3930 = vpop.f32.mrb[0].mxu0
        %v3931 = vadd.f32 0.0, %v3930
        %v3932 = vpop.f32.mrb[0].mxu0
        %3933 = vmatprep.mubr.bf16.mxu0 %v3333
        %3934 = vmatmul.mubr.bf16.gmra.mrb[0].mxu0 %v3422
        %v3935 = vpop.f32.mrb[0].mxu0
        %v3936 = vadd.f32 0.0, %v3935
        %v3937 = vpop.f32.mrb[0].mxu0
        %v3938 = vpop.f32.mrb[0].mxu0
        %v3939 = vadd.f32 0.0, %v3938
        %v3940 = vpop.f32.mrb[0].mxu0
        %3941 = vmatprep.mubr.bf16.mxu0 %v3334
        %3942 = vmatmul.mubr.bf16.gmra.mrb[0].mxu0 %v3430
        %v3943 = vpop.f32.mrb[0].mxu0
        %v3944 = vadd.f32 0.0, %v3943
        %v3945 = vpop.f32.mrb[0].mxu0
        %v3946 = vpop.f32.mrb[0].mxu0
        %v3947 = vadd.f32 0.0, %v3946
        %v3948 = vpop.f32.mrb[0].mxu0
        %3949 = vmatprep.mubr.bf16.mxu0 %v3335
        %3950 = vmatmul.mubr.bf16.gmra.mrb[0].mxu0 %v3438
        %v3951 = vpop.f32.mrb[0].mxu0
        %v3952 = vadd.f32 0.0, %v3951
        %v3953 = vpop.f32.mrb[0].mxu0
        %v3954 = vpop.f32.mrb[0].mxu0
        %v3955 = vadd.f32 0.0, %v3954
        %v3956 = vpop.f32.mrb[0].mxu0
        %3957 = vmatprep.mubr.bf16.mxu0 %v3336
        %3958 = vmatmul.mubr.bf16.gmra.mrb[0].mxu0 %v3446
        %v3959 = vpop.f32.mrb[0].mxu0
        %v3960 = vadd.f32 0.0, %v3959
        %v3961 = vpop.f32.mrb[0].mxu0
        %v3962 = vpop.f32.mrb[0].mxu0
        %v3963 = vadd.f32 0.0, %v3962
        %v3964 = vpop.f32.mrb[0].mxu0
        %3965 = vmatprep.mubr.bf16.mxu0 %v3337
        %3966 = vmatmul.mubr.bf16.gmra.mrb[0].mxu0 %v3454
        %v3967 = vpop.f32.mrb[0].mxu0
        %v3968 = vadd.f32 0.0, %v3967
        %v3969 = vpop.f32.mrb[0].mxu0
        %v3970 = vpop.f32.mrb[0].mxu0
        %v3971 = vadd.f32 0.0, %v3970
        %v3972 = vpop.f32.mrb[0].mxu0
        %3973 = vmatprep.mubr.bf16.mxu0 %v3338
        %3974 = vmatmul.mubr.bf16.gmra.mrb[0].mxu0 %v3462
        %v3975 = vpop.f32.mrb[0].mxu0
        %v3976 = vadd.f32 0.0, %v3975
        %v3977 = vpop.f32.mrb[0].mxu0
        %v3978 = vpop.f32.mrb[0].mxu0
        %v3979 = vadd.f32 0.0, %v3978
        %v3980 = vpop.f32.mrb[0].mxu0
        %3981 = vmatprep.mubr.bf16.mxu0 %v3339
        %3982 = vmatmul.mubr.bf16.gmra.mrb[0].mxu0 %v3470
        %v3983 = vpop.f32.mrb[0].mxu0
        %v3984 = vadd.f32 0.0, %v3983
        %v3985 = vpop.f32.mrb[0].mxu0
        %v3986 = vpop.f32.mrb[0].mxu0
        %v3987 = vadd.f32 0.0, %v3986
        %v3988 = vpop.f32.mrb[0].mxu0
        %3989 = vmatprep.mubr.bf16.mxu0 %v3340
        %3990 = vmatmul.mubr.bf16.gmra.mrb[0].mxu0 %v3478
        %v3991 = vpop.f32.mrb[0].mxu0
        %v3992 = vadd.f32 0.0, %v3991
        %v3993 = vpop.f32.mrb[0].mxu0
        %v3994 = vpop.f32.mrb[0].mxu0
        %v3995 = vadd.f32 0.0, %v3994
        %v3996 = vpop.f32.mrb[0].mxu0
        %3997 = vmatprep.mubr.bf16.mxu0 %v3341
        %3998 = vmatmul.mubr.bf16.gmra.mrb[0].mxu0 %v3486
        %v3999 = vpop.f32.mrb[0].mxu0
        %v4000 = vadd.f32 0.0, %v3999
        %v4001 = vpop.f32.mrb[0].mxu0
        %v4002 = vpop.f32.mrb[0].mxu0
        %v4003 = vadd.f32 0.0, %v4002
        %v4004 = vpop.f32.mrb[0].mxu0
        %4005 = vdwg.mxu0
        %4006 = vmatprep.subr.bf16.mxu0 0
        %4007 = vmatpush1.bf16.msra.mxu0 %v3813
        %4008 = vmatprep.subr.bf16.mxu0 0
        %4009 = vmatpush1.bf16.msra.mxu0 %v3814
        %4010 = vmatprep.subr.bf16.mxu0 0
        %4011 = vmatpush1.bf16.msra.mxu0 %v3815
        %4012 = vmatprep.subr.bf16.mxu0 0
        %4013 = vmatpush1.bf16.msra.mxu0 %v3816
        %4014 = vmatprep.subr.bf16.mxu0 0
        %4015 = vmatpush1.bf16.msra.mxu0 %v3817
        %4016 = vmatprep.subr.bf16.mxu0 0
        %4017 = vmatpush1.bf16.msra.mxu0 %v3818
        %4018 = vmatprep.subr.bf16.mxu0 0
        %4019 = vmatpush1.bf16.msra.mxu0 %v3819
        %4020 = vmatprep.subr.bf16.mxu0 0
        %4021 = vmatpush1.bf16.msra.mxu0 %v3820
        %4022 = vmatprep.subr.bf16.mxu0 0
        %4023 = vmatpush1.bf16.msra.mxu0 0
        %4024 = vmatprep.subr.bf16.mxu0 0
        %4025 = vmatpush1.bf16.msra.mxu0 0
        %4026 = vmatprep.subr.bf16.mxu0 0
        %4027 = vmatpush1.bf16.msra.mxu0 0
        %4028 = vmatprep.subr.bf16.mxu0 0
        %4029 = vmatpush1.bf16.msra.mxu0 0
        %4030 = vmatprep.subr.bf16.mxu0 0
        %4031 = vmatpush1.bf16.msra.mxu0 0
        %4032 = vmatprep.subr.bf16.mxu0 0
        %4033 = vmatpush1.bf16.msra.mxu0 0
        %4034 = vmatprep.subr.bf16.mxu0 0
        %4035 = vmatpush1.bf16.msra.mxu0 0
        %4036 = vmatprep.subr.bf16.mxu0 0
        %4037 = vmatpush1.bf16.msra.mxu0 0
        %4038 = vmatprep.mubr.bf16.mxu0 0
        %4039 = vmatmul.mubr.bf16.gmra.mrb[0].mxu0 %v3533
        %v4040 = vpop.f32.mrb[0].mxu0
        %v4041 = vadd.f32 %v3880, %v4040
        %v4042 = vpop.f32.mrb[0].mxu0
        %v4043 = vpop.f32.mrb[0].mxu0
        %v4044 = vadd.f32 %v3883, %v4043
        %v4045 = vpop.f32.mrb[0].mxu0
        %4046 = vmatprep.mubr.bf16.mxu0 0
        %4047 = vmatmul.mubr.bf16.gmra.mrb[0].mxu0 %v3536
        %v4048 = vpop.f32.mrb[0].mxu0
        %v4049 = vadd.f32 %v3888, %v4048
        %v4050 = vpop.f32.mrb[0].mxu0
        %v4051 = vpop.f32.mrb[0].mxu0
        %v4052 = vadd.f32 %v3891, %v4051
        %v4053 = vpop.f32.mrb[0].mxu0
        %4054 = vmatprep.mubr.bf16.mxu0 0
        %4055 = vmatmul.mubr.bf16.gmra.mrb[0].mxu0 %v3539
        %v4056 = vpop.f32.mrb[0].mxu0
        %v4057 = vadd.f32 %v3896, %v4056
        %v4058 = vpop.f32.mrb[0].mxu0
        %v4059 = vpop.f32.mrb[0].mxu0
        %v4060 = vadd.f32 %v3899, %v4059
        %v4061 = vpop.f32.mrb[0].mxu0
        %4062 = vmatprep.mubr.bf16.mxu0 0
        %4063 = vmatmul.mubr.bf16.gmra.mrb[0].mxu0 %v3542
        %v4064 = vpop.f32.mrb[0].mxu0
        %v4065 = vadd.f32 %v3904, %v4064
        %v4066 = vpop.f32.mrb[0].mxu0
        %v4067 = vpop.f32.mrb[0].mxu0
        %v4068 = vadd.f32 %v3907, %v4067
        %v4069 = vpop.f32.mrb[0].mxu0
        %4070 = vmatprep.mubr.bf16.mxu0 0
        %4071 = vmatmul.mubr.bf16.gmra.mrb[0].mxu0 %v3545
        %v4072 = vpop.f32.mrb[0].mxu0
        %v4073 = vadd.f32 %v3912, %v4072
        %v4074 = vpop.f32.mrb[0].mxu0
        %v4075 = vpop.f32.mrb[0].mxu0
        %v4076 = vadd.f32 %v3915, %v4075
        %v4077 = vpop.f32.mrb[0].mxu0
        %4078 = vmatprep.mubr.bf16.mxu0 0
        %4079 = vmatmul.mubr.bf16.gmra.mrb[0].mxu0 %v3548
        %v4080 = vpop.f32.mrb[0].mxu0
        %v4081 = vadd.f32 %v3920, %v4080
        %v4082 = vpop.f32.mrb[0].mxu0
        %v4083 = vpop.f32.mrb[0].mxu0
        %v4084 = vadd.f32 %v3923, %v4083
        %v4085 = vpop.f32.mrb[0].mxu0
        %4086 = vmatprep.mubr.bf16.mxu0 0
        %4087 = vmatmul.mubr.bf16.gmra.mrb[0].mxu0 %v3551
        %v4088 = vpop.f32.mrb[0].mxu0
        %v4089 = vadd.f32 %v3928, %v4088
        %v4090 = vpop.f32.mrb[0].mxu0
        %v4091 = vpop.f32.mrb[0].mxu0
        %v4092 = vadd.f32 %v3931, %v4091
        %v4093 = vpop.f32.mrb[0].mxu0
        %4094 = vmatprep.mubr.bf16.mxu0 0
        %4095 = vmatmul.mubr.bf16.gmra.mrb[0].mxu0 %v3554
        %v4096 = vpop.f32.mrb[0].mxu0
        %v4097 = vadd.f32 %v3936, %v4096
        %v4098 = vpop.f32.mrb[0].mxu0
        %v4099 = vpop.f32.mrb[0].mxu0
        %v4100 = vadd.f32 %v3939, %v4099
        %v4101 = vpop.f32.mrb[0].mxu0
        %4102 = vmatprep.mubr.bf16.mxu0 0
        %4103 = vmatmul.mubr.bf16.gmra.mrb[0].mxu0 %v3557
        %v4104 = vpop.f32.mrb[0].mxu0
        %v4105 = vadd.f32 %v3944, %v4104
        %v4106 = vpop.f32.mrb[0].mxu0
        %v4107 = vpop.f32.mrb[0].mxu0
        %v4108 = vadd.f32 %v3947, %v4107
        %v4109 = vpop.f32.mrb[0].mxu0
        %4110 = vmatprep.mubr.bf16.mxu0 0
        %4111 = vmatmul.mubr.bf16.gmra.mrb[0].mxu0 %v3560
        %v4112 = vpop.f32.mrb[0].mxu0
        %v4113 = vadd.f32 %v3952, %v4112
        %v4114 = vpop.f32.mrb[0].mxu0
        %v4115 = vpop.f32.mrb[0].mxu0
        %v4116 = vadd.f32 %v3955, %v4115
        %v4117 = vpop.f32.mrb[0].mxu0
        %4118 = vmatprep.mubr.bf16.mxu0 0
        %4119 = vmatmul.mubr.bf16.gmra.mrb[0].mxu0 %v3563
        %v4120 = vpop.f32.mrb[0].mxu0
        %v4121 = vadd.f32 %v3960, %v4120
        %v4122 = vpop.f32.mrb[0].mxu0
        %v4123 = vpop.f32.mrb[0].mxu0
        %v4124 = vadd.f32 %v3963, %v4123
        %v4125 = vpop.f32.mrb[0].mxu0
        %4126 = vmatprep.mubr.bf16.mxu0 0
        %4127 = vmatmul.mubr.bf16.gmra.mrb[0].mxu0 %v3566
        %v4128 = vpop.f32.mrb[0].mxu0
        %v4129 = vadd.f32 %v3968, %v4128
        %v4130 = vpop.f32.mrb[0].mxu0
        %v4131 = vpop.f32.mrb[0].mxu0
        %v4132 = vadd.f32 %v3971, %v4131
        %v4133 = vpop.f32.mrb[0].mxu0
        %4134 = vmatprep.mubr.bf16.mxu0 0
        %4135 = vmatmul.mubr.bf16.gmra.mrb[0].mxu0 %v3569
        %v4136 = vpop.f32.mrb[0].mxu0
        %v4137 = vadd.f32 %v3976, %v4136
        %v4138 = vpop.f32.mrb[0].mxu0
        %v4139 = vpop.f32.mrb[0].mxu0
        %v4140 = vadd.f32 %v3979, %v4139
        %v4141 = vpop.f32.mrb[0].mxu0
        %4142 = vmatprep.mubr.bf16.mxu0 0
        %4143 = vmatmul.mubr.bf16.gmra.mrb[0].mxu0 %v3572
        %v4144 = vpop.f32.mrb[0].mxu0
        %v4145 = vadd.f32 %v3984, %v4144
        %v4146 = vpop.f32.mrb[0].mxu0
        %v4147 = vpop.f32.mrb[0].mxu0
        %v4148 = vadd.f32 %v3987, %v4147
        %v4149 = vpop.f32.mrb[0].mxu0
        %4150 = vmatprep.mubr.bf16.mxu0 0
        %4151 = vmatmul.mubr.bf16.gmra.mrb[0].mxu0 %v3575
        %v4152 = vpop.f32.mrb[0].mxu0
        %v4153 = vadd.f32 %v3992, %v4152
        %v4154 = vpop.f32.mrb[0].mxu0
        %v4155 = vpop.f32.mrb[0].mxu0
        %v4156 = vadd.f32 %v3995, %v4155
        %v4157 = vpop.f32.mrb[0].mxu0
        %4158 = vmatprep.mubr.bf16.mxu0 0
        %4159 = vmatmul.mubr.bf16.gmra.mrb[0].mxu0 %v3578
        %v4160 = vpop.f32.mrb[0].mxu0
        %v4161 = vadd.f32 %v4000, %v4160
        %v4162 = vpop.f32.mrb[0].mxu0
        %v4163 = vpop.f32.mrb[0].mxu0
        %v4164 = vadd.f32 %v4003, %v4163
        %v4165 = vpop.f32.mrb[0].mxu0
        %4166 = vdwg.mxu0
        %v4215 = vunpack.c.l.b16 %v3604
        %v4216 = vunpack.c.l.b16 %v3605
        %v4217 = vunpack.c.l.b16 %v3606
        %v4218 = vunpack.c.l.b16 %v3607
        %v4219 = vunpack.c.l.b16 %v3608
        %v4220 = vunpack.c.l.b16 %v3609
        %v4221 = vunpack.c.l.b16 %v3610
        %v4222 = vunpack.c.l.b16 %v3611
        %v4223 = vunpack.c.l.b16 %v3612
        %v4224 = vunpack.c.l.b16 %v3613
        %v4225 = vunpack.c.l.b16 %v3614
        %v4226 = vunpack.c.l.b16 %v3615
        %v4227 = vunpack.c.l.b16 %v3616
        %v4228 = vunpack.c.l.b16 %v3617
        %v4229 = vunpack.c.l.b16 %v3618
        %v4230 = vunpack.c.l.b16 %v3619
        %v4231 = vunpack.c.l.b16 %v3620
        %v4232 = vunpack.c.l.b16 %v3621
        %v4233 = vunpack.c.l.b16 %v3622
        %v4234 = vunpack.c.l.b16 %v3623
        %v4235 = vunpack.c.l.b16 %v3624
        %v4236 = vunpack.c.l.b16 %v3625
        %v4237 = vunpack.c.l.b16 %v3626
        %v4238 = vunpack.c.l.b16 %v3627
        %v4239 = vunpack.c.l.b16 %v3628
        %v4240 = vunpack.c.l.b16 %v3629
        %v4241 = vunpack.c.l.b16 %v3630
        %v4242 = vunpack.c.l.b16 %v3631
        %v4243 = vunpack.c.l.b16 %v3632
        %v4244 = vunpack.c.l.b16 %v3633
        %v4245 = vunpack.c.l.b16 %v3634
        %v4246 = vunpack.c.l.b16 %v3635
        %v4247 = vunpack.c.l.b16 %v3636
        %v4248 = vunpack.c.l.b16 %v3637
        %v4249 = vunpack.c.l.b16 %v3638
        %v4250 = vunpack.c.l.b16 %v3639
        %v4251 = vunpack.c.l.b16 %v3640
        %v4252 = vunpack.c.l.b16 %v3641
        %v4253 = vunpack.c.l.b16 %v3642
        %v4254 = vunpack.c.l.b16 %v3643
        %v4255 = vunpack.c.l.b16 %v3644
        %v4256 = vunpack.c.l.b16 %v3645
        %v4257 = vunpack.c.l.b16 %v3646
        %v4258 = vunpack.c.l.b16 %v3647
        %v4259 = vunpack.c.l.b16 %v3648
        %v4260 = vunpack.c.l.b16 %v3649
        %v4261 = vunpack.c.l.b16 %v3650
        %v4262 = vunpack.c.l.b16 %v3651
        %v4263 = vpack.c.b16 %v4216, %v4215
        %v4264 = vpack.c.b16 %v4218, %v4217
        %v4265 = vpack.c.b16 %v4220, %v4219
        %v4266 = vpack.c.b16 %v4222, %v4221
        %v4267 = vpack.c.b16 %v4224, %v4223
        %v4268 = vpack.c.b16 %v4226, %v4225
        %v4269 = vpack.c.b16 %v4228, %v4227
        %v4270 = vpack.c.b16 %v4230, %v4229
        %v4271 = vpack.c.b16 %v4232, %v4231
        %v4272 = vpack.c.b16 %v4234, %v4233
        %v4273 = vpack.c.b16 %v4236, %v4235
        %v4274 = vpack.c.b16 %v4238, %v4237
        %v4275 = vpack.c.b16 %v4240, %v4239
        %v4276 = vpack.c.b16 %v4242, %v4241
        %v4277 = vpack.c.b16 %v4244, %v4243
        %v4278 = vpack.c.b16 %v4246, %v4245
        %v4279 = vpack.c.b16 %v4248, %v4247
        %v4280 = vpack.c.b16 %v4250, %v4249
        %v4281 = vpack.c.b16 %v4252, %v4251
        %v4282 = vpack.c.b16 %v4254, %v4253
        %v4283 = vpack.c.b16 %v4256, %v4255
        %v4284 = vpack.c.b16 %v4258, %v4257
        %v4285 = vpack.c.b16 %v4260, %v4259
        %v4286 = vpack.c.b16 %v4262, %v4261
        %4311 = vmatprep.subr.bf16.mxu0 0
        %4312 = vmatpush1.bf16.msra.mxu0 %v4263
        %4313 = vmatprep.subr.bf16.mxu0 0
        %4314 = vmatpush1.bf16.msra.mxu0 %v4264
        %4315 = vmatprep.subr.bf16.mxu0 0
        %4316 = vmatpush1.bf16.msra.mxu0 %v4265
        %4317 = vmatprep.subr.bf16.mxu0 0
        %4318 = vmatpush1.bf16.msra.mxu0 %v4266
        %4319 = vmatprep.subr.bf16.mxu0 0
        %4320 = vmatpush1.bf16.msra.mxu0 %v4267
        %4321 = vmatprep.subr.bf16.mxu0 0
        %4322 = vmatpush1.bf16.msra.mxu0 %v4268
        %4323 = vmatprep.subr.bf16.mxu0 0
        %4324 = vmatpush1.bf16.msra.mxu0 %v4269
        %4325 = vmatprep.subr.bf16.mxu0 0
        %4326 = vmatpush1.bf16.msra.mxu0 %v4270
        %4327 = vmatprep.subr.bf16.mxu0 0
        %4328 = vmatpush1.bf16.msra.mxu0 %v4271
        %4329 = vmatprep.subr.bf16.mxu0 0
        %4330 = vmatpush1.bf16.msra.mxu0 %v4272
        %4331 = vmatprep.subr.bf16.mxu0 0
        %4332 = vmatpush1.bf16.msra.mxu0 %v4273
        %4333 = vmatprep.subr.bf16.mxu0 0
        %4334 = vmatpush1.bf16.msra.mxu0 %v4274
        %4335 = vmatprep.subr.bf16.mxu0 0
        %4336 = vmatpush1.bf16.msra.mxu0 %v4275
        %4337 = vmatprep.subr.bf16.mxu0 0
        %4338 = vmatpush1.bf16.msra.mxu0 %v4276
        %4339 = vmatprep.subr.bf16.mxu0 0
        %4340 = vmatpush1.bf16.msra.mxu0 %v4277
        %4341 = vmatprep.subr.bf16.mxu0 0
        %4342 = vmatpush1.bf16.msra.mxu0 %v4278
        %4343 = vmatprep.mubr.bf16.mxu0 %v3324
        %4344 = vmatmul.mubr.bf16.gmra.mrb[0].mxu0 %v3523
        %v4345 = vpop.f32.mrb[0].mxu0
        %v4346 = vadd.f32 %v4041, %v4345
        %v4347 = vpop.f32.mrb[0].mxu0
        %v4348 = vpop.f32.mrb[0].mxu0
        %v4349 = vadd.f32 %v4044, %v4348
        %v4350 = vpop.f32.mrb[0].mxu0
        %4351 = vmatprep.mubr.bf16.mxu0 %v3325
        %4352 = vmatmul.mubr.bf16.gmra.mrb[0].mxu0 %v3358
        %v4353 = vpop.f32.mrb[0].mxu0
        %v4354 = vadd.f32 %v4049, %v4353
        %v4355 = vpop.f32.mrb[0].mxu0
        %v4356 = vpop.f32.mrb[0].mxu0
        %v4357 = vadd.f32 %v4052, %v4356
        %v4358 = vpop.f32.mrb[0].mxu0
        %4359 = vmatprep.mubr.bf16.mxu0 %v3326
        %4360 = vmatmul.mubr.bf16.gmra.mrb[0].mxu0 %v3366
        %v4361 = vpop.f32.mrb[0].mxu0
        %v4362 = vadd.f32 %v4057, %v4361
        %v4363 = vpop.f32.mrb[0].mxu0
        %v4364 = vpop.f32.mrb[0].mxu0
        %v4365 = vadd.f32 %v4060, %v4364
        %v4366 = vpop.f32.mrb[0].mxu0
        %4367 = vmatprep.mubr.bf16.mxu0 %v3327
        %4368 = vmatmul.mubr.bf16.gmra.mrb[0].mxu0 %v3374
        %v4369 = vpop.f32.mrb[0].mxu0
        %v4370 = vadd.f32 %v4065, %v4369
        %v4371 = vpop.f32.mrb[0].mxu0
        %v4372 = vpop.f32.mrb[0].mxu0
        %v4373 = vadd.f32 %v4068, %v4372
        %v4374 = vpop.f32.mrb[0].mxu0
        %4375 = vmatprep.mubr.bf16.mxu0 %v3328
        %4376 = vmatmul.mubr.bf16.gmra.mrb[0].mxu0 %v3382
        %v4377 = vpop.f32.mrb[0].mxu0
        %v4378 = vadd.f32 %v4073, %v4377
        %v4379 = vpop.f32.mrb[0].mxu0
        %v4380 = vpop.f32.mrb[0].mxu0
        %v4381 = vadd.f32 %v4076, %v4380
        %v4382 = vpop.f32.mrb[0].mxu0
        %4383 = vmatprep.mubr.bf16.mxu0 %v3329
        %4384 = vmatmul.mubr.bf16.gmra.mrb[0].mxu0 %v3390
        %v4385 = vpop.f32.mrb[0].mxu0
        %v4386 = vadd.f32 %v4081, %v4385
        %v4387 = vpop.f32.mrb[0].mxu0
        %v4388 = vpop.f32.mrb[0].mxu0
        %v4389 = vadd.f32 %v4084, %v4388
        %v4390 = vpop.f32.mrb[0].mxu0
        %4391 = vmatprep.mubr.bf16.mxu0 %v3330
        %4392 = vmatmul.mubr.bf16.gmra.mrb[0].mxu0 %v3398
        %v4393 = vpop.f32.mrb[0].mxu0
        %v4394 = vadd.f32 %v4089, %v4393
        %v4395 = vpop.f32.mrb[0].mxu0
        %v4396 = vpop.f32.mrb[0].mxu0
        %v4397 = vadd.f32 %v4092, %v4396
        %v4398 = vpop.f32.mrb[0].mxu0
        %4399 = vmatprep.mubr.bf16.mxu0 %v3331
        %4400 = vmatmul.mubr.bf16.gmra.mrb[0].mxu0 %v3406
        %v4401 = vpop.f32.mrb[0].mxu0
        %v4402 = vadd.f32 %v4097, %v4401
        %v4403 = vpop.f32.mrb[0].mxu0
        %v4404 = vpop.f32.mrb[0].mxu0
        %v4405 = vadd.f32 %v4100, %v4404
        %v4406 = vpop.f32.mrb[0].mxu0
        %4407 = vmatprep.mubr.bf16.mxu0 %v3332
        %4408 = vmatmul.mubr.bf16.gmra.mrb[0].mxu0 %v3414
        %v4409 = vpop.f32.mrb[0].mxu0
        %v4410 = vadd.f32 %v4105, %v4409
        %v4411 = vpop.f32.mrb[0].mxu0
        %v4412 = vpop.f32.mrb[0].mxu0
        %v4413 = vadd.f32 %v4108, %v4412
        %v4414 = vpop.f32.mrb[0].mxu0
        %4415 = vmatprep.mubr.bf16.mxu0 %v3333
        %4416 = vmatmul.mubr.bf16.gmra.mrb[0].mxu0 %v3422
        %v4417 = vpop.f32.mrb[0].mxu0
        %v4418 = vadd.f32 %v4113, %v4417
        %v4419 = vpop.f32.mrb[0].mxu0
        %v4420 = vpop.f32.mrb[0].mxu0
        %v4421 = vadd.f32 %v4116, %v4420
        %v4422 = vpop.f32.mrb[0].mxu0
        %4423 = vmatprep.mubr.bf16.mxu0 %v3334
        %4424 = vmatmul.mubr.bf16.gmra.mrb[0].mxu0 %v3430
        %v4425 = vpop.f32.mrb[0].mxu0
        %v4426 = vadd.f32 %v4121, %v4425
        %v4427 = vpop.f32.mrb[0].mxu0
        %v4428 = vpop.f32.mrb[0].mxu0
        %v4429 = vadd.f32 %v4124, %v4428
        %v4430 = vpop.f32.mrb[0].mxu0
        %4431 = vmatprep.mubr.bf16.mxu0 %v3335
        %4432 = vmatmul.mubr.bf16.gmra.mrb[0].mxu0 %v3438
        %v4433 = vpop.f32.mrb[0].mxu0
        %v4434 = vadd.f32 %v4129, %v4433
        %v4435 = vpop.f32.mrb[0].mxu0
        %v4436 = vpop.f32.mrb[0].mxu0
        %v4437 = vadd.f32 %v4132, %v4436
        %v4438 = vpop.f32.mrb[0].mxu0
        %4439 = vmatprep.mubr.bf16.mxu0 %v3336
        %4440 = vmatmul.mubr.bf16.gmra.mrb[0].mxu0 %v3446
        %v4441 = vpop.f32.mrb[0].mxu0
        %v4442 = vadd.f32 %v4137, %v4441
        %v4443 = vpop.f32.mrb[0].mxu0
        %v4444 = vpop.f32.mrb[0].mxu0
        %v4445 = vadd.f32 %v4140, %v4444
        %v4446 = vpop.f32.mrb[0].mxu0
        %4447 = vmatprep.mubr.bf16.mxu0 %v3337
        %4448 = vmatmul.mubr.bf16.gmra.mrb[0].mxu0 %v3454
        %v4449 = vpop.f32.mrb[0].mxu0
        %v4450 = vadd.f32 %v4145, %v4449
        %v4451 = vpop.f32.mrb[0].mxu0
        %v4452 = vpop.f32.mrb[0].mxu0
        %v4453 = vadd.f32 %v4148, %v4452
        %v4454 = vpop.f32.mrb[0].mxu0
        %4455 = vmatprep.mubr.bf16.mxu0 %v3338
        %4456 = vmatmul.mubr.bf16.gmra.mrb[0].mxu0 %v3462
        %v4457 = vpop.f32.mrb[0].mxu0
        %v4458 = vadd.f32 %v4153, %v4457
        %v4459 = vpop.f32.mrb[0].mxu0
        %v4460 = vpop.f32.mrb[0].mxu0
        %v4461 = vadd.f32 %v4156, %v4460
        %v4462 = vpop.f32.mrb[0].mxu0
        %4463 = vmatprep.mubr.bf16.mxu0 %v3339
        %4464 = vmatmul.mubr.bf16.gmra.mrb[0].mxu0 %v3470
        %v4465 = vpop.f32.mrb[0].mxu0
        %v4466 = vadd.f32 %v4161, %v4465
        %v4467 = vpop.f32.mrb[0].mxu0
        %v4468 = vpop.f32.mrb[0].mxu0
        %v4469 = vadd.f32 %v4164, %v4468
        %v4470 = vpop.f32.mrb[0].mxu0
        %4471 = vdwg.mxu0
        %4472 = vmatprep.subr.bf16.mxu0 0
        %4473 = vmatpush1.bf16.msra.mxu0 %v4279
        %4474 = vmatprep.subr.bf16.mxu0 0
        %4475 = vmatpush1.bf16.msra.mxu0 %v4280
        %4476 = vmatprep.subr.bf16.mxu0 0
        %4477 = vmatpush1.bf16.msra.mxu0 %v4281
        %4478 = vmatprep.subr.bf16.mxu0 0
        %4479 = vmatpush1.bf16.msra.mxu0 %v4282
        %4480 = vmatprep.subr.bf16.mxu0 0
        %4481 = vmatpush1.bf16.msra.mxu0 %v4283
        %4482 = vmatprep.subr.bf16.mxu0 0
        %4483 = vmatpush1.bf16.msra.mxu0 %v4284
        %4484 = vmatprep.subr.bf16.mxu0 0
        %4485 = vmatpush1.bf16.msra.mxu0 %v4285
        %4486 = vmatprep.subr.bf16.mxu0 0
        %4487 = vmatpush1.bf16.msra.mxu0 %v4286
        %4488 = vmatprep.subr.bf16.mxu0 0
        %4489 = vmatpush1.bf16.msra.mxu0 0
        %4490 = vmatprep.subr.bf16.mxu0 0
        %4491 = vmatpush1.bf16.msra.mxu0 0
        %4492 = vmatprep.subr.bf16.mxu0 0
        %4493 = vmatpush1.bf16.msra.mxu0 0
        %4494 = vmatprep.subr.bf16.mxu0 0
        %4495 = vmatpush1.bf16.msra.mxu0 0
        %4496 = vmatprep.subr.bf16.mxu0 0
        %4497 = vmatpush1.bf16.msra.mxu0 0
        %4498 = vmatprep.subr.bf16.mxu0 0
        %4499 = vmatpush1.bf16.msra.mxu0 0
        %4500 = vmatprep.subr.bf16.mxu0 0
        %4501 = vmatpush1.bf16.msra.mxu0 0
        %4502 = vmatprep.subr.bf16.mxu0 0
        %4503 = vmatpush1.bf16.msra.mxu0 0
        %4504 = vmatprep.mubr.bf16.mxu0 0
        %4505 = vmatmul.mubr.bf16.gmra.mrb[0].mxu0 %v3527
        %v4506 = vpop.f32.mrb[0].mxu0
        %v4507 = vadd.f32 %v4346, %v4506
        %v4508 = vpop.f32.mrb[0].mxu0
        %v4509 = vpop.f32.mrb[0].mxu0
        %v4510 = vadd.f32 %v4349, %v4509
        %v4511 = vpop.f32.mrb[0].mxu0
        %4512 = vmatprep.mubr.bf16.mxu0 0
        %4513 = vmatmul.mubr.bf16.gmra.mrb[0].mxu0 %v3530
        %v4514 = vpop.f32.mrb[0].mxu0
        %v4515 = vadd.f32 %v4354, %v4514
        %v4516 = vpop.f32.mrb[0].mxu0
        %v4517 = vpop.f32.mrb[0].mxu0
        %v4518 = vadd.f32 %v4357, %v4517
        %v4519 = vpop.f32.mrb[0].mxu0
        %4520 = vmatprep.mubr.bf16.mxu0 0
        %4521 = vmatmul.mubr.bf16.gmra.mrb[0].mxu0 %v3533
        %v4522 = vpop.f32.mrb[0].mxu0
        %v4523 = vadd.f32 %v4362, %v4522
        %v4524 = vpop.f32.mrb[0].mxu0
        %v4525 = vpop.f32.mrb[0].mxu0
        %v4526 = vadd.f32 %v4365, %v4525
        %v4527 = vpop.f32.mrb[0].mxu0
        %4528 = vmatprep.mubr.bf16.mxu0 0
        %4529 = vmatmul.mubr.bf16.gmra.mrb[0].mxu0 %v3536
        %v4530 = vpop.f32.mrb[0].mxu0
        %v4531 = vadd.f32 %v4370, %v4530
        %v4532 = vpop.f32.mrb[0].mxu0
        %v4533 = vpop.f32.mrb[0].mxu0
        %v4534 = vadd.f32 %v4373, %v4533
        %v4535 = vpop.f32.mrb[0].mxu0
        %4536 = vmatprep.mubr.bf16.mxu0 0
        %4537 = vmatmul.mubr.bf16.gmra.mrb[0].mxu0 %v3539
        %v4538 = vpop.f32.mrb[0].mxu0
        %v4539 = vadd.f32 %v4378, %v4538
        %v4540 = vpop.f32.mrb[0].mxu0
        %v4541 = vpop.f32.mrb[0].mxu0
        %v4542 = vadd.f32 %v4381, %v4541
        %v4543 = vpop.f32.mrb[0].mxu0
        %4544 = vmatprep.mubr.bf16.mxu0 0
        %4545 = vmatmul.mubr.bf16.gmra.mrb[0].mxu0 %v3542
        %v4546 = vpop.f32.mrb[0].mxu0
        %v4547 = vadd.f32 %v4386, %v4546
        %v4548 = vpop.f32.mrb[0].mxu0
        %v4549 = vpop.f32.mrb[0].mxu0
        %v4550 = vadd.f32 %v4389, %v4549
        %v4551 = vpop.f32.mrb[0].mxu0
        %4552 = vmatprep.mubr.bf16.mxu0 0
        %4553 = vmatmul.mubr.bf16.gmra.mrb[0].mxu0 %v3545
        %v4554 = vpop.f32.mrb[0].mxu0
        %v4555 = vadd.f32 %v4394, %v4554
        %v4556 = vpop.f32.mrb[0].mxu0
        %v4557 = vpop.f32.mrb[0].mxu0
        %v4558 = vadd.f32 %v4397, %v4557
        %v4559 = vpop.f32.mrb[0].mxu0
        %4560 = vmatprep.mubr.bf16.mxu0 0
        %4561 = vmatmul.mubr.bf16.gmra.mrb[0].mxu0 %v3548
        %v4562 = vpop.f32.mrb[0].mxu0
        %v4563 = vadd.f32 %v4402, %v4562
        %v4564 = vpop.f32.mrb[0].mxu0
        %v4565 = vpop.f32.mrb[0].mxu0
        %v4566 = vadd.f32 %v4405, %v4565
        %v4567 = vpop.f32.mrb[0].mxu0
        %4568 = vmatprep.mubr.bf16.mxu0 0
        %4569 = vmatmul.mubr.bf16.gmra.mrb[0].mxu0 %v3551
        %v4570 = vpop.f32.mrb[0].mxu0
        %v4571 = vadd.f32 %v4410, %v4570
        %v4572 = vpop.f32.mrb[0].mxu0
        %v4573 = vpop.f32.mrb[0].mxu0
        %v4574 = vadd.f32 %v4413, %v4573
        %v4575 = vpop.f32.mrb[0].mxu0
        %4576 = vmatprep.mubr.bf16.mxu0 0
        %4577 = vmatmul.mubr.bf16.gmra.mrb[0].mxu0 %v3554
        %v4578 = vpop.f32.mrb[0].mxu0
        %v4579 = vadd.f32 %v4418, %v4578
        %v4580 = vpop.f32.mrb[0].mxu0
        %v4581 = vpop.f32.mrb[0].mxu0
        %v4582 = vadd.f32 %v4421, %v4581
        %v4583 = vpop.f32.mrb[0].mxu0
        %4584 = vmatprep.mubr.bf16.mxu0 0
        %4585 = vmatmul.mubr.bf16.gmra.mrb[0].mxu0 %v3557
        %v4586 = vpop.f32.mrb[0].mxu0
        %v4587 = vadd.f32 %v4426, %v4586
        %v4588 = vpop.f32.mrb[0].mxu0
        %v4589 = vpop.f32.mrb[0].mxu0
        %v4590 = vadd.f32 %v4429, %v4589
        %v4591 = vpop.f32.mrb[0].mxu0
        %4592 = vmatprep.mubr.bf16.mxu0 0
        %4593 = vmatmul.mubr.bf16.gmra.mrb[0].mxu0 %v3560
        %v4594 = vpop.f32.mrb[0].mxu0
        %v4595 = vadd.f32 %v4434, %v4594
        %v4596 = vpop.f32.mrb[0].mxu0
        %v4597 = vpop.f32.mrb[0].mxu0
        %v4598 = vadd.f32 %v4437, %v4597
        %v4599 = vpop.f32.mrb[0].mxu0
        %4600 = vmatprep.mubr.bf16.mxu0 0
        %4601 = vmatmul.mubr.bf16.gmra.mrb[0].mxu0 %v3563
        %v4602 = vpop.f32.mrb[0].mxu0
        %v4603 = vadd.f32 %v4442, %v4602
        %v4604 = vpop.f32.mrb[0].mxu0
        %v4605 = vpop.f32.mrb[0].mxu0
        %v4606 = vadd.f32 %v4445, %v4605
        %v4607 = vpop.f32.mrb[0].mxu0
        %4608 = vmatprep.mubr.bf16.mxu0 0
        %4609 = vmatmul.mubr.bf16.gmra.mrb[0].mxu0 %v3566
        %v4610 = vpop.f32.mrb[0].mxu0
        %v4611 = vadd.f32 %v4450, %v4610
        %v4612 = vpop.f32.mrb[0].mxu0
        %v4613 = vpop.f32.mrb[0].mxu0
        %v4614 = vadd.f32 %v4453, %v4613
        %v4615 = vpop.f32.mrb[0].mxu0
        %4616 = vmatprep.mubr.bf16.mxu0 0
        %4617 = vmatmul.mubr.bf16.gmra.mrb[0].mxu0 %v3569
        %v4618 = vpop.f32.mrb[0].mxu0
        %v4619 = vadd.f32 %v4458, %v4618
        %v4620 = vpop.f32.mrb[0].mxu0
        %v4621 = vpop.f32.mrb[0].mxu0
        %v4622 = vadd.f32 %v4461, %v4621
        %v4623 = vpop.f32.mrb[0].mxu0
        %4624 = vmatprep.mubr.bf16.mxu0 0
        %4625 = vmatmul.mubr.bf16.gmra.mrb[0].mxu0 %v3572
        %v4626 = vpop.f32.mrb[0].mxu0
        %v4627 = vadd.f32 %v4466, %v4626
        %v4628 = vpop.f32.mrb[0].mxu0
        %v4629 = vpop.f32.mrb[0].mxu0
        %v4630 = vadd.f32 %v4469, %v4629
        %v4631 = vpop.f32.mrb[0].mxu0
        %4632 = vdwg.mxu0
        %s4633 = scalar_lea.vmem [#allocation8], 384
        %v4634 = vld [vmem:[%s4633] sm:$0xf]
        %v4635 = vld [vmem:[%s4633 + $0x4] sm:$0xf]
        %v4636 = vld [vmem:[%s4633 + $0x8] sm:$0xf]
        %v4637 = vld [vmem:[%s4633 + $0xc] sm:$0xf]
        %v4638 = vld [vmem:[%s4633 + $0x10] sm:$0xf]
        %v4639 = vld [vmem:[%s4633 + $0x14] sm:$0xf]
        %v4640 = vld [vmem:[%s4633 + $0x18] sm:$0xf]
        %v4641 = vld [vmem:[%s4633 + $0x1c] sm:$0xf]
        %v4642 = vld [vmem:[%s4633 + $0x20] sm:$0xf]
        %v4643 = vld [vmem:[%s4633 + $0x24] sm:$0xf]
        %v4644 = vld [vmem:[%s4633 + $0x28] sm:$0xf]
        %v4645 = vld [vmem:[%s4633 + $0x2c] sm:$0xf]
        %v4646 = vld [vmem:[%s4633 + $0x30] sm:$0xf]
        %v4647 = vld [vmem:[%s4633 + $0x34] sm:$0xf]
        %v4648 = vld [vmem:[%s4633 + $0x38] sm:$0xf]
        %v4649 = vld [vmem:[%s4633 + $0x3c] sm:$0xf]
        %v4650 = vld [vmem:[%s4633 + $0x40] sm:$0xf]
        %v4651 = vld [vmem:[%s4633 + $0x44] sm:$0xf]
        %v4652 = vld [vmem:[%s4633 + $0x48] sm:$0xf]
        %v4653 = vld [vmem:[%s4633 + $0x4c] sm:$0xf]
        %v4654 = vld [vmem:[%s4633 + $0x50] sm:$0xf]
        %v4655 = vld [vmem:[%s4633 + $0x54] sm:$0xf]
        %v4656 = vld [vmem:[%s4633 + $0x58] sm:$0xf]
        %v4657 = vld [vmem:[%s4633 + $0x5c] sm:$0xf]
        %v4658 = vld [vmem:[%s4633 + $0x60] sm:$0xf]
        %v4659 = vld [vmem:[%s4633 + $0x64] sm:$0xf]
        %v4660 = vld [vmem:[%s4633 + $0x68] sm:$0xf]
        %v4661 = vld [vmem:[%s4633 + $0x6c] sm:$0xf]
        %v4662 = vld [vmem:[%s4633 + $0x70] sm:$0xf]
        %v4663 = vld [vmem:[%s4633 + $0x74] sm:$0xf]
        %v4664 = vld [vmem:[%s4633 + $0x78] sm:$0xf]
        %v4665 = vld [vmem:[%s4633 + $0x7c] sm:$0xf]
        %v4666 = vld [vmem:[%s4633 + $0x80] sm:$0xf]
        %v4667 = vld [vmem:[%s4633 + $0x84] sm:$0xf]
        %v4668 = vld [vmem:[%s4633 + $0x88] sm:$0xf]
        %v4669 = vld [vmem:[%s4633 + $0x8c] sm:$0xf]
        %v4670 = vld [vmem:[%s4633 + $0x90] sm:$0xf]
        %v4671 = vld [vmem:[%s4633 + $0x94] sm:$0xf]
        %v4672 = vld [vmem:[%s4633 + $0x98] sm:$0xf]
        %v4673 = vld [vmem:[%s4633 + $0x9c] sm:$0xf]
        %v4674 = vld [vmem:[%s4633 + $0xa0] sm:$0xf]
        %v4675 = vld [vmem:[%s4633 + $0xa4] sm:$0xf]
        %v4676 = vld [vmem:[%s4633 + $0xa8] sm:$0xf]
        %v4677 = vld [vmem:[%s4633 + $0xac] sm:$0xf]
        %v4678 = vld [vmem:[%s4633 + $0xb0] sm:$0xf]
        %v4679 = vld [vmem:[%s4633 + $0xb4] sm:$0xf]
        %v4680 = vld [vmem:[%s4633 + $0xb8] sm:$0xf]
        %v4681 = vld [vmem:[%s4633 + $0xbc] sm:$0xf]
        %v4730 = vunpack.c.l.b16 %v4634
        %v4731 = vunpack.c.l.b16 %v4635
        %v4732 = vunpack.c.l.b16 %v4636
        %v4733 = vunpack.c.l.b16 %v4637
        %v4734 = vunpack.c.l.b16 %v4638
        %v4735 = vunpack.c.l.b16 %v4639
        %v4736 = vunpack.c.l.b16 %v4640
        %v4737 = vunpack.c.l.b16 %v4641
        %v4738 = vunpack.c.l.b16 %v4642
        %v4739 = vunpack.c.l.b16 %v4643
        %v4740 = vunpack.c.l.b16 %v4644
        %v4741 = vunpack.c.l.b16 %v4645
        %v4742 = vunpack.c.l.b16 %v4646
        %v4743 = vunpack.c.l.b16 %v4647
        %v4744 = vunpack.c.l.b16 %v4648
        %v4745 = vunpack.c.l.b16 %v4649
        %v4746 = vunpack.c.l.b16 %v4650
        %v4747 = vunpack.c.l.b16 %v4651
        %v4748 = vunpack.c.l.b16 %v4652
        %v4749 = vunpack.c.l.b16 %v4653
        %v4750 = vunpack.c.l.b16 %v4654
        %v4751 = vunpack.c.l.b16 %v4655
        %v4752 = vunpack.c.l.b16 %v4656
        %v4753 = vunpack.c.l.b16 %v4657
        %v4754 = vunpack.c.l.b16 %v4658
        %v4755 = vunpack.c.l.b16 %v4659
        %v4756 = vunpack.c.l.b16 %v4660
        %v4757 = vunpack.c.l.b16 %v4661
        %v4758 = vunpack.c.l.b16 %v4662
        %v4759 = vunpack.c.l.b16 %v4663
        %v4760 = vunpack.c.l.b16 %v4664
        %v4761 = vunpack.c.l.b16 %v4665
        %v4762 = vunpack.c.l.b16 %v4666
        %v4763 = vunpack.c.l.b16 %v4667
        %v4764 = vunpack.c.l.b16 %v4668
        %v4765 = vunpack.c.l.b16 %v4669
        %v4766 = vunpack.c.l.b16 %v4670
        %v4767 = vunpack.c.l.b16 %v4671
        %v4768 = vunpack.c.l.b16 %v4672
        %v4769 = vunpack.c.l.b16 %v4673
        %v4770 = vunpack.c.l.b16 %v4674
        %v4771 = vunpack.c.l.b16 %v4675
        %v4772 = vunpack.c.l.b16 %v4676
        %v4773 = vunpack.c.l.b16 %v4677
        %v4774 = vunpack.c.l.b16 %v4678
        %v4775 = vunpack.c.l.b16 %v4679
        %v4776 = vunpack.c.l.b16 %v4680
        %v4777 = vunpack.c.l.b16 %v4681
        %v4778 = vpack.c.b16 %v4731, %v4730
        %v4779 = vpack.c.b16 %v4733, %v4732
        %v4780 = vpack.c.b16 %v4735, %v4734
        %v4781 = vpack.c.b16 %v4737, %v4736
        %v4782 = vpack.c.b16 %v4739, %v4738
        %v4783 = vpack.c.b16 %v4741, %v4740
        %v4784 = vpack.c.b16 %v4743, %v4742
        %v4785 = vpack.c.b16 %v4745, %v4744
        %v4786 = vpack.c.b16 %v4747, %v4746
        %v4787 = vpack.c.b16 %v4749, %v4748
        %v4788 = vpack.c.b16 %v4751, %v4750
        %v4789 = vpack.c.b16 %v4753, %v4752
        %v4790 = vpack.c.b16 %v4755, %v4754
        %v4791 = vpack.c.b16 %v4757, %v4756
        %v4792 = vpack.c.b16 %v4759, %v4758
        %v4793 = vpack.c.b16 %v4761, %v4760
        %v4794 = vpack.c.b16 %v4763, %v4762
        %v4795 = vpack.c.b16 %v4765, %v4764
        %v4796 = vpack.c.b16 %v4767, %v4766
        %v4797 = vpack.c.b16 %v4769, %v4768
        %v4798 = vpack.c.b16 %v4771, %v4770
        %v4799 = vpack.c.b16 %v4773, %v4772
        %v4800 = vpack.c.b16 %v4775, %v4774
        %v4801 = vpack.c.b16 %v4777, %v4776
        %4826 = vmatprep.subr.bf16.mxu0 0
        %4827 = vmatpush1.bf16.msra.mxu0 %v4778
        %4828 = vmatprep.subr.bf16.mxu0 0
        %4829 = vmatpush1.bf16.msra.mxu0 %v4779
        %4830 = vmatprep.subr.bf16.mxu0 0
        %4831 = vmatpush1.bf16.msra.mxu0 %v4780
        %4832 = vmatprep.subr.bf16.mxu0 0
        %4833 = vmatpush1.bf16.msra.mxu0 %v4781
        %4834 = vmatprep.subr.bf16.mxu0 0
        %4835 = vmatpush1.bf16.msra.mxu0 %v4782
        %4836 = vmatprep.subr.bf16.mxu0 0
        %4837 = vmatpush1.bf16.msra.mxu0 %v4783
        %4838 = vmatprep.subr.bf16.mxu0 0
        %4839 = vmatpush1.bf16.msra.mxu0 %v4784
        %4840 = vmatprep.subr.bf16.mxu0 0
        %4841 = vmatpush1.bf16.msra.mxu0 %v4785
        %4842 = vmatprep.subr.bf16.mxu0 0
        %4843 = vmatpush1.bf16.msra.mxu0 %v4786
        %4844 = vmatprep.subr.bf16.mxu0 0
        %4845 = vmatpush1.bf16.msra.mxu0 %v4787
        %4846 = vmatprep.subr.bf16.mxu0 0
        %4847 = vmatpush1.bf16.msra.mxu0 %v4788
        %4848 = vmatprep.subr.bf16.mxu0 0
        %4849 = vmatpush1.bf16.msra.mxu0 %v4789
        %4850 = vmatprep.subr.bf16.mxu0 0
        %4851 = vmatpush1.bf16.msra.mxu0 %v4790
        %4852 = vmatprep.subr.bf16.mxu0 0
        %4853 = vmatpush1.bf16.msra.mxu0 %v4791
        %4854 = vmatprep.subr.bf16.mxu0 0
        %4855 = vmatpush1.bf16.msra.mxu0 %v4792
        %4856 = vmatprep.subr.bf16.mxu0 0
        %4857 = vmatpush1.bf16.msra.mxu0 %v4793
        %4858 = vmatprep.mubr.bf16.mxu0 %v3328
        %4859 = vmatmul.mubr.bf16.gmra.mrb[0].mxu0 %v3382
        %v4860 = vpop.f32.mrb[0].mxu0
        %v4861 = vadd.f32 0.0, %v4860
        %v4862 = vpop.f32.mrb[0].mxu0
        %v4863 = vpop.f32.mrb[0].mxu0
        %v4864 = vadd.f32 0.0, %v4863
        %v4865 = vpop.f32.mrb[0].mxu0
        %4866 = vmatprep.mubr.bf16.mxu0 %v3329
        %4867 = vmatmul.mubr.bf16.gmra.mrb[0].mxu0 %v3390
        %v4868 = vpop.f32.mrb[0].mxu0
        %v4869 = vadd.f32 0.0, %v4868
        %v4870 = vpop.f32.mrb[0].mxu0
        %v4871 = vpop.f32.mrb[0].mxu0
        %v4872 = vadd.f32 0.0, %v4871
        %v4873 = vpop.f32.mrb[0].mxu0
        %4874 = vmatprep.mubr.bf16.mxu0 %v3330
        %4875 = vmatmul.mubr.bf16.gmra.mrb[0].mxu0 %v3398
        %v4876 = vpop.f32.mrb[0].mxu0
        %v4877 = vadd.f32 0.0, %v4876
        %v4878 = vpop.f32.mrb[0].mxu0
        %v4879 = vpop.f32.mrb[0].mxu0
        %v4880 = vadd.f32 0.0, %v4879
        %v4881 = vpop.f32.mrb[0].mxu0
        %4882 = vmatprep.mubr.bf16.mxu0 %v3331
        %4883 = vmatmul.mubr.bf16.gmra.mrb[0].mxu0 %v3406
        %v4884 = vpop.f32.mrb[0].mxu0
        %v4885 = vadd.f32 0.0, %v4884
        %v4886 = vpop.f32.mrb[0].mxu0
        %v4887 = vpop.f32.mrb[0].mxu0
        %v4888 = vadd.f32 0.0, %v4887
        %v4889 = vpop.f32.mrb[0].mxu0
        %4890 = vmatprep.mubr.bf16.mxu0 %v3332
        %4891 = vmatmul.mubr.bf16.gmra.mrb[0].mxu0 %v3414
        %v4892 = vpop.f32.mrb[0].mxu0
        %v4893 = vadd.f32 0.0, %v4892
        %v4894 = vpop.f32.mrb[0].mxu0
        %v4895 = vpop.f32.mrb[0].mxu0
        %v4896 = vadd.f32 0.0, %v4895
        %v4897 = vpop.f32.mrb[0].mxu0
        %4898 = vmatprep.mubr.bf16.mxu0 %v3333
        %4899 = vmatmul.mubr.bf16.gmra.mrb[0].mxu0 %v3422
        %v4900 = vpop.f32.mrb[0].mxu0
        %v4901 = vadd.f32 0.0, %v4900
        %v4902 = vpop.f32.mrb[0].mxu0
        %v4903 = vpop.f32.mrb[0].mxu0
        %v4904 = vadd.f32 0.0, %v4903
        %v4905 = vpop.f32.mrb[0].mxu0
        %4906 = vmatprep.mubr.bf16.mxu0 %v3334
        %4907 = vmatmul.mubr.bf16.gmra.mrb[0].mxu0 %v3430
        %v4908 = vpop.f32.mrb[0].mxu0
        %v4909 = vadd.f32 0.0, %v4908
        %v4910 = vpop.f32.mrb[0].mxu0
        %v4911 = vpop.f32.mrb[0].mxu0
        %v4912 = vadd.f32 0.0, %v4911
        %v4913 = vpop.f32.mrb[0].mxu0
        %4914 = vmatprep.mubr.bf16.mxu0 %v3335
        %4915 = vmatmul.mubr.bf16.gmra.mrb[0].mxu0 %v3438
        %v4916 = vpop.f32.mrb[0].mxu0
        %v4917 = vadd.f32 0.0, %v4916
        %v4918 = vpop.f32.mrb[0].mxu0
        %v4919 = vpop.f32.mrb[0].mxu0
        %v4920 = vadd.f32 0.0, %v4919
        %v4921 = vpop.f32.mrb[0].mxu0
        %4922 = vmatprep.mubr.bf16.mxu0 %v3336
        %4923 = vmatmul.mubr.bf16.gmra.mrb[0].mxu0 %v3446
        %v4924 = vpop.f32.mrb[0].mxu0
        %v4925 = vadd.f32 0.0, %v4924
        %v4926 = vpop.f32.mrb[0].mxu0
        %v4927 = vpop.f32.mrb[0].mxu0
        %v4928 = vadd.f32 0.0, %v4927
        %v4929 = vpop.f32.mrb[0].mxu0
        %4930 = vmatprep.mubr.bf16.mxu0 %v3337
        %4931 = vmatmul.mubr.bf16.gmra.mrb[0].mxu0 %v3454
        %v4932 = vpop.f32.mrb[0].mxu0
        %v4933 = vadd.f32 0.0, %v4932
        %v4934 = vpop.f32.mrb[0].mxu0
        %v4935 = vpop.f32.mrb[0].mxu0
        %v4936 = vadd.f32 0.0, %v4935
        %v4937 = vpop.f32.mrb[0].mxu0
        %4938 = vmatprep.mubr.bf16.mxu0 %v3338
        %4939 = vmatmul.mubr.bf16.gmra.mrb[0].mxu0 %v3462
        %v4940 = vpop.f32.mrb[0].mxu0
        %v4941 = vadd.f32 0.0, %v4940
        %v4942 = vpop.f32.mrb[0].mxu0
        %v4943 = vpop.f32.mrb[0].mxu0
        %v4944 = vadd.f32 0.0, %v4943
        %v4945 = vpop.f32.mrb[0].mxu0
        %4946 = vmatprep.mubr.bf16.mxu0 %v3339
        %4947 = vmatmul.mubr.bf16.gmra.mrb[0].mxu0 %v3470
        %v4948 = vpop.f32.mrb[0].mxu0
        %v4949 = vadd.f32 0.0, %v4948
        %v4950 = vpop.f32.mrb[0].mxu0
        %v4951 = vpop.f32.mrb[0].mxu0
        %v4952 = vadd.f32 0.0, %v4951
        %v4953 = vpop.f32.mrb[0].mxu0
        %4954 = vmatprep.mubr.bf16.mxu0 %v3340
        %4955 = vmatmul.mubr.bf16.gmra.mrb[0].mxu0 %v3478
        %v4956 = vpop.f32.mrb[0].mxu0
        %v4957 = vadd.f32 0.0, %v4956
        %v4958 = vpop.f32.mrb[0].mxu0
        %v4959 = vpop.f32.mrb[0].mxu0
        %v4960 = vadd.f32 0.0, %v4959
        %v4961 = vpop.f32.mrb[0].mxu0
        %4962 = vmatprep.mubr.bf16.mxu0 %v3341
        %4963 = vmatmul.mubr.bf16.gmra.mrb[0].mxu0 %v3486
        %v4964 = vpop.f32.mrb[0].mxu0
        %v4965 = vadd.f32 0.0, %v4964
        %v4966 = vpop.f32.mrb[0].mxu0
        %v4967 = vpop.f32.mrb[0].mxu0
        %v4968 = vadd.f32 0.0, %v4967
        %v4969 = vpop.f32.mrb[0].mxu0
        %4970 = vmatprep.mubr.bf16.mxu0 %v3342
        %4971 = vmatmul.mubr.bf16.gmra.mrb[0].mxu0 %v3494
        %v4972 = vpop.f32.mrb[0].mxu0
        %v4973 = vadd.f32 0.0, %v4972
        %v4974 = vpop.f32.mrb[0].mxu0
        %v4975 = vpop.f32.mrb[0].mxu0
        %v4976 = vadd.f32 0.0, %v4975
        %v4977 = vpop.f32.mrb[0].mxu0
        %4978 = vmatprep.mubr.bf16.mxu0 %v3343
        %4979 = vmatmul.mubr.bf16.gmra.mrb[0].mxu0 %v3502
        %v4980 = vpop.f32.mrb[0].mxu0
        %v4981 = vadd.f32 0.0, %v4980
        %v4982 = vpop.f32.mrb[0].mxu0
        %v4983 = vpop.f32.mrb[0].mxu0
        %v4984 = vadd.f32 0.0, %v4983
        %v4985 = vpop.f32.mrb[0].mxu0
        %4986 = vdwg.mxu0
        %4987 = vmatprep.subr.bf16.mxu0 0
        %4988 = vmatpush1.bf16.msra.mxu0 %v4794
        %4989 = vmatprep.subr.bf16.mxu0 0
        %4990 = vmatpush1.bf16.msra.mxu0 %v4795
        %4991 = vmatprep.subr.bf16.mxu0 0
        %4992 = vmatpush1.bf16.msra.mxu0 %v4796
        %4993 = vmatprep.subr.bf16.mxu0 0
        %4994 = vmatpush1.bf16.msra.mxu0 %v4797
        %4995 = vmatprep.subr.bf16.mxu0 0
        %4996 = vmatpush1.bf16.msra.mxu0 %v4798
        %4997 = vmatprep.subr.bf16.mxu0 0
        %4998 = vmatpush1.bf16.msra.mxu0 %v4799
        %4999 = vmatprep.subr.bf16.mxu0 0
        %5000 = vmatpush1.bf16.msra.mxu0 %v4800
        %5001 = vmatprep.subr.bf16.mxu0 0
        %5002 = vmatpush1.bf16.msra.mxu0 %v4801
        %5003 = vmatprep.subr.bf16.mxu0 0
        %5004 = vmatpush1.bf16.msra.mxu0 0
        %5005 = vmatprep.subr.bf16.mxu0 0
        %5006 = vmatpush1.bf16.msra.mxu0 0
        %5007 = vmatprep.subr.bf16.mxu0 0
        %5008 = vmatpush1.bf16.msra.mxu0 0
        %5009 = vmatprep.subr.bf16.mxu0 0
        %5010 = vmatpush1.bf16.msra.mxu0 0
        %5011 = vmatprep.subr.bf16.mxu0 0
        %5012 = vmatpush1.bf16.msra.mxu0 0
        %5013 = vmatprep.subr.bf16.mxu0 0
        %5014 = vmatpush1.bf16.msra.mxu0 0
        %5015 = vmatprep.subr.bf16.mxu0 0
        %5016 = vmatpush1.bf16.msra.mxu0 0
        %5017 = vmatprep.subr.bf16.mxu0 0
        %5018 = vmatpush1.bf16.msra.mxu0 0
        %5019 = vmatprep.mubr.bf16.mxu0 0
        %5020 = vmatmul.mubr.bf16.gmra.mrb[0].mxu0 %v3539
        %v5021 = vpop.f32.mrb[0].mxu0
        %v5022 = vadd.f32 %v4861, %v5021
        %v5023 = vpop.f32.mrb[0].mxu0
        %v5024 = vpop.f32.mrb[0].mxu0
        %v5025 = vadd.f32 %v4864, %v5024
        %v5026 = vpop.f32.mrb[0].mxu0
        %5027 = vmatprep.mubr.bf16.mxu0 0
        %5028 = vmatmul.mubr.bf16.gmra.mrb[0].mxu0 %v3542
        %v5029 = vpop.f32.mrb[0].mxu0
        %v5030 = vadd.f32 %v4869, %v5029
        %v5031 = vpop.f32.mrb[0].mxu0
        %v5032 = vpop.f32.mrb[0].mxu0
        %v5033 = vadd.f32 %v4872, %v5032
        %v5034 = vpop.f32.mrb[0].mxu0
        %5035 = vmatprep.mubr.bf16.mxu0 0
        %5036 = vmatmul.mubr.bf16.gmra.mrb[0].mxu0 %v3545
        %v5037 = vpop.f32.mrb[0].mxu0
        %v5038 = vadd.f32 %v4877, %v5037
        %v5039 = vpop.f32.mrb[0].mxu0
        %v5040 = vpop.f32.mrb[0].mxu0
        %v5041 = vadd.f32 %v4880, %v5040
        %v5042 = vpop.f32.mrb[0].mxu0
        %5043 = vmatprep.mubr.bf16.mxu0 0
        %5044 = vmatmul.mubr.bf16.gmra.mrb[0].mxu0 %v3548
        %v5045 = vpop.f32.mrb[0].mxu0
        %v5046 = vadd.f32 %v4885, %v5045
        %v5047 = vpop.f32.mrb[0].mxu0
        %v5048 = vpop.f32.mrb[0].mxu0
        %v5049 = vadd.f32 %v4888, %v5048
        %v5050 = vpop.f32.mrb[0].mxu0
        %5051 = vmatprep.mubr.bf16.mxu0 0
        %5052 = vmatmul.mubr.bf16.gmra.mrb[0].mxu0 %v3551
        %v5053 = vpop.f32.mrb[0].mxu0
        %v5054 = vadd.f32 %v4893, %v5053
        %v5055 = vpop.f32.mrb[0].mxu0
        %v5056 = vpop.f32.mrb[0].mxu0
        %v5057 = vadd.f32 %v4896, %v5056
        %v5058 = vpop.f32.mrb[0].mxu0
        %5059 = vmatprep.mubr.bf16.mxu0 0
        %5060 = vmatmul.mubr.bf16.gmra.mrb[0].mxu0 %v3554
        %v5061 = vpop.f32.mrb[0].mxu0
        %v5062 = vadd.f32 %v4901, %v5061
        %v5063 = vpop.f32.mrb[0].mxu0
        %v5064 = vpop.f32.mrb[0].mxu0
        %v5065 = vadd.f32 %v4904, %v5064
        %v5066 = vpop.f32.mrb[0].mxu0
        %5067 = vmatprep.mubr.bf16.mxu0 0
        %5068 = vmatmul.mubr.bf16.gmra.mrb[0].mxu0 %v3557
        %v5069 = vpop.f32.mrb[0].mxu0
        %v5070 = vadd.f32 %v4909, %v5069
        %v5071 = vpop.f32.mrb[0].mxu0
        %v5072 = vpop.f32.mrb[0].mxu0
        %v5073 = vadd.f32 %v4912, %v5072
        %v5074 = vpop.f32.mrb[0].mxu0
        %5075 = vmatprep.mubr.bf16.mxu0 0
        %5076 = vmatmul.mubr.bf16.gmra.mrb[0].mxu0 %v3560
        %v5077 = vpop.f32.mrb[0].mxu0
        %v5078 = vadd.f32 %v4917, %v5077
        %v5079 = vpop.f32.mrb[0].mxu0
        %v5080 = vpop.f32.mrb[0].mxu0
        %v5081 = vadd.f32 %v4920, %v5080
        %v5082 = vpop.f32.mrb[0].mxu0
        %5083 = vmatprep.mubr.bf16.mxu0 0
        %5084 = vmatmul.mubr.bf16.gmra.mrb[0].mxu0 %v3563
        %v5085 = vpop.f32.mrb[0].mxu0
        %v5086 = vadd.f32 %v4925, %v5085
        %v5087 = vpop.f32.mrb[0].mxu0
        %v5088 = vpop.f32.mrb[0].mxu0
        %v5089 = vadd.f32 %v4928, %v5088
        %v5090 = vpop.f32.mrb[0].mxu0
        %5091 = vmatprep.mubr.bf16.mxu0 0
        %5092 = vmatmul.mubr.bf16.gmra.mrb[0].mxu0 %v3566
        %v5093 = vpop.f32.mrb[0].mxu0
        %v5094 = vadd.f32 %v4933, %v5093
        %v5095 = vpop.f32.mrb[0].mxu0
        %v5096 = vpop.f32.mrb[0].mxu0
        %v5097 = vadd.f32 %v4936, %v5096
        %v5098 = vpop.f32.mrb[0].mxu0
        %5099 = vmatprep.mubr.bf16.mxu0 0
        %5100 = vmatmul.mubr.bf16.gmra.mrb[0].mxu0 %v3569
        %v5101 = vpop.f32.mrb[0].mxu0
        %v5102 = vadd.f32 %v4941, %v5101
        %v5103 = vpop.f32.mrb[0].mxu0
        %v5104 = vpop.f32.mrb[0].mxu0
        %v5105 = vadd.f32 %v4944, %v5104
        %v5106 = vpop.f32.mrb[0].mxu0
        %5107 = vmatprep.mubr.bf16.mxu0 0
        %5108 = vmatmul.mubr.bf16.gmra.mrb[0].mxu0 %v3572
        %v5109 = vpop.f32.mrb[0].mxu0
        %v5110 = vadd.f32 %v4949, %v5109
        %v5111 = vpop.f32.mrb[0].mxu0
        %v5112 = vpop.f32.mrb[0].mxu0
        %v5113 = vadd.f32 %v4952, %v5112
        %v5114 = vpop.f32.mrb[0].mxu0
        %5115 = vmatprep.mubr.bf16.mxu0 0
        %5116 = vmatmul.mubr.bf16.gmra.mrb[0].mxu0 %v3575
        %v5117 = vpop.f32.mrb[0].mxu0
        %v5118 = vadd.f32 %v4957, %v5117
        %v5119 = vpop.f32.mrb[0].mxu0
        %v5120 = vpop.f32.mrb[0].mxu0
        %v5121 = vadd.f32 %v4960, %v5120
        %v5122 = vpop.f32.mrb[0].mxu0
        %5123 = vmatprep.mubr.bf16.mxu0 0
        %5124 = vmatmul.mubr.bf16.gmra.mrb[0].mxu0 %v3578
        %v5125 = vpop.f32.mrb[0].mxu0
        %v5126 = vadd.f32 %v4965, %v5125
        %v5127 = vpop.f32.mrb[0].mxu0
        %v5128 = vpop.f32.mrb[0].mxu0
        %v5129 = vadd.f32 %v4968, %v5128
        %v5130 = vpop.f32.mrb[0].mxu0
        %5131 = vmatprep.mubr.bf16.mxu0 0
        %5132 = vmatmul.mubr.bf16.gmra.mrb[0].mxu0 %v3581
        %v5133 = vpop.f32.mrb[0].mxu0
        %v5134 = vadd.f32 %v4973, %v5133
        %v5135 = vpop.f32.mrb[0].mxu0
        %v5136 = vpop.f32.mrb[0].mxu0
        %v5137 = vadd.f32 %v4976, %v5136
        %v5138 = vpop.f32.mrb[0].mxu0
        %5139 = vmatprep.mubr.bf16.mxu0 0
        %5140 = vmatmul.mubr.bf16.gmra.mrb[0].mxu0 %v3603
        %v5141 = vpop.f32.mrb[0].mxu0
        %v5142 = vadd.f32 %v4981, %v5141
        %v5143 = vpop.f32.mrb[0].mxu0
        %v5144 = vpop.f32.mrb[0].mxu0
        %v5145 = vadd.f32 %v4984, %v5144
        %v5146 = vpop.f32.mrb[0].mxu0
        %5147 = vdwg.mxu0
        %v5148 = vadd.f32 %v4507, %v5022
        %v5149 = vadd.f32 %v4510, %v5025
        %v5150 = vadd.f32 %v4515, %v5030
        %v5151 = vadd.f32 %v4518, %v5033
        %v5152 = vadd.f32 %v4523, %v5038
        %v5153 = vadd.f32 %v4526, %v5041
        %v5154 = vadd.f32 %v4531, %v5046
        %v5155 = vadd.f32 %v4534, %v5049
        %v5156 = vadd.f32 %v4539, %v5054
        %v5157 = vadd.f32 %v4542, %v5057
        %v5158 = vadd.f32 %v4547, %v5062
        %v5159 = vadd.f32 %v4550, %v5065
        %v5160 = vadd.f32 %v4555, %v5070
        %v5161 = vadd.f32 %v4558, %v5073
        %v5162 = vadd.f32 %v4563, %v5078
        %v5163 = vadd.f32 %v4566, %v5081
        %v5164 = vadd.f32 %v4571, %v5086
        %v5165 = vadd.f32 %v4574, %v5089
        %v5166 = vadd.f32 %v4579, %v5094
        %v5167 = vadd.f32 %v4582, %v5097
        %v5168 = vadd.f32 %v4587, %v5102
        %v5169 = vadd.f32 %v4590, %v5105
        %v5170 = vadd.f32 %v4595, %v5110
        %v5171 = vadd.f32 %v4598, %v5113
        %v5172 = vadd.f32 %v4603, %v5118
        %v5173 = vadd.f32 %v4606, %v5121
        %v5174 = vadd.f32 %v4611, %v5126
        %v5175 = vadd.f32 %v4614, %v5129
        %v5176 = vadd.f32 %v4619, %v5134
        %v5177 = vadd.f32 %v4622, %v5137
        %v5178 = vadd.f32 %v4627, %v5142
        %v5179 = vadd.f32 %v4630, %v5145
        %v5180 = vld [vmem:[%s5] sm:$0x1]
        %v5182 = vlaneseq
        %v5183 = vshrl.u32 %v5182, 7
        %v5184 = vsub.s32 0, %v5183
        %v5185 = vrot.slane %v5180, %v5184
        %v5187 = vadd.f32 %v5148, %v5185
        %v5188 = vadd.f32 %v5149, %v5185
        %v5189 = vadd.f32 %v5150, %v5185
        %v5190 = vadd.f32 %v5151, %v5185
        %v5191 = vadd.f32 %v5152, %v5185
        %v5192 = vadd.f32 %v5153, %v5185
        %v5193 = vadd.f32 %v5154, %v5185
        %v5194 = vadd.f32 %v5155, %v5185
        %v5195 = vadd.f32 %v5156, %v5185
        %v5196 = vadd.f32 %v5157, %v5185
        %v5197 = vadd.f32 %v5158, %v5185
        %v5198 = vadd.f32 %v5159, %v5185
        %v5199 = vadd.f32 %v5160, %v5185
        %v5200 = vadd.f32 %v5161, %v5185
        %v5201 = vadd.f32 %v5162, %v5185
        %v5202 = vadd.f32 %v5163, %v5185
        %v5203 = vadd.f32 %v5164, %v5185
        %v5204 = vadd.f32 %v5165, %v5185
        %v5205 = vadd.f32 %v5166, %v5185
        %v5206 = vadd.f32 %v5167, %v5185
        %v5207 = vadd.f32 %v5168, %v5185
        %v5208 = vadd.f32 %v5169, %v5185
        %v5209 = vadd.f32 %v5170, %v5185
        %v5210 = vadd.f32 %v5171, %v5185
        %v5211 = vadd.f32 %v5172, %v5185
        %v5212 = vadd.f32 %v5173, %v5185
        %v5213 = vadd.f32 %v5174, %v5185
        %v5214 = vadd.f32 %v5175, %v5185
        %v5215 = vadd.f32 %v5176, %v5185
        %v5216 = vadd.f32 %v5177, %v5185
        %v5217 = vadd.f32 %v5178, %v5185
        %v5218 = vadd.f32 %v5179, %v5185
        %v5219 = vadd.f32 %v391, %v5187
        %v5220 = vadd.f32 %v392, %v5188
        %v5221 = vadd.f32 %v393, %v5189
        %v5222 = vadd.f32 %v394, %v5190
        %v5223 = vadd.f32 %v395, %v5191
        %v5224 = vadd.f32 %v396, %v5192
        %v5225 = vadd.f32 %v397, %v5193
        %v5226 = vadd.f32 %v398, %v5194
        %v5227 = vadd.f32 %v399, %v5195
        %v5228 = vadd.f32 %v400, %v5196
        %v5229 = vadd.f32 %v401, %v5197
        %v5230 = vadd.f32 %v402, %v5198
        %v5231 = vadd.f32 %v403, %v5199
        %v5232 = vadd.f32 %v404, %v5200
        %v5233 = vadd.f32 %v405, %v5201
        %v5234 = vadd.f32 %v406, %v5202
        %v5235 = vadd.f32 %v407, %v5203
        %v5236 = vadd.f32 %v408, %v5204
        %v5237 = vadd.f32 %v409, %v5205
        %v5238 = vadd.f32 %v410, %v5206
        %v5239 = vadd.f32 %v411, %v5207
        %v5240 = vadd.f32 %v412, %v5208
        %v5241 = vadd.f32 %v413, %v5209
        %v5242 = vadd.f32 %v414, %v5210
        %v5243 = vmax.f32 %v5219, 0.0
        %v5244 = vmax.f32 %v5220, 0.0
        %v5245 = vmax.f32 %v5221, 0.0
        %v5246 = vmax.f32 %v5222, 0.0
        %v5247 = vmax.f32 %v5223, 0.0
        %v5248 = vmax.f32 %v5224, 0.0
        %v5249 = vmax.f32 %v5225, 0.0
        %v5250 = vmax.f32 %v5226, 0.0
        %v5251 = vmax.f32 %v5227, 0.0
        %v5252 = vmax.f32 %v5228, 0.0
        %v5253 = vmax.f32 %v5229, 0.0
        %v5254 = vmax.f32 %v5230, 0.0
        %v5255 = vmax.f32 %v5231, 0.0
        %v5256 = vmax.f32 %v5232, 0.0
        %v5257 = vmax.f32 %v5233, 0.0
        %v5258 = vmax.f32 %v5234, 0.0
        %v5259 = vmax.f32 %v5235, 0.0
        %v5260 = vmax.f32 %v5236, 0.0
        %v5261 = vmax.f32 %v5237, 0.0
        %v5262 = vmax.f32 %v5238, 0.0
        %v5263 = vmax.f32 %v5239, 0.0
        %v5264 = vmax.f32 %v5240, 0.0
        %v5265 = vmax.f32 %v5241, 0.0
        %v5266 = vmax.f32 %v5242, 0.0
        %5267 = vst [vmem:[%s372] sm:$0xff] %v5243
        %5268 = vst [vmem:[%s372 + $0x8] sm:$0xff] %v5244
        %5269 = vst [vmem:[%s372 + $0x10] sm:$0xff] %v5245
        %5270 = vst [vmem:[%s372 + $0x18] sm:$0xff] %v5246
        %5271 = vst [vmem:[%s372 + $0x20] sm:$0xff] %v5247
        %5272 = vst [vmem:[%s372 + $0x28] sm:$0xff] %v5248
        %5273 = vst [vmem:[%s372 + $0x30] sm:$0xff] %v5249
        %5274 = vst [vmem:[%s372 + $0x38] sm:$0xff] %v5250
        %5275 = vst [vmem:[%s372 + $0x40] sm:$0xff] %v5251
        %5276 = vst [vmem:[%s372 + $0x48] sm:$0xff] %v5252
        %5277 = vst [vmem:[%s372 + $0x50] sm:$0xff] %v5253
        %5278 = vst [vmem:[%s372 + $0x58] sm:$0xff] %v5254
        %5279 = vst [vmem:[%s372 + $0x60] sm:$0xff] %v5255
        %5280 = vst [vmem:[%s372 + $0x68] sm:$0xff] %v5256
        %5281 = vst [vmem:[%s372 + $0x70] sm:$0xff] %v5257
        %5282 = vst [vmem:[%s372 + $0x78] sm:$0xff] %v5258
        %5283 = vst [vmem:[%s372 + $0x80] sm:$0xff] %v5259
        %5284 = vst [vmem:[%s372 + $0x88] sm:$0xff] %v5260
        %5285 = vst [vmem:[%s372 + $0x90] sm:$0xff] %v5261
        %5286 = vst [vmem:[%s372 + $0x98] sm:$0xff] %v5262
        %5287 = vst [vmem:[%s372 + $0xa0] sm:$0xff] %v5263
        %5288 = vst [vmem:[%s372 + $0xa8] sm:$0xff] %v5264
        %5289 = vst [vmem:[%s372 + $0xb0] sm:$0xff] %v5265
        %5290 = vst [vmem:[%s372 + $0xb8] sm:$0xff] %v5266
        %v5291 = vld [vmem:[%s331] sm:$0xff]
        %v5292 = vld [vmem:[%s331 + $0x8] sm:$0xff]
        %v5293 = vld [vmem:[%s331 + $0x10] sm:$0xff]
        %v5294 = vld [vmem:[%s331 + $0x18] sm:$0xff]
        %v5295 = vld [vmem:[%s331 + $0x20] sm:$0xff]
        %v5296 = vld [vmem:[%s331 + $0x28] sm:$0xff]
        %v5297 = vld [vmem:[%s331 + $0x30] sm:$0xff]
        %v5298 = vld [vmem:[%s331 + $0x38] sm:$0xff]
        %v5299 = vadd.f32 %v5291, %v5211
        %v5300 = vadd.f32 %v5292, %v5212
        %v5301 = vadd.f32 %v5293, %v5213
        %v5302 = vadd.f32 %v5294, %v5214
        %v5303 = vadd.f32 %v5295, %v5215
        %v5304 = vadd.f32 %v5296, %v5216
        %v5305 = vadd.f32 %v5297, %v5217
        %v5306 = vadd.f32 %v5298, %v5218
        %v5307 = vmax.f32 %v5299, 0.0
        %v5308 = vmax.f32 %v5300, 0.0
        %v5309 = vmax.f32 %v5301, 0.0
        %v5310 = vmax.f32 %v5302, 0.0
        %v5311 = vmax.f32 %v5303, 0.0
        %v5312 = vmax.f32 %v5304, 0.0
        %v5313 = vmax.f32 %v5305, 0.0
        %v5314 = vmax.f32 %v5306, 0.0
        %5315 = vst [vmem:[%s372 + $0xc0] sm:$0xff] %v5307
        %5316 = vst [vmem:[%s372 + $0xc8] sm:$0xff] %v5308
        %5317 = vst [vmem:[%s372 + $0xd0] sm:$0xff] %v5309
        %5318 = vst [vmem:[%s372 + $0xd8] sm:$0xff] %v5310
        %5319 = vst [vmem:[%s372 + $0xe0] sm:$0xff] %v5311
        %5320 = vst [vmem:[%s372 + $0xe8] sm:$0xff] %v5312
        %5321 = vst [vmem:[%s372 + $0xf0] sm:$0xff] %v5313
        %5322 = vst [vmem:[%s372 + $0xf8] sm:$0xff] %v5314
        %s5323 = sand.u32 %s193, 1
        %s5324 = scalar_lea.sflag [#allocation4], %s5323
        %s5325 = sand.u32 %s193, 1
        %s5326 = smul.addr %s5325, 256
        %s5327 = scalar_lea.vmem [#allocation10], %s5326
        // Predicated region
        $region61: #{tpu_custom_call.1} parent=43 // pred_check
          %p5328 = pneg %p203
        $region62: #{tpu_custom_call.1} parent=43 // pred_check_branch
          %5330 = sbr.rel (%p5328) target = $region64
        $region63: #{tpu_custom_call.1} parent=43 // pred_region
          %s5331 = smul.u32 32, %s32
          %s5333 = ssub.s32 4096, 4096
          %5334 = vsyncadd %s5324, %s5333
          %s5335 = smul.addr %s31, 64
          %s5336 = sadd.s32 %s5331, %s5335
          %s5337 = smul.addr %s5336, 128
          %s5338 = scalar_lea.hbm %s6, %s5337
          %s5339 = sshll.u32 %s5327, 4
          %s5340 = int_to_ptr.vmem [resolvable:$true] %s5339
          %5345 = dma.vmem_to_hbm [thread:$0]  %s5340, 4096, %s5338, %s5324, 128, 128, 8
        $region64: #{tpu_custom_call.1} parent=43 // pred_fallthru
          _
      $region44: #{tpu_custom_call.1} parent=5 // pred_fallthru
        _
      %p5346 = scmp.le.s32.totalorder 2, %s22
      // Predicated region
      $region65: #{tpu_custom_call.1} parent=5 // pred_check
        %p5347 = pneg %p5346
      $region66: #{tpu_custom_call.1} parent=5 // pred_check_branch
        %5349 = sbr.rel (%p5347) target = $region68
      $region67: #{tpu_custom_call.1} parent=5 // pred_region
        %s5350 = ssub.s32 %s22, 2
        // Predicated region
        $region69: #{tpu_custom_call.1} parent=67 // pred_check
          %p5351 = pneg %p209
        $region70: #{tpu_custom_call.1} parent=67 // pred_check_branch
          %5353 = sbr.rel (%p5351) target = $region72
        $region71: #{tpu_custom_call.1} parent=67 // pred_region
          %s5354 = sand.u32 %s194, 1
          %s5355 = scalar_lea.sflag [#allocation4], %s5354
          %s5356 = sand.u32 %s194, 1
          %s5357 = smul.addr %s5356, 256
          %s5358 = scalar_lea.vmem [#allocation10], %s5357
          %5359 = dma.done %s5355, 4096
        $region72: #{tpu_custom_call.1} parent=67 // pred_fallthru
          _
      $region68: #{tpu_custom_call.1} parent=5 // pred_fallthru
        _
    $region6: #{tpu_custom_call.1} parent=1 // loop_footer
      %s26 = sadd.s32 1, %s22
    $region7: #{tpu_custom_call.1} parent=1 // loop_footer_branch
      %21 = sbr.rel target = $region3
    $region8: #{tpu_custom_call.1} parent=1 // loop_exit
      _
    %5360 = vsyncpa [#allocation3], 1
    %s5361 = scalar_lea.sflag [#allocation3], 1
    %5362 = vsyncpa %s5361, 1
    %5363 = vsyncpa [#allocation6], 1
    %s5364 = scalar_lea.sflag [#allocation6], 1
    %5365 = vsyncpa %s5364, 1
    %5366 = vsyncpa [#allocation9], 1
    %5367 = vsyncpa [#allocation4], 1
    %s5368 = scalar_lea.sflag [#allocation4], 1
    %5369 = vsyncpa %s5368, 1

</llo_original>
